<compile_context>
chip_gen: v7x
topology: tpu7x:2x2x1
jax: 0.10.0
libtpu: 0.0.40
codegen_flags: <defaults>
</compile_context>

<pallas_src>
import jax
import jax.numpy as jnp
from jax.experimental import pallas as pl
from jax.experimental.pallas import tpu as pltpu


# ---------------------------------------------------------------------------
# Kernel A: h1 = relu(x @ W1 + b1)   (the only large / bandwidth-bound op)
#   grid = (n, k): n = output-column half (parallel), k = reduction (arbitrary)
# ---------------------------------------------------------------------------
def _l1_kernel(x_ref, w1_ref, b1_ref, h1_ref, acc_ref):
    k = pl.program_id(1)

    @pl.when(k == 0)
    def _():
        acc_ref[...] = jnp.zeros_like(acc_ref)

    acc_ref[...] += jnp.dot(x_ref[...], w1_ref[...],
                            preferred_element_type=jnp.float32)

    @pl.when(k == pl.num_programs(1) - 1)
    def _():
        # bias + relu; lane-dense [B, tn] store (tn multiple of 128).
        h1_ref[...] = jnp.maximum(acc_ref[...] + b1_ref[...], 0.0)


# ---------------------------------------------------------------------------
# Kernel B: tiny fused epilogue  out = l4(relu(l3(relu(l2(h1)))))
# ---------------------------------------------------------------------------
def _epilogue_kernel(h1_ref, w2_ref, b2_ref, w3_ref, b3_ref,
                     w4_ref, b4_ref, o_ref):
    h2 = jnp.maximum(
        jnp.dot(h1_ref[...], w2_ref[...], preferred_element_type=jnp.float32)
        + b2_ref[...], 0.0)
    h3 = jnp.maximum(
        jnp.dot(h2, w3_ref[...], preferred_element_type=jnp.float32)
        + b3_ref[...], 0.0)
    out = (jnp.dot(h3, w4_ref[...], preferred_element_type=jnp.float32)
           + b4_ref[...])
    o_ref[...] = out.astype(o_ref.dtype)


def _pick_tk(in_dim, tk_max=7680):
    """Largest K tile <= tk_max that divides in_dim and is a multiple of 128."""
    tk = min(tk_max, in_dim)
    tk -= tk % 128
    while tk > 128 and in_dim % tk != 0:
        tk -= 128
    assert tk >= 128 and in_dim % tk == 0 and tk % 128 == 0, (in_dim, tk)
    return tk


def dense3_forward(x_nchw, params, *, tk_max=7680, tn=256):
    """x_nchw: [B, C, H, W] float32.  params: dict of W1..W4, b1..b4."""
    B = x_nchw.shape[0]
    x = x_nchw.reshape(B, -1)                 # row-major flatten (== torch .view)
    in_dim = x.shape[1]
    tk = _pick_tk(in_dim, tk_max)
    n_k = in_dim // tk
    assert 512 % tn == 0 and tn % 128 == 0
    n_n = 512 // tn

    W1, b1 = params["W1"], params["b1"]       # [in_dim, 512], [1, 512]
    W2, b2 = params["W2"], params["b2"]       # [512, 512],    [1, 512]
    W3, b3 = params["W3"], params["b3"]       # [512, 64],     [1, 64]
    W4, b4 = params["W4"], params["b4"]       # [64, 4],       [1, 4]

    # ---- layer 1: HBM-bandwidth bound (streams in_dim*512*4 bytes of W1) ----
    l1_flops = 2 * B * in_dim * 512
    l1_bytes = 4 * (in_dim * 512 + B * in_dim + 512 + B * 512)
    h1 = pl.pallas_call(
        _l1_kernel,
        out_shape=jax.ShapeDtypeStruct((B, 512), jnp.float32),
        grid_spec=pltpu.PrefetchScalarGridSpec(
            num_scalar_prefetch=0,
            grid=(n_n, n_k),                                   # K innermost
            in_specs=[
                pl.BlockSpec((B, tk), lambda n, k: (0, k)),    # x K-tile
                pl.BlockSpec((tk, tn), lambda n, k: (k, n)),   # W1 tile
                pl.BlockSpec((1, tn), lambda n, k: (0, n)),    # b1 half
            ],
            out_specs=pl.BlockSpec((B, tn), lambda n, k: (0, n)),
            scratch_shapes=[pltpu.VMEM((B, tn), jnp.float32)],
        ),
        compiler_params=pltpu.CompilerParams(
            dimension_semantics=("parallel", "arbitrary"),
        ),
        cost_estimate=pl.CostEstimate(
            flops=l1_flops, transcendentals=0, bytes_accessed=l1_bytes),
    )(x, W1, b1)

    # ---- epilogue: tiny fused l2/l3/l4, single grid step --------------------
    ep_flops = 2 * B * (512 * 512 + 512 * 64 + 64 * 4)
    ep_bytes = 4 * (512 * 512 + 512 * 64 + 64 * 4 + 512 + 64 + 4
                    + B * 512 + B * 4)
    out = pl.pallas_call(
        _epilogue_kernel,
        out_shape=jax.ShapeDtypeStruct((B, 4), jnp.float32),
        grid_spec=pltpu.PrefetchScalarGridSpec(
            num_scalar_prefetch=0,
            grid=(1,),
            in_specs=[
                pl.BlockSpec((B, 512), lambda i: (0, 0)),      # h1
                pl.BlockSpec((512, 512), lambda i: (0, 0)),    # W2
                pl.BlockSpec((1, 512), lambda i: (0, 0)),      # b2
                pl.BlockSpec((512, 64), lambda i: (0, 0)),     # W3
                pl.BlockSpec((1, 64), lambda i: (0, 0)),       # b3
                pl.BlockSpec((64, 4), lambda i: (0, 0)),       # W4
                pl.BlockSpec((1, 4), lambda i: (0, 0)),        # b4
            ],
            out_specs=pl.BlockSpec((B, 4), lambda i: (0, 0)),
        ),
        compiler_params=pltpu.CompilerParams(
            dimension_semantics=("arbitrary",),
        ),
        cost_estimate=pl.CostEstimate(
            flops=ep_flops, transcendentals=0, bytes_accessed=ep_bytes),
    )(h1, W2, b2, W3, b3, W4, b4)
    return out


def init_params(key, in_dim):
    """Deterministic init mimicking nn.Linear (uniform(-1/sqrt(fan_in), +))."""
    dims = [(in_dim, 512), (512, 512), (512, 64), (64, 4)]
    params = {}
    keys = jax.random.split(key, 2 * len(dims))
    for i, (fi, fo) in enumerate(dims):
        bound = 1.0 / (fi ** 0.5)
        params[f"W{i+1}"] = jax.random.uniform(
            keys[2 * i], (fi, fo), jnp.float32, -bound, bound)
        params[f"b{i+1}"] = jax.random.uniform(
            keys[2 * i + 1], (1, fo), jnp.float32, -bound, bound)
    return params


def reference_forward(x_nchw, params):
    x = x_nchw.reshape(x_nchw.shape[0], -1)
    h = jnp.maximum(x @ params["W1"] + params["b1"], 0.0)
    h = jnp.maximum(h @ params["W2"] + params["b2"], 0.0)
    h = jnp.maximum(h @ params["W3"] + params["b3"], 0.0)
    return h @ params["W4"] + params["b4"]


if __name__ == "__main__":
    # channels=12 (module default) -> in_dim = 15360 * (12 // 6) = 30720.
    # NCHW input [B=2, C=12, H=64, W=40]: 12*64*40 = 30720.
    B, C, H, W = 2, 12, 64, 40
    in_dim = C * H * W

    key = jax.random.PRNGKey(0)
    kx, kp = jax.random.split(key)
    x = jax.random.normal(kx, (B, C, H, W), dtype=jnp.float32)
    params = init_params(kp, in_dim)

    out = dense3_forward(x, params)
    out = jax.block_until_ready(out)

    ref = reference_forward(x, params)
    assert out.shape == (B, 4), out.shape
    assert jnp.allclose(out, ref, atol=1e-3, rtol=1e-3), "mismatch vs reference"
    print("KERNEL_OK")
</pallas_src>

<mosaic_0001>
module attributes {stable_mosaic.version = 11 : i64} {
  func.func @_l1_kernel(%arg0: i32, %arg1: i32, %arg2: memref<2x7680xf32, #tpu.memory_space<vmem>>, %arg3: memref<7680x256xf32, #tpu.memory_space<vmem>>, %arg4: memref<1x256xf32, #tpu.memory_space<vmem>>, %arg5: memref<2x256xf32, #tpu.memory_space<vmem>>, %arg6: memref<2x256xf32, #tpu.memory_space<vmem>>) attributes {dimension_semantics = [#tpu.dimension_semantics<parallel>, #tpu.dimension_semantics<arbitrary>], iteration_bounds = array<i64: 2, 4>, scalar_prefetch = 0 : i64, scratch_operands = 1 : i64, tpu.core_type = #tpu.core_type<tc>, window_params = [{transform_indices = @transform_0, window_bounds = array<i64: 2, 7680>}, {transform_indices = @transform_1, window_bounds = array<i64: 7680, 256>}, {transform_indices = @transform_2, window_bounds = array<i64: 1, 256>}, {transform_indices = @transform_3, window_bounds = array<i64: 2, 256>}]} {
    %c0_i32 = arith.constant 0 : i32
    %0 = arith.cmpi eq, %arg1, %c0_i32 : i32
    %1 = arith.extui %0 : i1 to i32
    %c0_i32_0 = arith.constant 0 : i32
    %2 = arith.cmpi ne, %1, %c0_i32_0 : i32
    scf.if %2 {
      %cst_9 = arith.constant 0.000000e+00 : f32
      %12 = vector.broadcast %cst_9 : f32 to vector<2x256xf32>
      %c0_10 = arith.constant 0 : index
      %c0_11 = arith.constant 0 : index
      %13 = vector.load %arg6[%c0_10, %c0_11] : memref<2x256xf32, #tpu.memory_space<vmem>>, vector<2x256xf32>
      tpu.vector_store %arg6[%c0_10, %c0_11], %12 {strides = array<i32>} : memref<2x256xf32, #tpu.memory_space<vmem>>, vector<2x256xf32>,
    } else {
    }
    %c0 = arith.constant 0 : index
    %c0_1 = arith.constant 0 : index
    %3 = vector.load %arg6[%c0, %c0_1] : memref<2x256xf32, #tpu.memory_space<vmem>>, vector<2x256xf32>
    %c0_2 = arith.constant 0 : index
    %c0_3 = arith.constant 0 : index
    %4 = vector.load %arg2[%c0_2, %c0_3] : memref<2x7680xf32, #tpu.memory_space<vmem>>, vector<2x7680xf32>
    %c0_4 = arith.constant 0 : index
    %c0_5 = arith.constant 0 : index
    %5 = vector.load %arg3[%c0_4, %c0_5] : memref<7680x256xf32, #tpu.memory_space<vmem>>, vector<7680x256xf32>
    %cst = arith.constant dense<0.000000e+00> : vector<2x256xf32>
    %6 = tpu.matmul %4, %5, %cst {dimension_numbers = #tpu.dot_dimension_numbers<[1], [0], [0], [1], [0, 0, 1, 1], [], []>} : vector<2x7680xf32>, vector<7680x256xf32>, vector<2x256xf32> -> vector<2x256xf32>
    %7 = arith.addf %3, %6 : vector<2x256xf32>
    %c0_6 = arith.constant 0 : index
    %c0_7 = arith.constant 0 : index
    %8 = vector.load %arg6[%c0_6, %c0_7] : memref<2x256xf32, #tpu.memory_space<vmem>>, vector<2x256xf32>
    tpu.vector_store %arg6[%c0_6, %c0_7], %7 {strides = array<i32>} : memref<2x256xf32, #tpu.memory_space<vmem>>, vector<2x256xf32>,
    %c3_i32 = arith.constant 3 : i32
    %9 = arith.cmpi eq, %arg1, %c3_i32 : i32
    %10 = arith.extui %9 : i1 to i32
    %c0_i32_8 = arith.constant 0 : i32
    %11 = arith.cmpi ne, %10, %c0_i32_8 : i32
    scf.if %11 {
      %c0_9 = arith.constant 0 : index
      %c0_10 = arith.constant 0 : index
      %12 = vector.load %arg6[%c0_9, %c0_10] : memref<2x256xf32, #tpu.memory_space<vmem>>, vector<2x256xf32>
      %c0_11 = arith.constant 0 : index
      %c0_12 = arith.constant 0 : index
      %13 = vector.load %arg4[%c0_11, %c0_12] : memref<1x256xf32, #tpu.memory_space<vmem>>, vector<1x256xf32>
      %14 = vector.broadcast %13 : vector<1x256xf32> to vector<2x256xf32>
      %15 = arith.addf %12, %14 : vector<2x256xf32>
      %cst_13 = arith.constant 0.000000e+00 : f32
      %16 = vector.broadcast %cst_13 : f32 to vector<2x256xf32>
      %17 = arith.maximumf %15, %16 : vector<2x256xf32>
      %c0_14 = arith.constant 0 : index
      %c0_15 = arith.constant 0 : index
      %18 = vector.load %arg5[%c0_14, %c0_15] : memref<2x256xf32, #tpu.memory_space<vmem>>, vector<2x256xf32>
      tpu.vector_store %arg5[%c0_14, %c0_15], %17 {strides = array<i32>} : memref<2x256xf32, #tpu.memory_space<vmem>>, vector<2x256xf32>,
    } else {
    }
    return
  }
  func.func @transform_0(%arg0: i32, %arg1: i32) -> (i32, i32) {
    %c0_i32 = arith.constant 0 : i32
    %c0_i32_0 = arith.constant 0 : i32
    return %c0_i32, %arg1 : i32, i32
  }
  func.func @transform_1(%arg0: i32, %arg1: i32) -> (i32, i32) {
    %c0_i32 = arith.constant 0 : i32
    return %arg1, %arg0 : i32, i32
  }
  func.func @transform_2(%arg0: i32, %arg1: i32) -> (i32, i32) {
    %c0_i32 = arith.constant 0 : i32
    %c0_i32_0 = arith.constant 0 : i32
    return %c0_i32, %arg0 : i32, i32
  }
  func.func @transform_3(%arg0: i32, %arg1: i32) -> (i32, i32) {
    %c0_i32 = arith.constant 0 : i32
    %c0_i32_0 = arith.constant 0 : i32
    return %c0_i32, %arg0 : i32, i32
  }
}

</mosaic_0001>

<llo_original>
// kernel: tpu_custom_call.1
$region0: #{tpu_custom_call.1}
  #allocation0 [shape = 'u32[]', space=smem, size = 0x4, offset = 0x4, fixed_abs, tag = 'smem constant byte address 0x4 - core index']
  #allocation1 [shape = 'u32[144,128]{1,0:T(1,128)}', space=vmem, size = 0x12000, scoped, tag = 'internal scratch']
  #allocation2 [shape = 'f32[2,256]{1,0:T(2,128)}', space=vmem, size = 0x800, scoped, tag = 'scratch operand']
  %s0 = inlined_call_operand.hbm [shape: f32[2,30720], index: 0, kind: input, shape index: {}]
  %s1 = inlined_call_operand.hbm [shape: f32[30720,512], index: 1, kind: input, shape index: {}]
  %s2 = inlined_call_operand.hbm [shape: f32[1,512], index: 2, kind: input, shape index: {}]
  %s3 = inlined_call_operand.hbm [shape: f32[2,512], index: 3, kind: output, shape index: {}]
  %s4 = sld [smem:[#allocation0]]
  $region65: #{tpu_custom_call.1} parent=0
    _
  %s6 = ssub.s32 1, %s4
  %s7 = scalar_select 0, %s6, %s4
  $region1: #{tpu_custom_call.1} parent=0
    #allocation3 [shape = 'u8[122880]{0}', space=vmem, size = 0x1e000, scoped, tag = 'input window, operand 0']
    #allocation4 [shape = 's32[2]{0}', space=sflag, size = 0x8, scoped, tag = 'scoped memory for tpu_custom_call.1']
    #allocation5 [shape = 's32[2]{0}', space=sflag, size = 0x8, scoped, tag = 'scoped memory for tpu_custom_call.1']
    #allocation6 [shape = 'u8[15728640]{0}', space=vmem, size = 0xf00000, scoped, tag = 'input window, operand 1']
    #allocation7 [shape = 's32[2]{0}', space=sflag, size = 0x8, scoped, tag = 'scoped memory for tpu_custom_call.1']
    #allocation8 [shape = 'u8[2048]{0}', space=vmem, size = 0x800, scoped, tag = 'input window, operand 2']
    #allocation9 [shape = 'u8[4096]{0}', space=vmem, size = 0x1000, scoped, tag = 'output window, operand 0']
    %8 = vsyncpa [#allocation4], 0
    %s9 = scalar_lea.sflag [#allocation4], 1
    %10 = vsyncpa %s9, 0
    %11 = vsyncpa [#allocation7], 0
    %s12 = scalar_lea.sflag [#allocation7], 1
    %13 = vsyncpa %s12, 0
    %14 = vsyncpa [#allocation5], 0
    %s15 = scalar_lea.sflag [#allocation5], 1
    %16 = vsyncpa %s15, 0
    loop: start=0, step=1, limit=10
    $region2: #{tpu_custom_call.1} parent=1 // loop_pre_header
      _
    $region3: #{tpu_custom_call.1} parent=1 // loop_header
      %s18 = sphi 0, %s22
      %p19 = scmp.ge.s32.totalorder %s18, 10
      %s25 = sphi 0, %s37
      %s26 = sphi 0, %s33
      %s27 = sphi 0, %s25
      %s28 = sphi 0, %s26
      %s29 = sphi 0, %s27
      %s30 = sphi 0, %s28
      %s40 = sphi 0, %s42
      %s43 = sphi 0, %s40
      %s44 = sphi 0, %s43
      %s60 = sphi 0, %s44
      %s68 = sphi 0, %s70
      %s71 = sphi 0, %s68
      %s72 = sphi 0, %s71
      %s88 = sphi 0, %s72
      %s94 = sphi 0, %s96
      %s97 = sphi 0, %s94
      %s98 = sphi 0, %s97
      %s114 = sphi 0, %s98
      %s120 = sphi 0, %s122
      %s123 = sphi 0, %s120
      %s124 = sphi 0, %s123
      %s140 = sphi 0, %s124
    $region4: #{tpu_custom_call.1} parent=1 // loop_header_branch
      %21 = sbr.rel (%p19) target = $region8
    $region5: #{tpu_custom_call.1} parent=1 // loop_body
      %s23 = ssub.s32 %s18, 1
      %s24 = ssub.s32 %s18, 2
      %s31 = sadd.s32 1, %s26
      %p32 = scmp.ge.s32.totalorder %s31, 4
      %s33 = scalar_select %p32, 0, %s31
      %s34 = sadd.s32 1, %s25
      %s35 = scalar_select %p32, %s34, %s25
      %p36 = scmp.ge.s32.totalorder %s35, 2
      %s37 = scalar_select %p36, 0, %s35
      %s38 = ssub.s32 %s26, %s33
      %p39 = scmp.eq.s32.totalorder %s38, 0
      %s41 = sadd.s32 %s40, 1
      %s42 = scalar_select %p39, %s40, %s41
      %p45 = pneg %p39
      %p46 = scmp.eq.s32.totalorder %s18, 7
      %p47 = por %p45, %p46
      %p48 = scmp.ne.s32.totalorder %s40, %s43
      %p49 = scmp.eq.s32.totalorder %s18, 0
      %p50 = por %p48, %p49
      %p51 = scmp.ne.s32.totalorder %s40, %s43
      %p52 = scmp.eq.s32.totalorder %s23, 7
      %p53 = por %p51, %p52
      %p54 = scmp.ne.s32.totalorder %s43, %s44
      %p55 = scmp.eq.s32.totalorder %s23, 0
      %p56 = por %p54, %p55
      %p57 = scmp.ne.s32.totalorder %s43, %s44
      %p58 = scmp.eq.s32.totalorder %s24, 7
      %p59 = por %p57, %p58
      %p61 = scmp.ne.s32.totalorder %s44, %s60
      %p62 = scmp.eq.s32.totalorder %s24, 0
      %p63 = por %p61, %p62
      %s64 = ssub.s32 %s26, %s33
      %s65 = ssub.s32 %s25, %s37
      %s66 = sor.u32 %s64, %s65
      %p67 = scmp.eq.s32.totalorder %s66, 0
      %s69 = sadd.s32 %s68, 1
      %s70 = scalar_select %p67, %s68, %s69
      %p73 = pneg %p67
      %p74 = scmp.eq.s32.totalorder %s18, 7
      %p75 = por %p73, %p74
      %p76 = scmp.ne.s32.totalorder %s68, %s71
      %p77 = scmp.eq.s32.totalorder %s18, 0
      %p78 = por %p76, %p77
      %p79 = scmp.ne.s32.totalorder %s68, %s71
      %p80 = scmp.eq.s32.totalorder %s23, 7
      %p81 = por %p79, %p80
      %p82 = scmp.ne.s32.totalorder %s71, %s72
      %p83 = scmp.eq.s32.totalorder %s23, 0
      %p84 = por %p82, %p83
      %p85 = scmp.ne.s32.totalorder %s71, %s72
      %p86 = scmp.eq.s32.totalorder %s24, 7
      %p87 = por %p85, %p86
      %p89 = scmp.ne.s32.totalorder %s72, %s88
      %p90 = scmp.eq.s32.totalorder %s24, 0
      %p91 = por %p89, %p90
      %s92 = ssub.s32 %s25, %s37
      %p93 = scmp.eq.s32.totalorder %s92, 0
      %s95 = sadd.s32 %s94, 1
      %s96 = scalar_select %p93, %s94, %s95
      %p99 = pneg %p93
      %p100 = scmp.eq.s32.totalorder %s18, 7
      %p101 = por %p99, %p100
      %p102 = scmp.ne.s32.totalorder %s94, %s97
      %p103 = scmp.eq.s32.totalorder %s18, 0
      %p104 = por %p102, %p103
      %p105 = scmp.ne.s32.totalorder %s94, %s97
      %p106 = scmp.eq.s32.totalorder %s23, 7
      %p107 = por %p105, %p106
      %p108 = scmp.ne.s32.totalorder %s97, %s98
      %p109 = scmp.eq.s32.totalorder %s23, 0
      %p110 = por %p108, %p109
      %p111 = scmp.ne.s32.totalorder %s97, %s98
      %p112 = scmp.eq.s32.totalorder %s24, 7
      %p113 = por %p111, %p112
      %p115 = scmp.ne.s32.totalorder %s98, %s114
      %p116 = scmp.eq.s32.totalorder %s24, 0
      %p117 = por %p115, %p116
      %s118 = ssub.s32 %s25, %s37
      %p119 = scmp.eq.s32.totalorder %s118, 0
      %s121 = sadd.s32 %s120, 1
      %s122 = scalar_select %p119, %s120, %s121
      %p125 = pneg %p119
      %p126 = scmp.eq.s32.totalorder %s18, 7
      %p127 = por %p125, %p126
      %p128 = scmp.ne.s32.totalorder %s120, %s123
      %p129 = scmp.eq.s32.totalorder %s18, 0
      %p130 = por %p128, %p129
      %p131 = scmp.ne.s32.totalorder %s120, %s123
      %p132 = scmp.eq.s32.totalorder %s23, 7
      %p133 = por %p131, %p132
      %p134 = scmp.ne.s32.totalorder %s123, %s124
      %p135 = scmp.eq.s32.totalorder %s23, 0
      %p136 = por %p134, %p135
      %p137 = scmp.ne.s32.totalorder %s123, %s124
      %p138 = scmp.eq.s32.totalorder %s24, 7
      %p139 = por %p137, %p138
      %p141 = scmp.ne.s32.totalorder %s124, %s140
      %p142 = scmp.eq.s32.totalorder %s24, 0
      %p143 = por %p141, %p142
      %p144 = scmp.le.s32.totalorder 1, %s18
      %p145 = scmp.lt.s32.totalorder %s18, 9
      %p146 = pnand %p144, %p145
      %p147 = pneg %p146
      // Predicated region
      $region9: #{tpu_custom_call.1} parent=5 // pred_check
        _
      $region10: #{tpu_custom_call.1} parent=5 // pred_check_branch
        %149 = sbr.rel (%p146) target = $region12
      $region11: #{tpu_custom_call.1} parent=5 // pred_region
        %s150 = ssub.s32 %s18, 1
      $region12: #{tpu_custom_call.1} parent=5 // pred_fallthru
        _
      %p151 = scmp.lt.s32.totalorder %s18, 8
      // Predicated region
      $region13: #{tpu_custom_call.1} parent=5 // pred_check
        %p152 = pneg %p151
      $region14: #{tpu_custom_call.1} parent=5 // pred_check_branch
        %154 = sbr.rel (%p152) target = $region16
      $region15: #{tpu_custom_call.1} parent=5 // pred_region
        // Predicated region
        $region17: #{tpu_custom_call.1} parent=15 // pred_check
          %p155 = pneg %p50
        $region18: #{tpu_custom_call.1} parent=15 // pred_check_branch
          %157 = sbr.rel (%p155) target = $region20
        $region19: #{tpu_custom_call.1} parent=15 // pred_region
          %s158 = sand.u32 %s40, 1
          %s159 = scalar_lea.sflag [#allocation4], %s158
          %s160 = sand.u32 %s40, 1
          %s161 = smul.addr %s160, 120
          %s162 = scalar_lea.vmem [#allocation3], %s161
          %s163 = smul.u32 60, %s26
          %s165 = ssub.s32 1920, 1920
          %166 = vsyncadd %s159, %s165
          %s167 = smul.addr %s163, 32
          %s168 = scalar_lea.hbm %s0, %s167
          %s170 = sshll.u32 %s162, 4
          %s171 = int_to_ptr.vmem [resolvable:$true] %s170
          %173 = dma.hbm_to_vmem [thread:$0]  %s168, 1920, %s171, %s159
        $region20: #{tpu_custom_call.1} parent=15 // pred_fallthru
          _
        // Predicated region
        $region21: #{tpu_custom_call.1} parent=15 // pred_check
          %p174 = pneg %p78
        $region22: #{tpu_custom_call.1} parent=15 // pred_check_branch
          %176 = sbr.rel (%p174) target = $region24
        $region23: #{tpu_custom_call.1} parent=15 // pred_region
          %s177 = sand.u32 %s18, 1
          %s178 = scalar_lea.sflag [#allocation7], %s177
          %s179 = sand.u32 %s68, 1
          %s180 = smul.addr %s179, 15360
          %s181 = scalar_lea.vmem [#allocation6], %s180
          %s182 = smul.u32 960, %s26
          %s183 = smul.u32 2, %s25
          %s185 = ssub.s32 245760, 245760
          %186 = vsyncadd %s178, %s185
          %s187 = smul.addr %s182, 4
          %s188 = sadd.s32 %s183, %s187
          %s189 = smul.addr %s188, 128
          %s190 = scalar_lea.hbm %s1, %s189
          %s191 = sshll.u32 %s181, 4
          %s192 = int_to_ptr.vmem [resolvable:$true] %s191
          %197 = dma.hbm_to_vmem [thread:$0]  %s190, 245760, %s192, %s178, 512, 256, 16
        $region24: #{tpu_custom_call.1} parent=15 // pred_fallthru
          _
        // Predicated region
        $region25: #{tpu_custom_call.1} parent=15 // pred_check
          %p198 = pneg %p104
        $region26: #{tpu_custom_call.1} parent=15 // pred_check_branch
          %200 = sbr.rel (%p198) target = $region28
        $region27: #{tpu_custom_call.1} parent=15 // pred_region
          %s201 = sand.u32 %s18, 1
          %s202 = scalar_lea.sflag [#allocation7], %s201
          %s203 = sand.u32 %s94, 1
          %s204 = smul.addr %s203, 2
          %s205 = scalar_lea.vmem [#allocation8], %s204
          %s206 = smul.u32 2, %s25
          %s208 = ssub.s32 32, 32
          %209 = vsyncadd %s202, %s208
          %s210 = smul.addr %s206, 16
          %s211 = scalar_lea.hbm %s2, %s210
          %s213 = sshll.u32 %s205, 4
          %s214 = int_to_ptr.vmem [resolvable:$true] %s213
          %216 = dma.hbm_to_vmem [thread:$0]  %s211, 32, %s214, %s202
        $region28: #{tpu_custom_call.1} parent=15 // pred_fallthru
          _
      $region16: #{tpu_custom_call.1} parent=5 // pred_fallthru
        _
      %p217 = scmp.le.s32.totalorder 1, %s18
      %p218 = scmp.lt.s32.totalorder %s18, 9
      %p219 = pnand %p217, %p218
      %p220 = pneg %p219
      // Predicated region
      $region29: #{tpu_custom_call.1} parent=5 // pred_check
        _
      $region30: #{tpu_custom_call.1} parent=5 // pred_check_branch
        %222 = sbr.rel (%p219) target = $region32
      $region31: #{tpu_custom_call.1} parent=5 // pred_region
        %s223 = ssub.s32 %s18, 1
        %s224 = sand.u32 %s43, 1
        %s225 = scalar_lea.sflag [#allocation4], %s224
        %s226 = sand.u32 %s43, 1
        %s227 = smul.addr %s226, 120
        %s228 = scalar_lea.vmem [#allocation3], %s227
        // Predicated region
        $region33: #{tpu_custom_call.1} parent=31 // pred_check
          %p229 = pneg %p56
        $region34: #{tpu_custom_call.1} parent=31 // pred_check_branch
          %231 = sbr.rel (%p229) target = $region36
        $region35: #{tpu_custom_call.1} parent=31 // pred_region
          %232 = dma.done %s225, 1920
        $region36: #{tpu_custom_call.1} parent=31 // pred_fallthru
          _
        %s233 = sand.u32 %s23, 1
        %s234 = scalar_lea.sflag [#allocation7], %s233
        %s235 = sand.u32 %s71, 1
        %s236 = smul.addr %s235, 15360
        %s237 = scalar_lea.vmem [#allocation6], %s236
        // Predicated region
        $region37: #{tpu_custom_call.1} parent=31 // pred_check
          %p238 = pneg %p84
        $region38: #{tpu_custom_call.1} parent=31 // pred_check_branch
          %240 = sbr.rel (%p238) target = $region40
        $region39: #{tpu_custom_call.1} parent=31 // pred_region
          %241 = dma.done %s234, 245760
        $region40: #{tpu_custom_call.1} parent=31 // pred_fallthru
          _
        %s242 = sand.u32 %s23, 1
        %s243 = scalar_lea.sflag [#allocation7], %s242
        %s244 = sand.u32 %s97, 1
        %s245 = smul.addr %s244, 2
        %s246 = scalar_lea.vmem [#allocation8], %s245
        // Predicated region
        $region41: #{tpu_custom_call.1} parent=31 // pred_check
          %p247 = pneg %p110
        $region42: #{tpu_custom_call.1} parent=31 // pred_check_branch
          %249 = sbr.rel (%p247) target = $region44
        $region43: #{tpu_custom_call.1} parent=31 // pred_region
          %250 = dma.done %s243, 32
        $region44: #{tpu_custom_call.1} parent=31 // pred_fallthru
          _
        %s251 = sand.u32 %s43, 1
        %s252 = scalar_lea.sflag [#allocation4], %s251
        %s253 = sand.u32 %s43, 1
        %s254 = smul.addr %s253, 120
        %s255 = scalar_lea.vmem [#allocation3], %s254
        %p256 = pneg %p56
        %p257 = pneg %p53
        %s258 = sand.u32 %s23, 1
        %s259 = scalar_lea.sflag [#allocation7], %s258
        %s260 = sand.u32 %s71, 1
        %s261 = smul.addr %s260, 15360
        %s262 = scalar_lea.vmem [#allocation6], %s261
        %p263 = pneg %p84
        %p264 = pneg %p81
        %s265 = sand.u32 %s23, 1
        %s266 = scalar_lea.sflag [#allocation7], %s265
        %s267 = sand.u32 %s97, 1
        %s268 = smul.addr %s267, 2
        %s269 = scalar_lea.vmem [#allocation8], %s268
        %p270 = pneg %p110
        %p271 = pneg %p107
        %p272 = pneg %p136
        %p273 = pneg %p133
        %s274 = sand.u32 %s123, 1
        %s275 = scalar_lea.sflag [#allocation5], %s274
        %s276 = sand.u32 %s123, 1
        %s277 = smul.addr %s276, 4
        %s278 = scalar_lea.vmem [#allocation9], %s277
        %s279 = smul.u32 60, %s28
        %s280 = smul.u32 960, %s28
        %s281 = smul.u32 2, %s27
        %s282 = smul.u32 2, %s27
        %s283 = smul.u32 2, %s27
        %p284 = scmp.eq.s32.totalorder %s28, 0
        // Predicated region
        $region45: #{tpu_custom_call.1} parent=31 // pred_check
          %p285 = pneg %p284
        $region46: #{tpu_custom_call.1} parent=31 // pred_check_branch
          %287 = sbr.rel (%p285) target = $region48
        $region47: #{tpu_custom_call.1} parent=31 // pred_region
          %288 = vst [vmem:[#allocation2] sm:$0xf] 0.0
        $region48: #{tpu_custom_call.1} parent=31 // pred_fallthru
          _
        %v289 = vld [vmem:[#allocation2] sm:$0xf]
        %v290 = vld [vmem:[%s228] sm:$0xff]
        %v291 = vld [vmem:[%s228 + $0x8] sm:$0xff]
        %v292 = vld [vmem:[%s228 + $0x10] sm:$0xff]
        %v293 = vld [vmem:[%s228 + $0x18] sm:$0xff]
        %v294 = vld [vmem:[%s228 + $0x20] sm:$0xff]
        %v295 = vld [vmem:[%s228 + $0x28] sm:$0xff]
        %v296 = vld [vmem:[%s228 + $0x30] sm:$0xff]
        %v297 = vld [vmem:[%s228 + $0x38] sm:$0xff]
        %v298 = vld [vmem:[%s228 + $0x40] sm:$0xff]
        %v299 = vld [vmem:[%s228 + $0x48] sm:$0xff]
        %v300 = vld [vmem:[%s228 + $0x50] sm:$0xff]
        %v301 = vld [vmem:[%s228 + $0x58] sm:$0xff]
        %v302 = vld [vmem:[%s228 + $0x60] sm:$0xff]
        %v303 = vld [vmem:[%s228 + $0x68] sm:$0xff]
        %v304 = vld [vmem:[%s228 + $0x70] sm:$0xff]
        %v305 = vld [vmem:[%s237] sm:$0xff]
        %v306 = vld [vmem:[%s237 + $0x8] sm:$0xff]
        %v307 = vld [vmem:[%s237 + $0x10] sm:$0xff]
        %v308 = vld [vmem:[%s237 + $0x18] sm:$0xff]
        %v309 = vld [vmem:[%s237 + $0x20] sm:$0xff]
        %v310 = vld [vmem:[%s237 + $0x28] sm:$0xff]
        %v311 = vld [vmem:[%s237 + $0x30] sm:$0xff]
        %v312 = vld [vmem:[%s237 + $0x38] sm:$0xff]
        %v313 = vld [vmem:[%s237 + $0x40] sm:$0xff]
        %v314 = vld [vmem:[%s237 + $0x48] sm:$0xff]
        %v315 = vld [vmem:[%s237 + $0x50] sm:$0xff]
        %v316 = vld [vmem:[%s237 + $0x58] sm:$0xff]
        %v317 = vld [vmem:[%s237 + $0x60] sm:$0xff]
        %v318 = vld [vmem:[%s237 + $0x68] sm:$0xff]
        %v319 = vld [vmem:[%s237 + $0x70] sm:$0xff]
        %v320 = vld [vmem:[%s237 + $0x78] sm:$0xff]
        %v321 = vld [vmem:[%s237 + $0x80] sm:$0xff]
        %v322 = vld [vmem:[%s237 + $0x88] sm:$0xff]
        %v323 = vld [vmem:[%s237 + $0x90] sm:$0xff]
        %v324 = vld [vmem:[%s237 + $0x98] sm:$0xff]
        %v325 = vld [vmem:[%s237 + $0xa0] sm:$0xff]
        %v326 = vld [vmem:[%s237 + $0xa8] sm:$0xff]
        %v327 = vld [vmem:[%s237 + $0xb0] sm:$0xff]
        %v328 = vld [vmem:[%s237 + $0xb8] sm:$0xff]
        %v329 = vld [vmem:[%s237 + $0xc0] sm:$0xff]
        %v330 = vld [vmem:[%s237 + $0xc8] sm:$0xff]
        %v331 = vld [vmem:[%s237 + $0xd0] sm:$0xff]
        %v332 = vld [vmem:[%s237 + $0xd8] sm:$0xff]
        %v333 = vld [vmem:[%s237 + $0xe0] sm:$0xff]
        %v334 = vld [vmem:[%s237 + $0xe8] sm:$0xff]
        %v335 = vld [vmem:[%s237 + $0xf0] sm:$0xff]
        %v336 = vld [vmem:[%s237 + $0xf8] sm:$0xff]
        %v337 = vld [vmem:[%s237 + $0x100] sm:$0xff]
        %v338 = vld [vmem:[%s237 + $0x108] sm:$0xff]
        %v339 = vld [vmem:[%s237 + $0x110] sm:$0xff]
        %v340 = vld [vmem:[%s237 + $0x118] sm:$0xff]
        %v341 = vld [vmem:[%s237 + $0x120] sm:$0xff]
        %v342 = vld [vmem:[%s237 + $0x128] sm:$0xff]
        %v343 = vld [vmem:[%s237 + $0x130] sm:$0xff]
        %v344 = vld [vmem:[%s237 + $0x138] sm:$0xff]
        %v345 = vld [vmem:[%s237 + $0x140] sm:$0xff]
        %v346 = vld [vmem:[%s237 + $0x148] sm:$0xff]
        %v347 = vld [vmem:[%s237 + $0x150] sm:$0xff]
        %v348 = vld [vmem:[%s237 + $0x158] sm:$0xff]
        %v349 = vld [vmem:[%s237 + $0x160] sm:$0xff]
        %v350 = vld [vmem:[%s237 + $0x168] sm:$0xff]
        %v351 = vld [vmem:[%s237 + $0x170] sm:$0xff]
        %v352 = vld [vmem:[%s237 + $0x178] sm:$0xff]
        %v353 = vld [vmem:[%s237 + $0x180] sm:$0xff]
        %v354 = vld [vmem:[%s237 + $0x188] sm:$0xff]
        %v355 = vld [vmem:[%s237 + $0x190] sm:$0xff]
        %v356 = vld [vmem:[%s237 + $0x198] sm:$0xff]
        %v357 = vld [vmem:[%s237 + $0x1a0] sm:$0xff]
        %v358 = vld [vmem:[%s237 + $0x1a8] sm:$0xff]
        %v359 = vld [vmem:[%s237 + $0x1b0] sm:$0xff]
        %v360 = vld [vmem:[%s237 + $0x1b8] sm:$0xff]
        %v361 = vld [vmem:[%s237 + $0x1c0] sm:$0xff]
        %v362 = vld [vmem:[%s237 + $0x1c8] sm:$0xff]
        %v363 = vld [vmem:[%s237 + $0x1d0] sm:$0xff]
        %v364 = vld [vmem:[%s237 + $0x1d8] sm:$0xff]
        %v365 = vld [vmem:[%s237 + $0x1e0] sm:$0xff]
        %v366 = vld [vmem:[%s237 + $0x1e8] sm:$0xff]
        %v367 = vld [vmem:[%s237 + $0x1f0] sm:$0xff]
        %v368 = vld [vmem:[%s237 + $0x1f8] sm:$0xff]
        %v369 = vld [vmem:[%s237 + $0x200] sm:$0xff]
        %v370 = vld [vmem:[%s237 + $0x208] sm:$0xff]
        %v371 = vld [vmem:[%s237 + $0x210] sm:$0xff]
        %v372 = vld [vmem:[%s237 + $0x218] sm:$0xff]
        %v373 = vld [vmem:[%s237 + $0x220] sm:$0xff]
        %v374 = vld [vmem:[%s237 + $0x228] sm:$0xff]
        %v375 = vld [vmem:[%s237 + $0x230] sm:$0xff]
        %v376 = vld [vmem:[%s237 + $0x238] sm:$0xff]
        %v377 = vld [vmem:[%s237 + $0x240] sm:$0xff]
        %v378 = vld [vmem:[%s237 + $0x248] sm:$0xff]
        %v379 = vld [vmem:[%s237 + $0x250] sm:$0xff]
        %v380 = vld [vmem:[%s237 + $0x258] sm:$0xff]
        %v381 = vld [vmem:[%s237 + $0x260] sm:$0xff]
        %v382 = vld [vmem:[%s237 + $0x268] sm:$0xff]
        %v383 = vld [vmem:[%s237 + $0x270] sm:$0xff]
        %v384 = vld [vmem:[%s237 + $0x278] sm:$0xff]
        %v385 = vld [vmem:[%s237 + $0x280] sm:$0xff]
        %v386 = vld [vmem:[%s237 + $0x288] sm:$0xff]
        %v387 = vld [vmem:[%s237 + $0x290] sm:$0xff]
        %v388 = vld [vmem:[%s237 + $0x298] sm:$0xff]
        %v389 = vld [vmem:[%s237 + $0x2a0] sm:$0xff]
        %v390 = vld [vmem:[%s237 + $0x2a8] sm:$0xff]
        %v391 = vld [vmem:[%s237 + $0x2b0] sm:$0xff]
        %v392 = vld [vmem:[%s237 + $0x2b8] sm:$0xff]
        %v393 = vld [vmem:[%s237 + $0x2c0] sm:$0xff]
        %v394 = vld [vmem:[%s237 + $0x2c8] sm:$0xff]
        %v395 = vld [vmem:[%s237 + $0x2d0] sm:$0xff]
        %v396 = vld [vmem:[%s237 + $0x2d8] sm:$0xff]
        %v397 = vld [vmem:[%s237 + $0x2e0] sm:$0xff]
        %v398 = vld [vmem:[%s237 + $0x2e8] sm:$0xff]
        %v399 = vld [vmem:[%s237 + $0x2f0] sm:$0xff]
        %v400 = vld [vmem:[%s237 + $0x2f8] sm:$0xff]
        %v401 = vld [vmem:[%s237 + $0x300] sm:$0xff]
        %v402 = vld [vmem:[%s237 + $0x308] sm:$0xff]
        %v403 = vld [vmem:[%s237 + $0x310] sm:$0xff]
        %v404 = vld [vmem:[%s237 + $0x318] sm:$0xff]
        %v405 = vld [vmem:[%s237 + $0x320] sm:$0xff]
        %v406 = vld [vmem:[%s237 + $0x328] sm:$0xff]
        %v407 = vld [vmem:[%s237 + $0x330] sm:$0xff]
        %v408 = vld [vmem:[%s237 + $0x338] sm:$0xff]
        %v409 = vld [vmem:[%s237 + $0x340] sm:$0xff]
        %v410 = vld [vmem:[%s237 + $0x348] sm:$0xff]
        %v411 = vld [vmem:[%s237 + $0x350] sm:$0xff]
        %v412 = vld [vmem:[%s237 + $0x358] sm:$0xff]
        %v413 = vld [vmem:[%s237 + $0x360] sm:$0xff]
        %v414 = vld [vmem:[%s237 + $0x368] sm:$0xff]
        %v415 = vld [vmem:[%s237 + $0x370] sm:$0xff]
        %v416 = vld [vmem:[%s237 + $0x378] sm:$0xff]
        %v417 = vld [vmem:[%s237 + $0x380] sm:$0xff]
        %v418 = vld [vmem:[%s237 + $0x388] sm:$0xff]
        %v419 = vld [vmem:[%s237 + $0x390] sm:$0xff]
        %v420 = vld [vmem:[%s237 + $0x398] sm:$0xff]
        %v421 = vld [vmem:[%s237 + $0x3a0] sm:$0xff]
        %v422 = vld [vmem:[%s237 + $0x3a8] sm:$0xff]
        %v423 = vld [vmem:[%s237 + $0x3b0] sm:$0xff]
        %v424 = vld [vmem:[%s237 + $0x3b8] sm:$0xff]
        %v425 = vld [vmem:[%s237 + $0x3c0] sm:$0xff]
        %v426 = vld [vmem:[%s237 + $0x3c8] sm:$0xff]
        %v427 = vld [vmem:[%s237 + $0x3d0] sm:$0xff]
        %v428 = vld [vmem:[%s237 + $0x3d8] sm:$0xff]
        %v429 = vld [vmem:[%s237 + $0x3e0] sm:$0xff]
        %v430 = vld [vmem:[%s237 + $0x3e8] sm:$0xff]
        %v431 = vld [vmem:[%s237 + $0x3f0] sm:$0xff]
        %v432 = vld [vmem:[%s237 + $0x3f8] sm:$0xff]
        %v433 = vld [vmem:[%s237 + $0x400] sm:$0xff]
        %v434 = vld [vmem:[%s237 + $0x408] sm:$0xff]
        %v435 = vld [vmem:[%s237 + $0x410] sm:$0xff]
        %v436 = vld [vmem:[%s237 + $0x418] sm:$0xff]
        %v437 = vld [vmem:[%s237 + $0x420] sm:$0xff]
        %v438 = vld [vmem:[%s237 + $0x428] sm:$0xff]
        %v439 = vld [vmem:[%s237 + $0x430] sm:$0xff]
        %v440 = vld [vmem:[%s237 + $0x438] sm:$0xff]
        %v441 = vld [vmem:[%s237 + $0x440] sm:$0xff]
        %v442 = vld [vmem:[%s237 + $0x448] sm:$0xff]
        %v443 = vld [vmem:[%s237 + $0x450] sm:$0xff]
        %v444 = vld [vmem:[%s237 + $0x458] sm:$0xff]
        %v445 = vld [vmem:[%s237 + $0x460] sm:$0xff]
        %v446 = vld [vmem:[%s237 + $0x468] sm:$0xff]
        %v447 = vld [vmem:[%s237 + $0x470] sm:$0xff]
        %v448 = vld [vmem:[%s237 + $0x478] sm:$0xff]
        %v449 = vld [vmem:[%s237 + $0x480] sm:$0xff]
        %v450 = vld [vmem:[%s237 + $0x488] sm:$0xff]
        %v451 = vld [vmem:[%s237 + $0x490] sm:$0xff]
        %v452 = vld [vmem:[%s237 + $0x498] sm:$0xff]
        %v453 = vld [vmem:[%s237 + $0x4a0] sm:$0xff]
        %v454 = vld [vmem:[%s237 + $0x4a8] sm:$0xff]
        %v455 = vld [vmem:[%s237 + $0x4b0] sm:$0xff]
        %v456 = vld [vmem:[%s237 + $0x4b8] sm:$0xff]
        %v457 = vld [vmem:[%s237 + $0x4c0] sm:$0xff]
        %v458 = vld [vmem:[%s237 + $0x4c8] sm:$0xff]
        %v459 = vld [vmem:[%s237 + $0x4d0] sm:$0xff]
        %v460 = vld [vmem:[%s237 + $0x4d8] sm:$0xff]
        %v461 = vld [vmem:[%s237 + $0x4e0] sm:$0xff]
        %v462 = vld [vmem:[%s237 + $0x4e8] sm:$0xff]
        %v463 = vld [vmem:[%s237 + $0x4f0] sm:$0xff]
        %v464 = vld [vmem:[%s237 + $0x4f8] sm:$0xff]
        %v465 = vld [vmem:[%s237 + $0x500] sm:$0xff]
        %v466 = vld [vmem:[%s237 + $0x508] sm:$0xff]
        %v467 = vld [vmem:[%s237 + $0x510] sm:$0xff]
        %v468 = vld [vmem:[%s237 + $0x518] sm:$0xff]
        %v469 = vld [vmem:[%s237 + $0x520] sm:$0xff]
        %v470 = vld [vmem:[%s237 + $0x528] sm:$0xff]
        %v471 = vld [vmem:[%s237 + $0x530] sm:$0xff]
        %v472 = vld [vmem:[%s237 + $0x538] sm:$0xff]
        %v473 = vld [vmem:[%s237 + $0x540] sm:$0xff]
        %v474 = vld [vmem:[%s237 + $0x548] sm:$0xff]
        %v475 = vld [vmem:[%s237 + $0x550] sm:$0xff]
        %v476 = vld [vmem:[%s237 + $0x558] sm:$0xff]
        %v477 = vld [vmem:[%s237 + $0x560] sm:$0xff]
        %v478 = vld [vmem:[%s237 + $0x568] sm:$0xff]
        %v479 = vld [vmem:[%s237 + $0x570] sm:$0xff]
        %v480 = vld [vmem:[%s237 + $0x578] sm:$0xff]
        %v481 = vld [vmem:[%s237 + $0x580] sm:$0xff]
        %v482 = vld [vmem:[%s237 + $0x588] sm:$0xff]
        %v483 = vld [vmem:[%s237 + $0x590] sm:$0xff]
        %v484 = vld [vmem:[%s237 + $0x598] sm:$0xff]
        %v485 = vld [vmem:[%s237 + $0x5a0] sm:$0xff]
        %v486 = vld [vmem:[%s237 + $0x5a8] sm:$0xff]
        %v487 = vld [vmem:[%s237 + $0x5b0] sm:$0xff]
        %v488 = vld [vmem:[%s237 + $0x5b8] sm:$0xff]
        %v489 = vld [vmem:[%s237 + $0x5c0] sm:$0xff]
        %v490 = vld [vmem:[%s237 + $0x5c8] sm:$0xff]
        %v491 = vld [vmem:[%s237 + $0x5d0] sm:$0xff]
        %v492 = vld [vmem:[%s237 + $0x5d8] sm:$0xff]
        %v493 = vld [vmem:[%s237 + $0x5e0] sm:$0xff]
        %v494 = vld [vmem:[%s237 + $0x5e8] sm:$0xff]
        %v495 = vld [vmem:[%s237 + $0x5f0] sm:$0xff]
        %v496 = vld [vmem:[%s237 + $0x5f8] sm:$0xff]
        %v497 = vld [vmem:[%s237 + $0x600] sm:$0xff]
        %v498 = vld [vmem:[%s237 + $0x608] sm:$0xff]
        %v499 = vld [vmem:[%s237 + $0x610] sm:$0xff]
        %v500 = vld [vmem:[%s237 + $0x618] sm:$0xff]
        %v501 = vld [vmem:[%s237 + $0x620] sm:$0xff]
        %v502 = vld [vmem:[%s237 + $0x628] sm:$0xff]
        %v503 = vld [vmem:[%s237 + $0x630] sm:$0xff]
        %v504 = vld [vmem:[%s237 + $0x638] sm:$0xff]
        %v505 = vld [vmem:[%s237 + $0x640] sm:$0xff]
        %v506 = vld [vmem:[%s237 + $0x648] sm:$0xff]
        %v507 = vld [vmem:[%s237 + $0x650] sm:$0xff]
        %v508 = vld [vmem:[%s237 + $0x658] sm:$0xff]
        %v509 = vld [vmem:[%s237 + $0x660] sm:$0xff]
        %v510 = vld [vmem:[%s237 + $0x668] sm:$0xff]
        %v511 = vld [vmem:[%s237 + $0x670] sm:$0xff]
        %v512 = vld [vmem:[%s237 + $0x678] sm:$0xff]
        %v513 = vld [vmem:[%s237 + $0x680] sm:$0xff]
        %v514 = vld [vmem:[%s237 + $0x688] sm:$0xff]
        %v515 = vld [vmem:[%s237 + $0x690] sm:$0xff]
        %v516 = vld [vmem:[%s237 + $0x698] sm:$0xff]
        %v517 = vld [vmem:[%s237 + $0x6a0] sm:$0xff]
        %v518 = vld [vmem:[%s237 + $0x6a8] sm:$0xff]
        %v519 = vld [vmem:[%s237 + $0x6b0] sm:$0xff]
        %v520 = vld [vmem:[%s237 + $0x6b8] sm:$0xff]
        %v521 = vld [vmem:[%s237 + $0x6c0] sm:$0xff]
        %v522 = vld [vmem:[%s237 + $0x6c8] sm:$0xff]
        %v523 = vld [vmem:[%s237 + $0x6d0] sm:$0xff]
        %v524 = vld [vmem:[%s237 + $0x6d8] sm:$0xff]
        %v525 = vld [vmem:[%s237 + $0x6e0] sm:$0xff]
        %v526 = vld [vmem:[%s237 + $0x6e8] sm:$0xff]
        %v527 = vld [vmem:[%s237 + $0x6f0] sm:$0xff]
        %v528 = vld [vmem:[%s237 + $0x6f8] sm:$0xff]
        %v529 = vld [vmem:[%s237 + $0x700] sm:$0xff]
        %v530 = vld [vmem:[%s237 + $0x708] sm:$0xff]
        %v531 = vld [vmem:[%s237 + $0x710] sm:$0xff]
        %v532 = vld [vmem:[%s237 + $0x718] sm:$0xff]
        %v533 = vld [vmem:[%s237 + $0x720] sm:$0xff]
        %v534 = vld [vmem:[%s237 + $0x728] sm:$0xff]
        %v535 = vld [vmem:[%s237 + $0x730] sm:$0xff]
        %v536 = vld [vmem:[%s237 + $0x738] sm:$0xff]
        %v537 = vld [vmem:[%s237 + $0x740] sm:$0xff]
        %v538 = vld [vmem:[%s237 + $0x748] sm:$0xff]
        %v539 = vld [vmem:[%s237 + $0x750] sm:$0xff]
        %v540 = vld [vmem:[%s237 + $0x758] sm:$0xff]
        %v541 = vld [vmem:[%s237 + $0x760] sm:$0xff]
        %v542 = vld [vmem:[%s237 + $0x768] sm:$0xff]
        %v543 = vld [vmem:[%s237 + $0x770] sm:$0xff]
        %v544 = vld [vmem:[%s237 + $0x778] sm:$0xff]
        %v545 = vld [vmem:[%s237 + $0x780] sm:$0xff]
        %v546 = vld [vmem:[%s237 + $0x788] sm:$0xff]
        %v547 = vld [vmem:[%s237 + $0x790] sm:$0xff]
        %v548 = vld [vmem:[%s237 + $0x798] sm:$0xff]
        %v549 = vld [vmem:[%s237 + $0x7a0] sm:$0xff]
        %v550 = vld [vmem:[%s237 + $0x7a8] sm:$0xff]
        %v551 = vld [vmem:[%s237 + $0x7b0] sm:$0xff]
        %v552 = vld [vmem:[%s237 + $0x7b8] sm:$0xff]
        %v553 = vld [vmem:[%s237 + $0x7c0] sm:$0xff]
        %v554 = vld [vmem:[%s237 + $0x7c8] sm:$0xff]
        %v555 = vld [vmem:[%s237 + $0x7d0] sm:$0xff]
        %v556 = vld [vmem:[%s237 + $0x7d8] sm:$0xff]
        %v557 = vld [vmem:[%s237 + $0x7e0] sm:$0xff]
        %v558 = vld [vmem:[%s237 + $0x7e8] sm:$0xff]
        %v559 = vld [vmem:[%s237 + $0x7f0] sm:$0xff]
        %v560 = vld [vmem:[%s237 + $0x7f8] sm:$0xff]
        %v561 = vld [vmem:[%s237 + $0x800] sm:$0xff]
        %v562 = vld [vmem:[%s237 + $0x808] sm:$0xff]
        %v563 = vld [vmem:[%s237 + $0x810] sm:$0xff]
        %v564 = vld [vmem:[%s237 + $0x818] sm:$0xff]
        %v565 = vld [vmem:[%s237 + $0x820] sm:$0xff]
        %v566 = vld [vmem:[%s237 + $0x828] sm:$0xff]
        %v567 = vld [vmem:[%s237 + $0x830] sm:$0xff]
        %v568 = vld [vmem:[%s237 + $0x838] sm:$0xff]
        %v569 = vld [vmem:[%s237 + $0x840] sm:$0xff]
        %v570 = vld [vmem:[%s237 + $0x848] sm:$0xff]
        %v571 = vld [vmem:[%s237 + $0x850] sm:$0xff]
        %v572 = vld [vmem:[%s237 + $0x858] sm:$0xff]
        %v573 = vld [vmem:[%s237 + $0x860] sm:$0xff]
        %v574 = vld [vmem:[%s237 + $0x868] sm:$0xff]
        %v575 = vld [vmem:[%s237 + $0x870] sm:$0xff]
        %v576 = vld [vmem:[%s237 + $0x878] sm:$0xff]
        %v577 = vld [vmem:[%s237 + $0x880] sm:$0xff]
        %v578 = vld [vmem:[%s237 + $0x888] sm:$0xff]
        %v579 = vld [vmem:[%s237 + $0x890] sm:$0xff]
        %v580 = vld [vmem:[%s237 + $0x898] sm:$0xff]
        %v581 = vld [vmem:[%s237 + $0x8a0] sm:$0xff]
        %v582 = vld [vmem:[%s237 + $0x8a8] sm:$0xff]
        %v583 = vld [vmem:[%s237 + $0x8b0] sm:$0xff]
        %v584 = vld [vmem:[%s237 + $0x8b8] sm:$0xff]
        %v585 = vld [vmem:[%s237 + $0x8c0] sm:$0xff]
        %v586 = vld [vmem:[%s237 + $0x8c8] sm:$0xff]
        %v587 = vld [vmem:[%s237 + $0x8d0] sm:$0xff]
        %v588 = vld [vmem:[%s237 + $0x8d8] sm:$0xff]
        %v589 = vld [vmem:[%s237 + $0x8e0] sm:$0xff]
        %v590 = vld [vmem:[%s237 + $0x8e8] sm:$0xff]
        %v591 = vld [vmem:[%s237 + $0x8f0] sm:$0xff]
        %v592 = vld [vmem:[%s237 + $0x8f8] sm:$0xff]
        %v593 = vld [vmem:[%s237 + $0x900] sm:$0xff]
        %v594 = vld [vmem:[%s237 + $0x908] sm:$0xff]
        %v595 = vld [vmem:[%s237 + $0x910] sm:$0xff]
        %v596 = vld [vmem:[%s237 + $0x918] sm:$0xff]
        %v597 = vld [vmem:[%s237 + $0x920] sm:$0xff]
        %v598 = vld [vmem:[%s237 + $0x928] sm:$0xff]
        %v599 = vld [vmem:[%s237 + $0x930] sm:$0xff]
        %v600 = vld [vmem:[%s237 + $0x938] sm:$0xff]
        %v601 = vld [vmem:[%s237 + $0x940] sm:$0xff]
        %v602 = vld [vmem:[%s237 + $0x948] sm:$0xff]
        %v603 = vld [vmem:[%s237 + $0x950] sm:$0xff]
        %v604 = vld [vmem:[%s237 + $0x958] sm:$0xff]
        %v605 = vld [vmem:[%s237 + $0x960] sm:$0xff]
        %v606 = vld [vmem:[%s237 + $0x968] sm:$0xff]
        %v607 = vld [vmem:[%s237 + $0x970] sm:$0xff]
        %v608 = vld [vmem:[%s237 + $0x978] sm:$0xff]
        %v609 = vld [vmem:[%s237 + $0x980] sm:$0xff]
        %v610 = vld [vmem:[%s237 + $0x988] sm:$0xff]
        %v611 = vld [vmem:[%s237 + $0x990] sm:$0xff]
        %v612 = vld [vmem:[%s237 + $0x998] sm:$0xff]
        %v613 = vld [vmem:[%s237 + $0x9a0] sm:$0xff]
        %v614 = vld [vmem:[%s237 + $0x9a8] sm:$0xff]
        %v615 = vld [vmem:[%s237 + $0x9b0] sm:$0xff]
        %v616 = vld [vmem:[%s237 + $0x9b8] sm:$0xff]
        %v617 = vld [vmem:[%s237 + $0x9c0] sm:$0xff]
        %v618 = vld [vmem:[%s237 + $0x9c8] sm:$0xff]
        %v619 = vld [vmem:[%s237 + $0x9d0] sm:$0xff]
        %v620 = vld [vmem:[%s237 + $0x9d8] sm:$0xff]
        %v621 = vld [vmem:[%s237 + $0x9e0] sm:$0xff]
        %v622 = vld [vmem:[%s237 + $0x9e8] sm:$0xff]
        %v623 = vld [vmem:[%s237 + $0x9f0] sm:$0xff]
        %v624 = vld [vmem:[%s237 + $0x9f8] sm:$0xff]
        %v625 = vld [vmem:[%s237 + $0xa00] sm:$0xff]
        %v626 = vld [vmem:[%s237 + $0xa08] sm:$0xff]
        %v627 = vld [vmem:[%s237 + $0xa10] sm:$0xff]
        %v628 = vld [vmem:[%s237 + $0xa18] sm:$0xff]
        %v629 = vld [vmem:[%s237 + $0xa20] sm:$0xff]
        %v630 = vld [vmem:[%s237 + $0xa28] sm:$0xff]
        %v631 = vld [vmem:[%s237 + $0xa30] sm:$0xff]
        %v632 = vld [vmem:[%s237 + $0xa38] sm:$0xff]
        %v633 = vld [vmem:[%s237 + $0xa40] sm:$0xff]
        %v634 = vld [vmem:[%s237 + $0xa48] sm:$0xff]
        %v635 = vld [vmem:[%s237 + $0xa50] sm:$0xff]
        %v636 = vld [vmem:[%s237 + $0xa58] sm:$0xff]
        %v637 = vld [vmem:[%s237 + $0xa60] sm:$0xff]
        %v638 = vld [vmem:[%s237 + $0xa68] sm:$0xff]
        %v639 = vld [vmem:[%s237 + $0xa70] sm:$0xff]
        %v640 = vld [vmem:[%s237 + $0xa78] sm:$0xff]
        %v641 = vld [vmem:[%s237 + $0xa80] sm:$0xff]
        %v642 = vld [vmem:[%s237 + $0xa88] sm:$0xff]
        %v643 = vld [vmem:[%s237 + $0xa90] sm:$0xff]
        %v644 = vld [vmem:[%s237 + $0xa98] sm:$0xff]
        %v645 = vld [vmem:[%s237 + $0xaa0] sm:$0xff]
        %v646 = vld [vmem:[%s237 + $0xaa8] sm:$0xff]
        %v647 = vld [vmem:[%s237 + $0xab0] sm:$0xff]
        %v648 = vld [vmem:[%s237 + $0xab8] sm:$0xff]
        %v649 = vld [vmem:[%s237 + $0xac0] sm:$0xff]
        %v650 = vld [vmem:[%s237 + $0xac8] sm:$0xff]
        %v651 = vld [vmem:[%s237 + $0xad0] sm:$0xff]
        %v652 = vld [vmem:[%s237 + $0xad8] sm:$0xff]
        %v653 = vld [vmem:[%s237 + $0xae0] sm:$0xff]
        %v654 = vld [vmem:[%s237 + $0xae8] sm:$0xff]
        %v655 = vld [vmem:[%s237 + $0xaf0] sm:$0xff]
        %v656 = vld [vmem:[%s237 + $0xaf8] sm:$0xff]
        %v657 = vld [vmem:[%s237 + $0xb00] sm:$0xff]
        %v658 = vld [vmem:[%s237 + $0xb08] sm:$0xff]
        %v659 = vld [vmem:[%s237 + $0xb10] sm:$0xff]
        %v660 = vld [vmem:[%s237 + $0xb18] sm:$0xff]
        %v661 = vld [vmem:[%s237 + $0xb20] sm:$0xff]
        %v662 = vld [vmem:[%s237 + $0xb28] sm:$0xff]
        %v663 = vld [vmem:[%s237 + $0xb30] sm:$0xff]
        %v664 = vld [vmem:[%s237 + $0xb38] sm:$0xff]
        %v665 = vld [vmem:[%s237 + $0xb40] sm:$0xff]
        %v666 = vld [vmem:[%s237 + $0xb48] sm:$0xff]
        %v667 = vld [vmem:[%s237 + $0xb50] sm:$0xff]
        %v668 = vld [vmem:[%s237 + $0xb58] sm:$0xff]
        %v669 = vld [vmem:[%s237 + $0xb60] sm:$0xff]
        %v670 = vld [vmem:[%s237 + $0xb68] sm:$0xff]
        %v671 = vld [vmem:[%s237 + $0xb70] sm:$0xff]
        %v672 = vld [vmem:[%s237 + $0xb78] sm:$0xff]
        %v673 = vld [vmem:[%s237 + $0xb80] sm:$0xff]
        %v674 = vld [vmem:[%s237 + $0xb88] sm:$0xff]
        %v675 = vld [vmem:[%s237 + $0xb90] sm:$0xff]
        %v676 = vld [vmem:[%s237 + $0xb98] sm:$0xff]
        %v677 = vld [vmem:[%s237 + $0xba0] sm:$0xff]
        %v678 = vld [vmem:[%s237 + $0xba8] sm:$0xff]
        %v679 = vld [vmem:[%s237 + $0xbb0] sm:$0xff]
        %v680 = vld [vmem:[%s237 + $0xbb8] sm:$0xff]
        %v681 = vld [vmem:[%s237 + $0xbc0] sm:$0xff]
        %v682 = vld [vmem:[%s237 + $0xbc8] sm:$0xff]
        %v683 = vld [vmem:[%s237 + $0xbd0] sm:$0xff]
        %v684 = vld [vmem:[%s237 + $0xbd8] sm:$0xff]
        %v685 = vld [vmem:[%s237 + $0xbe0] sm:$0xff]
        %v686 = vld [vmem:[%s237 + $0xbe8] sm:$0xff]
        %v687 = vld [vmem:[%s237 + $0xbf0] sm:$0xff]
        %v688 = vld [vmem:[%s237 + $0xbf8] sm:$0xff]
        %v689 = vld [vmem:[%s237 + $0xc00] sm:$0xff]
        %v690 = vld [vmem:[%s237 + $0xc08] sm:$0xff]
        %v691 = vld [vmem:[%s237 + $0xc10] sm:$0xff]
        %v692 = vld [vmem:[%s237 + $0xc18] sm:$0xff]
        %v693 = vld [vmem:[%s237 + $0xc20] sm:$0xff]
        %v694 = vld [vmem:[%s237 + $0xc28] sm:$0xff]
        %v695 = vld [vmem:[%s237 + $0xc30] sm:$0xff]
        %v696 = vld [vmem:[%s237 + $0xc38] sm:$0xff]
        %v697 = vld [vmem:[%s237 + $0xc40] sm:$0xff]
        %v698 = vld [vmem:[%s237 + $0xc48] sm:$0xff]
        %v699 = vld [vmem:[%s237 + $0xc50] sm:$0xff]
        %v700 = vld [vmem:[%s237 + $0xc58] sm:$0xff]
        %v701 = vld [vmem:[%s237 + $0xc60] sm:$0xff]
        %v702 = vld [vmem:[%s237 + $0xc68] sm:$0xff]
        %v703 = vld [vmem:[%s237 + $0xc70] sm:$0xff]
        %v704 = vld [vmem:[%s237 + $0xc78] sm:$0xff]
        %v705 = vld [vmem:[%s237 + $0xc80] sm:$0xff]
        %v706 = vld [vmem:[%s237 + $0xc88] sm:$0xff]
        %v707 = vld [vmem:[%s237 + $0xc90] sm:$0xff]
        %v708 = vld [vmem:[%s237 + $0xc98] sm:$0xff]
        %v709 = vld [vmem:[%s237 + $0xca0] sm:$0xff]
        %v710 = vld [vmem:[%s237 + $0xca8] sm:$0xff]
        %v711 = vld [vmem:[%s237 + $0xcb0] sm:$0xff]
        %v712 = vld [vmem:[%s237 + $0xcb8] sm:$0xff]
        %v713 = vld [vmem:[%s237 + $0xcc0] sm:$0xff]
        %v714 = vld [vmem:[%s237 + $0xcc8] sm:$0xff]
        %v715 = vld [vmem:[%s237 + $0xcd0] sm:$0xff]
        %v716 = vld [vmem:[%s237 + $0xcd8] sm:$0xff]
        %v717 = vld [vmem:[%s237 + $0xce0] sm:$0xff]
        %v718 = vld [vmem:[%s237 + $0xce8] sm:$0xff]
        %v719 = vld [vmem:[%s237 + $0xcf0] sm:$0xff]
        %v720 = vld [vmem:[%s237 + $0xcf8] sm:$0xff]
        %v721 = vld [vmem:[%s237 + $0xd00] sm:$0xff]
        %v722 = vld [vmem:[%s237 + $0xd08] sm:$0xff]
        %v723 = vld [vmem:[%s237 + $0xd10] sm:$0xff]
        %v724 = vld [vmem:[%s237 + $0xd18] sm:$0xff]
        %v725 = vld [vmem:[%s237 + $0xd20] sm:$0xff]
        %v726 = vld [vmem:[%s237 + $0xd28] sm:$0xff]
        %v727 = vld [vmem:[%s237 + $0xd30] sm:$0xff]
        %v728 = vld [vmem:[%s237 + $0xd38] sm:$0xff]
        %v729 = vld [vmem:[%s237 + $0xd40] sm:$0xff]
        %v730 = vld [vmem:[%s237 + $0xd48] sm:$0xff]
        %v731 = vld [vmem:[%s237 + $0xd50] sm:$0xff]
        %v732 = vld [vmem:[%s237 + $0xd58] sm:$0xff]
        %v733 = vld [vmem:[%s237 + $0xd60] sm:$0xff]
        %v734 = vld [vmem:[%s237 + $0xd68] sm:$0xff]
        %v735 = vld [vmem:[%s237 + $0xd70] sm:$0xff]
        %v736 = vld [vmem:[%s237 + $0xd78] sm:$0xff]
        %v737 = vld [vmem:[%s237 + $0xd80] sm:$0xff]
        %v738 = vld [vmem:[%s237 + $0xd88] sm:$0xff]
        %v739 = vld [vmem:[%s237 + $0xd90] sm:$0xff]
        %v740 = vld [vmem:[%s237 + $0xd98] sm:$0xff]
        %v741 = vld [vmem:[%s237 + $0xda0] sm:$0xff]
        %v742 = vld [vmem:[%s237 + $0xda8] sm:$0xff]
        %v743 = vld [vmem:[%s237 + $0xdb0] sm:$0xff]
        %v744 = vld [vmem:[%s237 + $0xdb8] sm:$0xff]
        %v745 = vld [vmem:[%s237 + $0xdc0] sm:$0xff]
        %v746 = vld [vmem:[%s237 + $0xdc8] sm:$0xff]
        %v747 = vld [vmem:[%s237 + $0xdd0] sm:$0xff]
        %v748 = vld [vmem:[%s237 + $0xdd8] sm:$0xff]
        %v749 = vld [vmem:[%s237 + $0xde0] sm:$0xff]
        %v750 = vld [vmem:[%s237 + $0xde8] sm:$0xff]
        %v751 = vld [vmem:[%s237 + $0xdf0] sm:$0xff]
        %v752 = vld [vmem:[%s237 + $0xdf8] sm:$0xff]
        %v753 = vld [vmem:[%s237 + $0xe00] sm:$0xff]
        %v754 = vld [vmem:[%s237 + $0xe08] sm:$0xff]
        %v755 = vld [vmem:[%s237 + $0xe10] sm:$0xff]
        %v756 = vld [vmem:[%s237 + $0xe18] sm:$0xff]
        %v757 = vld [vmem:[%s237 + $0xe20] sm:$0xff]
        %v758 = vld [vmem:[%s237 + $0xe28] sm:$0xff]
        %v759 = vld [vmem:[%s237 + $0xe30] sm:$0xff]
        %v760 = vld [vmem:[%s237 + $0xe38] sm:$0xff]
        %v761 = vld [vmem:[%s237 + $0xe40] sm:$0xff]
        %v762 = vld [vmem:[%s237 + $0xe48] sm:$0xff]
        %v763 = vld [vmem:[%s237 + $0xe50] sm:$0xff]
        %v764 = vld [vmem:[%s237 + $0xe58] sm:$0xff]
        %v765 = vld [vmem:[%s237 + $0xe60] sm:$0xff]
        %v766 = vld [vmem:[%s237 + $0xe68] sm:$0xff]
        %v767 = vld [vmem:[%s237 + $0xe70] sm:$0xff]
        %v768 = vld [vmem:[%s237 + $0xe78] sm:$0xff]
        %v769 = vld [vmem:[%s237 + $0xe80] sm:$0xff]
        %v770 = vld [vmem:[%s237 + $0xe88] sm:$0xff]
        %v771 = vld [vmem:[%s237 + $0xe90] sm:$0xff]
        %v772 = vld [vmem:[%s237 + $0xe98] sm:$0xff]
        %v773 = vld [vmem:[%s237 + $0xea0] sm:$0xff]
        %v774 = vld [vmem:[%s237 + $0xea8] sm:$0xff]
        %v775 = vld [vmem:[%s237 + $0xeb0] sm:$0xff]
        %v776 = vld [vmem:[%s237 + $0xeb8] sm:$0xff]
        %v777 = vld [vmem:[%s237 + $0xec0] sm:$0xff]
        %v778 = vld [vmem:[%s237 + $0xec8] sm:$0xff]
        %v779 = vld [vmem:[%s237 + $0xed0] sm:$0xff]
        %v780 = vld [vmem:[%s237 + $0xed8] sm:$0xff]
        %v781 = vld [vmem:[%s237 + $0xee0] sm:$0xff]
        %v782 = vld [vmem:[%s237 + $0xee8] sm:$0xff]
        %v783 = vld [vmem:[%s237 + $0xef0] sm:$0xff]
        %v784 = vld [vmem:[%s237 + $0xef8] sm:$0xff]
        %v785 = vld [vmem:[%s237 + $0xf00] sm:$0xff]
        %v786 = vld [vmem:[%s237 + $0xf08] sm:$0xff]
        %v787 = vld [vmem:[%s237 + $0xf10] sm:$0xff]
        %v788 = vld [vmem:[%s237 + $0xf18] sm:$0xff]
        %v789 = vld [vmem:[%s237 + $0xf20] sm:$0xff]
        %v790 = vld [vmem:[%s237 + $0xf28] sm:$0xff]
        %v791 = vld [vmem:[%s237 + $0xf30] sm:$0xff]
        %v792 = vld [vmem:[%s237 + $0xf38] sm:$0xff]
        %v793 = vld [vmem:[%s237 + $0xf40] sm:$0xff]
        %v794 = vld [vmem:[%s237 + $0xf48] sm:$0xff]
        %v795 = vld [vmem:[%s237 + $0xf50] sm:$0xff]
        %v796 = vld [vmem:[%s237 + $0xf58] sm:$0xff]
        %v797 = vld [vmem:[%s237 + $0xf60] sm:$0xff]
        %v798 = vld [vmem:[%s237 + $0xf68] sm:$0xff]
        %v799 = vld [vmem:[%s237 + $0xf70] sm:$0xff]
        %v800 = vld [vmem:[%s237 + $0xf78] sm:$0xff]
        %v801 = vld [vmem:[%s237 + $0xf80] sm:$0xff]
        %v802 = vld [vmem:[%s237 + $0xf88] sm:$0xff]
        %v803 = vld [vmem:[%s237 + $0xf90] sm:$0xff]
        %v804 = vld [vmem:[%s237 + $0xf98] sm:$0xff]
        %v805 = vld [vmem:[%s237 + $0xfa0] sm:$0xff]
        %v806 = vld [vmem:[%s237 + $0xfa8] sm:$0xff]
        %v807 = vld [vmem:[%s237 + $0xfb0] sm:$0xff]
        %v808 = vld [vmem:[%s237 + $0xfb8] sm:$0xff]
        %v809 = vld [vmem:[%s237 + $0xfc0] sm:$0xff]
        %v810 = vld [vmem:[%s237 + $0xfc8] sm:$0xff]
        %v811 = vld [vmem:[%s237 + $0xfd0] sm:$0xff]
        %v812 = vld [vmem:[%s237 + $0xfd8] sm:$0xff]
        %v813 = vld [vmem:[%s237 + $0xfe0] sm:$0xff]
        %v814 = vld [vmem:[%s237 + $0xfe8] sm:$0xff]
        %v815 = vld [vmem:[%s237 + $0xff0] sm:$0xff]
        %v816 = vld [vmem:[%s237 + $0xff8] sm:$0xff]
        %v817 = vld [vmem:[%s237 + $0x1000] sm:$0xff]
        %v818 = vld [vmem:[%s237 + $0x1008] sm:$0xff]
        %v819 = vld [vmem:[%s237 + $0x1010] sm:$0xff]
        %v820 = vld [vmem:[%s237 + $0x1018] sm:$0xff]
        %v821 = vld [vmem:[%s237 + $0x1020] sm:$0xff]
        %v822 = vld [vmem:[%s237 + $0x1028] sm:$0xff]
        %v823 = vld [vmem:[%s237 + $0x1030] sm:$0xff]
        %v824 = vld [vmem:[%s237 + $0x1038] sm:$0xff]
        %v825 = vld [vmem:[%s237 + $0x1040] sm:$0xff]
        %v826 = vld [vmem:[%s237 + $0x1048] sm:$0xff]
        %v827 = vld [vmem:[%s237 + $0x1050] sm:$0xff]
        %v828 = vld [vmem:[%s237 + $0x1058] sm:$0xff]
        %v829 = vld [vmem:[%s237 + $0x1060] sm:$0xff]
        %v830 = vld [vmem:[%s237 + $0x1068] sm:$0xff]
        %v831 = vld [vmem:[%s237 + $0x1070] sm:$0xff]
        %v832 = vld [vmem:[%s237 + $0x1078] sm:$0xff]
        %v833 = vld [vmem:[%s237 + $0x1080] sm:$0xff]
        %v834 = vld [vmem:[%s237 + $0x1088] sm:$0xff]
        %v835 = vld [vmem:[%s237 + $0x1090] sm:$0xff]
        %v836 = vld [vmem:[%s237 + $0x1098] sm:$0xff]
        %v837 = vld [vmem:[%s237 + $0x10a0] sm:$0xff]
        %v838 = vld [vmem:[%s237 + $0x10a8] sm:$0xff]
        %v839 = vld [vmem:[%s237 + $0x10b0] sm:$0xff]
        %v840 = vld [vmem:[%s237 + $0x10b8] sm:$0xff]
        %v841 = vld [vmem:[%s237 + $0x10c0] sm:$0xff]
        %v842 = vld [vmem:[%s237 + $0x10c8] sm:$0xff]
        %v843 = vld [vmem:[%s237 + $0x10d0] sm:$0xff]
        %v844 = vld [vmem:[%s237 + $0x10d8] sm:$0xff]
        %v845 = vld [vmem:[%s237 + $0x10e0] sm:$0xff]
        %v846 = vld [vmem:[%s237 + $0x10e8] sm:$0xff]
        %v847 = vld [vmem:[%s237 + $0x10f0] sm:$0xff]
        %v848 = vld [vmem:[%s237 + $0x10f8] sm:$0xff]
        %v849 = vld [vmem:[%s237 + $0x1100] sm:$0xff]
        %v850 = vld [vmem:[%s237 + $0x1108] sm:$0xff]
        %v851 = vld [vmem:[%s237 + $0x1110] sm:$0xff]
        %v852 = vld [vmem:[%s237 + $0x1118] sm:$0xff]
        %v853 = vld [vmem:[%s237 + $0x1120] sm:$0xff]
        %v854 = vld [vmem:[%s237 + $0x1128] sm:$0xff]
        %v855 = vld [vmem:[%s237 + $0x1130] sm:$0xff]
        %v856 = vld [vmem:[%s237 + $0x1138] sm:$0xff]
        %v857 = vld [vmem:[%s237 + $0x1140] sm:$0xff]
        %v858 = vld [vmem:[%s237 + $0x1148] sm:$0xff]
        %v859 = vld [vmem:[%s237 + $0x1150] sm:$0xff]
        %v860 = vld [vmem:[%s237 + $0x1158] sm:$0xff]
        %v861 = vld [vmem:[%s237 + $0x1160] sm:$0xff]
        %v862 = vld [vmem:[%s237 + $0x1168] sm:$0xff]
        %v863 = vld [vmem:[%s237 + $0x1170] sm:$0xff]
        %v864 = vld [vmem:[%s237 + $0x1178] sm:$0xff]
        %v865 = vld [vmem:[%s237 + $0x1180] sm:$0xff]
        %v866 = vld [vmem:[%s237 + $0x1188] sm:$0xff]
        %v867 = vld [vmem:[%s237 + $0x1190] sm:$0xff]
        %v868 = vld [vmem:[%s237 + $0x1198] sm:$0xff]
        %v869 = vld [vmem:[%s237 + $0x11a0] sm:$0xff]
        %v870 = vld [vmem:[%s237 + $0x11a8] sm:$0xff]
        %v871 = vld [vmem:[%s237 + $0x11b0] sm:$0xff]
        %v872 = vld [vmem:[%s237 + $0x11b8] sm:$0xff]
        %v873 = vld [vmem:[%s237 + $0x11c0] sm:$0xff]
        %v874 = vld [vmem:[%s237 + $0x11c8] sm:$0xff]
        %v875 = vld [vmem:[%s237 + $0x11d0] sm:$0xff]
        %v876 = vld [vmem:[%s237 + $0x11d8] sm:$0xff]
        %v877 = vld [vmem:[%s237 + $0x11e0] sm:$0xff]
        %v878 = vld [vmem:[%s237 + $0x11e8] sm:$0xff]
        %v879 = vld [vmem:[%s237 + $0x11f0] sm:$0xff]
        %v880 = vld [vmem:[%s237 + $0x11f8] sm:$0xff]
        %v881 = vld [vmem:[%s237 + $0x1200] sm:$0xff]
        %v882 = vld [vmem:[%s237 + $0x1208] sm:$0xff]
        %v883 = vld [vmem:[%s237 + $0x1210] sm:$0xff]
        %v884 = vld [vmem:[%s237 + $0x1218] sm:$0xff]
        %v885 = vld [vmem:[%s237 + $0x1220] sm:$0xff]
        %v886 = vld [vmem:[%s237 + $0x1228] sm:$0xff]
        %v887 = vld [vmem:[%s237 + $0x1230] sm:$0xff]
        %v888 = vld [vmem:[%s237 + $0x1238] sm:$0xff]
        %v889 = vld [vmem:[%s237 + $0x1240] sm:$0xff]
        %v890 = vld [vmem:[%s237 + $0x1248] sm:$0xff]
        %v891 = vld [vmem:[%s237 + $0x1250] sm:$0xff]
        %v892 = vld [vmem:[%s237 + $0x1258] sm:$0xff]
        %v893 = vld [vmem:[%s237 + $0x1260] sm:$0xff]
        %v894 = vld [vmem:[%s237 + $0x1268] sm:$0xff]
        %v895 = vld [vmem:[%s237 + $0x1270] sm:$0xff]
        %v896 = vld [vmem:[%s237 + $0x1278] sm:$0xff]
        %v897 = vld [vmem:[%s237 + $0x1280] sm:$0xff]
        %v898 = vld [vmem:[%s237 + $0x1288] sm:$0xff]
        %v899 = vld [vmem:[%s237 + $0x1290] sm:$0xff]
        %v900 = vld [vmem:[%s237 + $0x1298] sm:$0xff]
        %v901 = vld [vmem:[%s237 + $0x12a0] sm:$0xff]
        %v902 = vld [vmem:[%s237 + $0x12a8] sm:$0xff]
        %v903 = vld [vmem:[%s237 + $0x12b0] sm:$0xff]
        %v904 = vld [vmem:[%s237 + $0x12b8] sm:$0xff]
        %v905 = vld [vmem:[%s237 + $0x12c0] sm:$0xff]
        %v906 = vld [vmem:[%s237 + $0x12c8] sm:$0xff]
        %v907 = vld [vmem:[%s237 + $0x12d0] sm:$0xff]
        %v908 = vld [vmem:[%s237 + $0x12d8] sm:$0xff]
        %v909 = vld [vmem:[%s237 + $0x12e0] sm:$0xff]
        %v910 = vld [vmem:[%s237 + $0x12e8] sm:$0xff]
        %v911 = vld [vmem:[%s237 + $0x12f0] sm:$0xff]
        %v912 = vld [vmem:[%s237 + $0x12f8] sm:$0xff]
        %v913 = vld [vmem:[%s237 + $0x1300] sm:$0xff]
        %v914 = vld [vmem:[%s237 + $0x1308] sm:$0xff]
        %v915 = vld [vmem:[%s237 + $0x1310] sm:$0xff]
        %v916 = vld [vmem:[%s237 + $0x1318] sm:$0xff]
        %v917 = vld [vmem:[%s237 + $0x1320] sm:$0xff]
        %v918 = vld [vmem:[%s237 + $0x1328] sm:$0xff]
        %v919 = vld [vmem:[%s237 + $0x1330] sm:$0xff]
        %v920 = vld [vmem:[%s237 + $0x1338] sm:$0xff]
        %v921 = vld [vmem:[%s237 + $0x1340] sm:$0xff]
        %v922 = vld [vmem:[%s237 + $0x1348] sm:$0xff]
        %v923 = vld [vmem:[%s237 + $0x1350] sm:$0xff]
        %v924 = vld [vmem:[%s237 + $0x1358] sm:$0xff]
        %v925 = vld [vmem:[%s237 + $0x1360] sm:$0xff]
        %v926 = vld [vmem:[%s237 + $0x1368] sm:$0xff]
        %v927 = vld [vmem:[%s237 + $0x1370] sm:$0xff]
        %v928 = vld [vmem:[%s237 + $0x1378] sm:$0xff]
        %v929 = vld [vmem:[%s237 + $0x1380] sm:$0xff]
        %v930 = vld [vmem:[%s237 + $0x1388] sm:$0xff]
        %v931 = vld [vmem:[%s237 + $0x1390] sm:$0xff]
        %v932 = vld [vmem:[%s237 + $0x1398] sm:$0xff]
        %v933 = vld [vmem:[%s237 + $0x13a0] sm:$0xff]
        %v934 = vld [vmem:[%s237 + $0x13a8] sm:$0xff]
        %v935 = vld [vmem:[%s237 + $0x13b0] sm:$0xff]
        %v936 = vld [vmem:[%s237 + $0x13b8] sm:$0xff]
        %v937 = vld [vmem:[%s237 + $0x13c0] sm:$0xff]
        %v938 = vld [vmem:[%s237 + $0x13c8] sm:$0xff]
        %v939 = vld [vmem:[%s237 + $0x13d0] sm:$0xff]
        %v940 = vld [vmem:[%s237 + $0x13d8] sm:$0xff]
        %v941 = vld [vmem:[%s237 + $0x13e0] sm:$0xff]
        %v942 = vld [vmem:[%s237 + $0x13e8] sm:$0xff]
        %v943 = vld [vmem:[%s237 + $0x13f0] sm:$0xff]
        %v944 = vld [vmem:[%s237 + $0x13f8] sm:$0xff]
        %v945 = vld [vmem:[%s237 + $0x1400] sm:$0xff]
        %v946 = vld [vmem:[%s237 + $0x1408] sm:$0xff]
        %v947 = vld [vmem:[%s237 + $0x1410] sm:$0xff]
        %v948 = vld [vmem:[%s237 + $0x1418] sm:$0xff]
        %v949 = vld [vmem:[%s237 + $0x1420] sm:$0xff]
        %v950 = vld [vmem:[%s237 + $0x1428] sm:$0xff]
        %v951 = vld [vmem:[%s237 + $0x1430] sm:$0xff]
        %v952 = vld [vmem:[%s237 + $0x1438] sm:$0xff]
        %v953 = vld [vmem:[%s237 + $0x1440] sm:$0xff]
        %v954 = vld [vmem:[%s237 + $0x1448] sm:$0xff]
        %v955 = vld [vmem:[%s237 + $0x1450] sm:$0xff]
        %v956 = vld [vmem:[%s237 + $0x1458] sm:$0xff]
        %v957 = vld [vmem:[%s237 + $0x1460] sm:$0xff]
        %v958 = vld [vmem:[%s237 + $0x1468] sm:$0xff]
        %v959 = vld [vmem:[%s237 + $0x1470] sm:$0xff]
        %v960 = vld [vmem:[%s237 + $0x1478] sm:$0xff]
        %v961 = vld [vmem:[%s237 + $0x1480] sm:$0xff]
        %v962 = vld [vmem:[%s237 + $0x1488] sm:$0xff]
        %v963 = vld [vmem:[%s237 + $0x1490] sm:$0xff]
        %v964 = vld [vmem:[%s237 + $0x1498] sm:$0xff]
        %v965 = vld [vmem:[%s237 + $0x14a0] sm:$0xff]
        %v966 = vld [vmem:[%s237 + $0x14a8] sm:$0xff]
        %v967 = vld [vmem:[%s237 + $0x14b0] sm:$0xff]
        %v968 = vld [vmem:[%s237 + $0x14b8] sm:$0xff]
        %v969 = vld [vmem:[%s237 + $0x14c0] sm:$0xff]
        %v970 = vld [vmem:[%s237 + $0x14c8] sm:$0xff]
        %v971 = vld [vmem:[%s237 + $0x14d0] sm:$0xff]
        %v972 = vld [vmem:[%s237 + $0x14d8] sm:$0xff]
        %v973 = vld [vmem:[%s237 + $0x14e0] sm:$0xff]
        %v974 = vld [vmem:[%s237 + $0x14e8] sm:$0xff]
        %v975 = vld [vmem:[%s237 + $0x14f0] sm:$0xff]
        %v976 = vld [vmem:[%s237 + $0x14f8] sm:$0xff]
        %v977 = vld [vmem:[%s237 + $0x1500] sm:$0xff]
        %v978 = vld [vmem:[%s237 + $0x1508] sm:$0xff]
        %v979 = vld [vmem:[%s237 + $0x1510] sm:$0xff]
        %v980 = vld [vmem:[%s237 + $0x1518] sm:$0xff]
        %v981 = vld [vmem:[%s237 + $0x1520] sm:$0xff]
        %v982 = vld [vmem:[%s237 + $0x1528] sm:$0xff]
        %v983 = vld [vmem:[%s237 + $0x1530] sm:$0xff]
        %v984 = vld [vmem:[%s237 + $0x1538] sm:$0xff]
        %v985 = vld [vmem:[%s237 + $0x1540] sm:$0xff]
        %v986 = vld [vmem:[%s237 + $0x1548] sm:$0xff]
        %v987 = vld [vmem:[%s237 + $0x1550] sm:$0xff]
        %v988 = vld [vmem:[%s237 + $0x1558] sm:$0xff]
        %v989 = vld [vmem:[%s237 + $0x1560] sm:$0xff]
        %v990 = vld [vmem:[%s237 + $0x1568] sm:$0xff]
        %v991 = vld [vmem:[%s237 + $0x1570] sm:$0xff]
        %v992 = vld [vmem:[%s237 + $0x1578] sm:$0xff]
        %v993 = vld [vmem:[%s237 + $0x1580] sm:$0xff]
        %v994 = vld [vmem:[%s237 + $0x1588] sm:$0xff]
        %v995 = vld [vmem:[%s237 + $0x1590] sm:$0xff]
        %v996 = vld [vmem:[%s237 + $0x1598] sm:$0xff]
        %v997 = vld [vmem:[%s237 + $0x15a0] sm:$0xff]
        %v998 = vld [vmem:[%s237 + $0x15a8] sm:$0xff]
        %v999 = vld [vmem:[%s237 + $0x15b0] sm:$0xff]
        %v1000 = vld [vmem:[%s237 + $0x15b8] sm:$0xff]
        %v1001 = vld [vmem:[%s237 + $0x15c0] sm:$0xff]
        %v1002 = vld [vmem:[%s237 + $0x15c8] sm:$0xff]
        %v1003 = vld [vmem:[%s237 + $0x15d0] sm:$0xff]
        %v1004 = vld [vmem:[%s237 + $0x15d8] sm:$0xff]
        %v1005 = vld [vmem:[%s237 + $0x15e0] sm:$0xff]
        %v1006 = vld [vmem:[%s237 + $0x15e8] sm:$0xff]
        %v1007 = vld [vmem:[%s237 + $0x15f0] sm:$0xff]
        %v1008 = vld [vmem:[%s237 + $0x15f8] sm:$0xff]
        %v1009 = vld [vmem:[%s237 + $0x1600] sm:$0xff]
        %v1010 = vld [vmem:[%s237 + $0x1608] sm:$0xff]
        %v1011 = vld [vmem:[%s237 + $0x1610] sm:$0xff]
        %v1012 = vld [vmem:[%s237 + $0x1618] sm:$0xff]
        %v1013 = vld [vmem:[%s237 + $0x1620] sm:$0xff]
        %v1014 = vld [vmem:[%s237 + $0x1628] sm:$0xff]
        %v1015 = vld [vmem:[%s237 + $0x1630] sm:$0xff]
        %v1016 = vld [vmem:[%s237 + $0x1638] sm:$0xff]
        %v1017 = vld [vmem:[%s237 + $0x1640] sm:$0xff]
        %v1018 = vld [vmem:[%s237 + $0x1648] sm:$0xff]
        %v1019 = vld [vmem:[%s237 + $0x1650] sm:$0xff]
        %v1020 = vld [vmem:[%s237 + $0x1658] sm:$0xff]
        %v1021 = vld [vmem:[%s237 + $0x1660] sm:$0xff]
        %v1022 = vld [vmem:[%s237 + $0x1668] sm:$0xff]
        %v1023 = vld [vmem:[%s237 + $0x1670] sm:$0xff]
        %v1024 = vld [vmem:[%s237 + $0x1678] sm:$0xff]
        %v1025 = vld [vmem:[%s237 + $0x1680] sm:$0xff]
        %v1026 = vld [vmem:[%s237 + $0x1688] sm:$0xff]
        %v1027 = vld [vmem:[%s237 + $0x1690] sm:$0xff]
        %v1028 = vld [vmem:[%s237 + $0x1698] sm:$0xff]
        %v1029 = vld [vmem:[%s237 + $0x16a0] sm:$0xff]
        %v1030 = vld [vmem:[%s237 + $0x16a8] sm:$0xff]
        %v1031 = vld [vmem:[%s237 + $0x16b0] sm:$0xff]
        %v1032 = vld [vmem:[%s237 + $0x16b8] sm:$0xff]
        %v1033 = vld [vmem:[%s237 + $0x16c0] sm:$0xff]
        %v1034 = vld [vmem:[%s237 + $0x16c8] sm:$0xff]
        %v1035 = vld [vmem:[%s237 + $0x16d0] sm:$0xff]
        %v1036 = vld [vmem:[%s237 + $0x16d8] sm:$0xff]
        %v1037 = vld [vmem:[%s237 + $0x16e0] sm:$0xff]
        %v1038 = vld [vmem:[%s237 + $0x16e8] sm:$0xff]
        %v1039 = vld [vmem:[%s237 + $0x16f0] sm:$0xff]
        %v1040 = vld [vmem:[%s237 + $0x16f8] sm:$0xff]
        %v1041 = vld [vmem:[%s237 + $0x1700] sm:$0xff]
        %v1042 = vld [vmem:[%s237 + $0x1708] sm:$0xff]
        %v1043 = vld [vmem:[%s237 + $0x1710] sm:$0xff]
        %v1044 = vld [vmem:[%s237 + $0x1718] sm:$0xff]
        %v1045 = vld [vmem:[%s237 + $0x1720] sm:$0xff]
        %v1046 = vld [vmem:[%s237 + $0x1728] sm:$0xff]
        %v1047 = vld [vmem:[%s237 + $0x1730] sm:$0xff]
        %v1048 = vld [vmem:[%s237 + $0x1738] sm:$0xff]
        %v1049 = vld [vmem:[%s237 + $0x1740] sm:$0xff]
        %v1050 = vld [vmem:[%s237 + $0x1748] sm:$0xff]
        %v1051 = vld [vmem:[%s237 + $0x1750] sm:$0xff]
        %v1052 = vld [vmem:[%s237 + $0x1758] sm:$0xff]
        %v1053 = vld [vmem:[%s237 + $0x1760] sm:$0xff]
        %v1054 = vld [vmem:[%s237 + $0x1768] sm:$0xff]
        %v1055 = vld [vmem:[%s237 + $0x1770] sm:$0xff]
        %v1056 = vld [vmem:[%s237 + $0x1778] sm:$0xff]
        %v1057 = vld [vmem:[%s237 + $0x1780] sm:$0xff]
        %v1058 = vld [vmem:[%s237 + $0x1788] sm:$0xff]
        %v1059 = vld [vmem:[%s237 + $0x1790] sm:$0xff]
        %v1060 = vld [vmem:[%s237 + $0x1798] sm:$0xff]
        %v1061 = vld [vmem:[%s237 + $0x17a0] sm:$0xff]
        %v1062 = vld [vmem:[%s237 + $0x17a8] sm:$0xff]
        %v1063 = vld [vmem:[%s237 + $0x17b0] sm:$0xff]
        %v1064 = vld [vmem:[%s237 + $0x17b8] sm:$0xff]
        %v1065 = vld [vmem:[%s237 + $0x17c0] sm:$0xff]
        %v1066 = vld [vmem:[%s237 + $0x17c8] sm:$0xff]
        %v1067 = vld [vmem:[%s237 + $0x17d0] sm:$0xff]
        %v1068 = vld [vmem:[%s237 + $0x17d8] sm:$0xff]
        %v1069 = vld [vmem:[%s237 + $0x17e0] sm:$0xff]
        %v1070 = vld [vmem:[%s237 + $0x17e8] sm:$0xff]
        %v1071 = vld [vmem:[%s237 + $0x17f0] sm:$0xff]
        %v1072 = vld [vmem:[%s237 + $0x17f8] sm:$0xff]
        %v1073 = vld [vmem:[%s237 + $0x1800] sm:$0xff]
        %v1074 = vld [vmem:[%s237 + $0x1808] sm:$0xff]
        %v1075 = vld [vmem:[%s237 + $0x1810] sm:$0xff]
        %v1076 = vld [vmem:[%s237 + $0x1818] sm:$0xff]
        %v1077 = vld [vmem:[%s237 + $0x1820] sm:$0xff]
        %v1078 = vld [vmem:[%s237 + $0x1828] sm:$0xff]
        %v1079 = vld [vmem:[%s237 + $0x1830] sm:$0xff]
        %v1080 = vld [vmem:[%s237 + $0x1838] sm:$0xff]
        %v1081 = vld [vmem:[%s237 + $0x1840] sm:$0xff]
        %v1082 = vld [vmem:[%s237 + $0x1848] sm:$0xff]
        %v1083 = vld [vmem:[%s237 + $0x1850] sm:$0xff]
        %v1084 = vld [vmem:[%s237 + $0x1858] sm:$0xff]
        %v1085 = vld [vmem:[%s237 + $0x1860] sm:$0xff]
        %v1086 = vld [vmem:[%s237 + $0x1868] sm:$0xff]
        %v1087 = vld [vmem:[%s237 + $0x1870] sm:$0xff]
        %v1088 = vld [vmem:[%s237 + $0x1878] sm:$0xff]
        %v1089 = vld [vmem:[%s237 + $0x1880] sm:$0xff]
        %v1090 = vld [vmem:[%s237 + $0x1888] sm:$0xff]
        %v1091 = vld [vmem:[%s237 + $0x1890] sm:$0xff]
        %v1092 = vld [vmem:[%s237 + $0x1898] sm:$0xff]
        %v1093 = vld [vmem:[%s237 + $0x18a0] sm:$0xff]
        %v1094 = vld [vmem:[%s237 + $0x18a8] sm:$0xff]
        %v1095 = vld [vmem:[%s237 + $0x18b0] sm:$0xff]
        %v1096 = vld [vmem:[%s237 + $0x18b8] sm:$0xff]
        %v1097 = vld [vmem:[%s237 + $0x18c0] sm:$0xff]
        %v1098 = vld [vmem:[%s237 + $0x18c8] sm:$0xff]
        %v1099 = vld [vmem:[%s237 + $0x18d0] sm:$0xff]
        %v1100 = vld [vmem:[%s237 + $0x18d8] sm:$0xff]
        %v1101 = vld [vmem:[%s237 + $0x18e0] sm:$0xff]
        %v1102 = vld [vmem:[%s237 + $0x18e8] sm:$0xff]
        %v1103 = vld [vmem:[%s237 + $0x18f0] sm:$0xff]
        %v1104 = vld [vmem:[%s237 + $0x18f8] sm:$0xff]
        %v1105 = vld [vmem:[%s237 + $0x1900] sm:$0xff]
        %v1106 = vld [vmem:[%s237 + $0x1908] sm:$0xff]
        %v1107 = vld [vmem:[%s237 + $0x1910] sm:$0xff]
        %v1108 = vld [vmem:[%s237 + $0x1918] sm:$0xff]
        %v1109 = vld [vmem:[%s237 + $0x1920] sm:$0xff]
        %v1110 = vld [vmem:[%s237 + $0x1928] sm:$0xff]
        %v1111 = vld [vmem:[%s237 + $0x1930] sm:$0xff]
        %v1112 = vld [vmem:[%s237 + $0x1938] sm:$0xff]
        %v1113 = vld [vmem:[%s237 + $0x1940] sm:$0xff]
        %v1114 = vld [vmem:[%s237 + $0x1948] sm:$0xff]
        %v1115 = vld [vmem:[%s237 + $0x1950] sm:$0xff]
        %v1116 = vld [vmem:[%s237 + $0x1958] sm:$0xff]
        %v1117 = vld [vmem:[%s237 + $0x1960] sm:$0xff]
        %v1118 = vld [vmem:[%s237 + $0x1968] sm:$0xff]
        %v1119 = vld [vmem:[%s237 + $0x1970] sm:$0xff]
        %v1120 = vld [vmem:[%s237 + $0x1978] sm:$0xff]
        %v1121 = vld [vmem:[%s237 + $0x1980] sm:$0xff]
        %v1122 = vld [vmem:[%s237 + $0x1988] sm:$0xff]
        %v1123 = vld [vmem:[%s237 + $0x1990] sm:$0xff]
        %v1124 = vld [vmem:[%s237 + $0x1998] sm:$0xff]
        %v1125 = vld [vmem:[%s237 + $0x19a0] sm:$0xff]
        %v1126 = vld [vmem:[%s237 + $0x19a8] sm:$0xff]
        %v1127 = vld [vmem:[%s237 + $0x19b0] sm:$0xff]
        %v1128 = vld [vmem:[%s237 + $0x19b8] sm:$0xff]
        %v1129 = vld [vmem:[%s237 + $0x19c0] sm:$0xff]
        %v1130 = vld [vmem:[%s237 + $0x19c8] sm:$0xff]
        %v1131 = vld [vmem:[%s237 + $0x19d0] sm:$0xff]
        %v1132 = vld [vmem:[%s237 + $0x19d8] sm:$0xff]
        %v1133 = vld [vmem:[%s237 + $0x19e0] sm:$0xff]
        %v1134 = vld [vmem:[%s237 + $0x19e8] sm:$0xff]
        %v1135 = vld [vmem:[%s237 + $0x19f0] sm:$0xff]
        %v1136 = vld [vmem:[%s237 + $0x19f8] sm:$0xff]
        %v1137 = vld [vmem:[%s237 + $0x1a00] sm:$0xff]
        %v1138 = vld [vmem:[%s237 + $0x1a08] sm:$0xff]
        %v1139 = vld [vmem:[%s237 + $0x1a10] sm:$0xff]
        %v1140 = vld [vmem:[%s237 + $0x1a18] sm:$0xff]
        %v1141 = vld [vmem:[%s237 + $0x1a20] sm:$0xff]
        %v1142 = vld [vmem:[%s237 + $0x1a28] sm:$0xff]
        %v1143 = vld [vmem:[%s237 + $0x1a30] sm:$0xff]
        %v1144 = vld [vmem:[%s237 + $0x1a38] sm:$0xff]
        %v1145 = vld [vmem:[%s237 + $0x1a40] sm:$0xff]
        %v1146 = vld [vmem:[%s237 + $0x1a48] sm:$0xff]
        %v1147 = vld [vmem:[%s237 + $0x1a50] sm:$0xff]
        %v1148 = vld [vmem:[%s237 + $0x1a58] sm:$0xff]
        %v1149 = vld [vmem:[%s237 + $0x1a60] sm:$0xff]
        %v1150 = vld [vmem:[%s237 + $0x1a68] sm:$0xff]
        %v1151 = vld [vmem:[%s237 + $0x1a70] sm:$0xff]
        %v1152 = vld [vmem:[%s237 + $0x1a78] sm:$0xff]
        %v1153 = vld [vmem:[%s237 + $0x1a80] sm:$0xff]
        %v1154 = vld [vmem:[%s237 + $0x1a88] sm:$0xff]
        %v1155 = vld [vmem:[%s237 + $0x1a90] sm:$0xff]
        %v1156 = vld [vmem:[%s237 + $0x1a98] sm:$0xff]
        %v1157 = vld [vmem:[%s237 + $0x1aa0] sm:$0xff]
        %v1158 = vld [vmem:[%s237 + $0x1aa8] sm:$0xff]
        %v1159 = vld [vmem:[%s237 + $0x1ab0] sm:$0xff]
        %v1160 = vld [vmem:[%s237 + $0x1ab8] sm:$0xff]
        %v1161 = vld [vmem:[%s237 + $0x1ac0] sm:$0xff]
        %v1162 = vld [vmem:[%s237 + $0x1ac8] sm:$0xff]
        %v1163 = vld [vmem:[%s237 + $0x1ad0] sm:$0xff]
        %v1164 = vld [vmem:[%s237 + $0x1ad8] sm:$0xff]
        %v1165 = vld [vmem:[%s237 + $0x1ae0] sm:$0xff]
        %v1166 = vld [vmem:[%s237 + $0x1ae8] sm:$0xff]
        %v1167 = vld [vmem:[%s237 + $0x1af0] sm:$0xff]
        %v1168 = vld [vmem:[%s237 + $0x1af8] sm:$0xff]
        %v1169 = vld [vmem:[%s237 + $0x1b00] sm:$0xff]
        %v1170 = vld [vmem:[%s237 + $0x1b08] sm:$0xff]
        %v1171 = vld [vmem:[%s237 + $0x1b10] sm:$0xff]
        %v1172 = vld [vmem:[%s237 + $0x1b18] sm:$0xff]
        %v1173 = vld [vmem:[%s237 + $0x1b20] sm:$0xff]
        %v1174 = vld [vmem:[%s237 + $0x1b28] sm:$0xff]
        %v1175 = vld [vmem:[%s237 + $0x1b30] sm:$0xff]
        %v1176 = vld [vmem:[%s237 + $0x1b38] sm:$0xff]
        %v1177 = vld [vmem:[%s237 + $0x1b40] sm:$0xff]
        %v1178 = vld [vmem:[%s237 + $0x1b48] sm:$0xff]
        %v1179 = vld [vmem:[%s237 + $0x1b50] sm:$0xff]
        %v1180 = vld [vmem:[%s237 + $0x1b58] sm:$0xff]
        %v1181 = vld [vmem:[%s237 + $0x1b60] sm:$0xff]
        %v1182 = vld [vmem:[%s237 + $0x1b68] sm:$0xff]
        %v1183 = vld [vmem:[%s237 + $0x1b70] sm:$0xff]
        %v1184 = vld [vmem:[%s237 + $0x1b78] sm:$0xff]
        %v1185 = vld [vmem:[%s237 + $0x1b80] sm:$0xff]
        %v1186 = vld [vmem:[%s237 + $0x1b88] sm:$0xff]
        %v1187 = vld [vmem:[%s237 + $0x1b90] sm:$0xff]
        %v1188 = vld [vmem:[%s237 + $0x1b98] sm:$0xff]
        %v1189 = vld [vmem:[%s237 + $0x1ba0] sm:$0xff]
        %v1190 = vld [vmem:[%s237 + $0x1ba8] sm:$0xff]
        %v1191 = vld [vmem:[%s237 + $0x1bb0] sm:$0xff]
        %v1192 = vld [vmem:[%s237 + $0x1bb8] sm:$0xff]
        %v1193 = vld [vmem:[%s237 + $0x1bc0] sm:$0xff]
        %v1194 = vld [vmem:[%s237 + $0x1bc8] sm:$0xff]
        %v1195 = vld [vmem:[%s237 + $0x1bd0] sm:$0xff]
        %v1196 = vld [vmem:[%s237 + $0x1bd8] sm:$0xff]
        %v1197 = vld [vmem:[%s237 + $0x1be0] sm:$0xff]
        %v1198 = vld [vmem:[%s237 + $0x1be8] sm:$0xff]
        %v1199 = vld [vmem:[%s237 + $0x1bf0] sm:$0xff]
        %v1200 = vld [vmem:[%s237 + $0x1bf8] sm:$0xff]
        %v1201 = vld [vmem:[%s237 + $0x1c00] sm:$0xff]
        %v1202 = vld [vmem:[%s237 + $0x1c08] sm:$0xff]
        %v1203 = vld [vmem:[%s237 + $0x1c10] sm:$0xff]
        %v1204 = vld [vmem:[%s237 + $0x1c18] sm:$0xff]
        %v1205 = vld [vmem:[%s237 + $0x1c20] sm:$0xff]
        %v1206 = vld [vmem:[%s237 + $0x1c28] sm:$0xff]
        %v1207 = vld [vmem:[%s237 + $0x1c30] sm:$0xff]
        %v1208 = vld [vmem:[%s237 + $0x1c38] sm:$0xff]
        %v1209 = vld [vmem:[%s237 + $0x1c40] sm:$0xff]
        %v1210 = vld [vmem:[%s237 + $0x1c48] sm:$0xff]
        %v1211 = vld [vmem:[%s237 + $0x1c50] sm:$0xff]
        %v1212 = vld [vmem:[%s237 + $0x1c58] sm:$0xff]
        %v1213 = vld [vmem:[%s237 + $0x1c60] sm:$0xff]
        %v1214 = vld [vmem:[%s237 + $0x1c68] sm:$0xff]
        %v1215 = vld [vmem:[%s237 + $0x1c70] sm:$0xff]
        %v1216 = vld [vmem:[%s237 + $0x1c78] sm:$0xff]
        %v1217 = vld [vmem:[%s237 + $0x1c80] sm:$0xff]
        %v1218 = vld [vmem:[%s237 + $0x1c88] sm:$0xff]
        %v1219 = vld [vmem:[%s237 + $0x1c90] sm:$0xff]
        %v1220 = vld [vmem:[%s237 + $0x1c98] sm:$0xff]
        %v1221 = vld [vmem:[%s237 + $0x1ca0] sm:$0xff]
        %v1222 = vld [vmem:[%s237 + $0x1ca8] sm:$0xff]
        %v1223 = vld [vmem:[%s237 + $0x1cb0] sm:$0xff]
        %v1224 = vld [vmem:[%s237 + $0x1cb8] sm:$0xff]
        %v1225 = vld [vmem:[%s237 + $0x1cc0] sm:$0xff]
        %v1226 = vld [vmem:[%s237 + $0x1cc8] sm:$0xff]
        %v1227 = vld [vmem:[%s237 + $0x1cd0] sm:$0xff]
        %v1228 = vld [vmem:[%s237 + $0x1cd8] sm:$0xff]
        %v1229 = vld [vmem:[%s237 + $0x1ce0] sm:$0xff]
        %v1230 = vld [vmem:[%s237 + $0x1ce8] sm:$0xff]
        %v1231 = vld [vmem:[%s237 + $0x1cf0] sm:$0xff]
        %v1232 = vld [vmem:[%s237 + $0x1cf8] sm:$0xff]
        %v1233 = vld [vmem:[%s237 + $0x1d00] sm:$0xff]
        %v1234 = vld [vmem:[%s237 + $0x1d08] sm:$0xff]
        %v1235 = vld [vmem:[%s237 + $0x1d10] sm:$0xff]
        %v1236 = vld [vmem:[%s237 + $0x1d18] sm:$0xff]
        %v1237 = vld [vmem:[%s237 + $0x1d20] sm:$0xff]
        %v1238 = vld [vmem:[%s237 + $0x1d28] sm:$0xff]
        %v1239 = vld [vmem:[%s237 + $0x1d30] sm:$0xff]
        %v1240 = vld [vmem:[%s237 + $0x1d38] sm:$0xff]
        %v1241 = vld [vmem:[%s237 + $0x1d40] sm:$0xff]
        %v1242 = vld [vmem:[%s237 + $0x1d48] sm:$0xff]
        %v1243 = vld [vmem:[%s237 + $0x1d50] sm:$0xff]
        %v1244 = vld [vmem:[%s237 + $0x1d58] sm:$0xff]
        %v1245 = vld [vmem:[%s237 + $0x1d60] sm:$0xff]
        %v1246 = vld [vmem:[%s237 + $0x1d68] sm:$0xff]
        %v1247 = vld [vmem:[%s237 + $0x1d70] sm:$0xff]
        %v1248 = vld [vmem:[%s237 + $0x1d78] sm:$0xff]
        %v1249 = vld [vmem:[%s237 + $0x1d80] sm:$0xff]
        %v1250 = vld [vmem:[%s237 + $0x1d88] sm:$0xff]
        %v1251 = vld [vmem:[%s237 + $0x1d90] sm:$0xff]
        %v1252 = vld [vmem:[%s237 + $0x1d98] sm:$0xff]
        %v1253 = vld [vmem:[%s237 + $0x1da0] sm:$0xff]
        %v1254 = vld [vmem:[%s237 + $0x1da8] sm:$0xff]
        %v1255 = vld [vmem:[%s237 + $0x1db0] sm:$0xff]
        %v1256 = vld [vmem:[%s237 + $0x1db8] sm:$0xff]
        %v1257 = vld [vmem:[%s237 + $0x1dc0] sm:$0xff]
        %v1258 = vld [vmem:[%s237 + $0x1dc8] sm:$0xff]
        %v1259 = vld [vmem:[%s237 + $0x1dd0] sm:$0xff]
        %v1260 = vld [vmem:[%s237 + $0x1dd8] sm:$0xff]
        %v1261 = vld [vmem:[%s237 + $0x1de0] sm:$0xff]
        %v1262 = vld [vmem:[%s237 + $0x1de8] sm:$0xff]
        %v1263 = vld [vmem:[%s237 + $0x1df0] sm:$0xff]
        %v1264 = vld [vmem:[%s237 + $0x1df8] sm:$0xff]
        %v1265 = vld [vmem:[%s237 + $0x1e00] sm:$0xff]
        %v1266 = vld [vmem:[%s237 + $0x1e08] sm:$0xff]
        %v1267 = vld [vmem:[%s237 + $0x1e10] sm:$0xff]
        %v1268 = vld [vmem:[%s237 + $0x1e18] sm:$0xff]
        %v1269 = vld [vmem:[%s237 + $0x1e20] sm:$0xff]
        %v1270 = vld [vmem:[%s237 + $0x1e28] sm:$0xff]
        %v1271 = vld [vmem:[%s237 + $0x1e30] sm:$0xff]
        %v1272 = vld [vmem:[%s237 + $0x1e38] sm:$0xff]
        %v1273 = vld [vmem:[%s237 + $0x1e40] sm:$0xff]
        %v1274 = vld [vmem:[%s237 + $0x1e48] sm:$0xff]
        %v1275 = vld [vmem:[%s237 + $0x1e50] sm:$0xff]
        %v1276 = vld [vmem:[%s237 + $0x1e58] sm:$0xff]
        %v1277 = vld [vmem:[%s237 + $0x1e60] sm:$0xff]
        %v1278 = vld [vmem:[%s237 + $0x1e68] sm:$0xff]
        %v1279 = vld [vmem:[%s237 + $0x1e70] sm:$0xff]
        %v1280 = vld [vmem:[%s237 + $0x1e78] sm:$0xff]
        %v1281 = vld [vmem:[%s237 + $0x1e80] sm:$0xff]
        %v1282 = vld [vmem:[%s237 + $0x1e88] sm:$0xff]
        %v1283 = vld [vmem:[%s237 + $0x1e90] sm:$0xff]
        %v1284 = vld [vmem:[%s237 + $0x1e98] sm:$0xff]
        %v1285 = vld [vmem:[%s237 + $0x1ea0] sm:$0xff]
        %v1286 = vld [vmem:[%s237 + $0x1ea8] sm:$0xff]
        %v1287 = vld [vmem:[%s237 + $0x1eb0] sm:$0xff]
        %v1288 = vld [vmem:[%s237 + $0x1eb8] sm:$0xff]
        %v1289 = vld [vmem:[%s237 + $0x1ec0] sm:$0xff]
        %v1290 = vld [vmem:[%s237 + $0x1ec8] sm:$0xff]
        %v1291 = vld [vmem:[%s237 + $0x1ed0] sm:$0xff]
        %v1292 = vld [vmem:[%s237 + $0x1ed8] sm:$0xff]
        %v1293 = vld [vmem:[%s237 + $0x1ee0] sm:$0xff]
        %v1294 = vld [vmem:[%s237 + $0x1ee8] sm:$0xff]
        %v1295 = vld [vmem:[%s237 + $0x1ef0] sm:$0xff]
        %v1296 = vld [vmem:[%s237 + $0x1ef8] sm:$0xff]
        %v1297 = vld [vmem:[%s237 + $0x1f00] sm:$0xff]
        %v1298 = vld [vmem:[%s237 + $0x1f08] sm:$0xff]
        %v1299 = vld [vmem:[%s237 + $0x1f10] sm:$0xff]
        %v1300 = vld [vmem:[%s237 + $0x1f18] sm:$0xff]
        %v1301 = vld [vmem:[%s237 + $0x1f20] sm:$0xff]
        %v1302 = vld [vmem:[%s237 + $0x1f28] sm:$0xff]
        %v1303 = vld [vmem:[%s237 + $0x1f30] sm:$0xff]
        %v1304 = vld [vmem:[%s237 + $0x1f38] sm:$0xff]
        %v1305 = vld [vmem:[%s237 + $0x1f40] sm:$0xff]
        %v1306 = vld [vmem:[%s237 + $0x1f48] sm:$0xff]
        %v1307 = vld [vmem:[%s237 + $0x1f50] sm:$0xff]
        %v1308 = vld [vmem:[%s237 + $0x1f58] sm:$0xff]
        %v1309 = vld [vmem:[%s237 + $0x1f60] sm:$0xff]
        %v1310 = vld [vmem:[%s237 + $0x1f68] sm:$0xff]
        %v1311 = vld [vmem:[%s237 + $0x1f70] sm:$0xff]
        %v1312 = vld [vmem:[%s237 + $0x1f78] sm:$0xff]
        %v1313 = vld [vmem:[%s237 + $0x1f80] sm:$0xff]
        %v1314 = vld [vmem:[%s237 + $0x1f88] sm:$0xff]
        %v1315 = vld [vmem:[%s237 + $0x1f90] sm:$0xff]
        %v1316 = vld [vmem:[%s237 + $0x1f98] sm:$0xff]
        %v1317 = vld [vmem:[%s237 + $0x1fa0] sm:$0xff]
        %v1318 = vld [vmem:[%s237 + $0x1fa8] sm:$0xff]
        %v1319 = vld [vmem:[%s237 + $0x1fb0] sm:$0xff]
        %v1320 = vld [vmem:[%s237 + $0x1fb8] sm:$0xff]
        %v1321 = vld [vmem:[%s237 + $0x1fc0] sm:$0xff]
        %v1322 = vld [vmem:[%s237 + $0x1fc8] sm:$0xff]
        %v1323 = vld [vmem:[%s237 + $0x1fd0] sm:$0xff]
        %v1324 = vld [vmem:[%s237 + $0x1fd8] sm:$0xff]
        %v1325 = vld [vmem:[%s237 + $0x1fe0] sm:$0xff]
        %v1326 = vld [vmem:[%s237 + $0x1fe8] sm:$0xff]
        %v1327 = vld [vmem:[%s237 + $0x1ff0] sm:$0xff]
        %v1328 = vld [vmem:[%s237 + $0x1ff8] sm:$0xff]
        %v1329 = vld [vmem:[%s237 + $0x2000] sm:$0xff]
        %v1330 = vld [vmem:[%s237 + $0x2008] sm:$0xff]
        %v1331 = vld [vmem:[%s237 + $0x2010] sm:$0xff]
        %v1332 = vld [vmem:[%s237 + $0x2018] sm:$0xff]
        %v1333 = vld [vmem:[%s237 + $0x2020] sm:$0xff]
        %v1334 = vld [vmem:[%s237 + $0x2028] sm:$0xff]
        %v1335 = vld [vmem:[%s237 + $0x2030] sm:$0xff]
        %v1336 = vld [vmem:[%s237 + $0x2038] sm:$0xff]
        %v1337 = vld [vmem:[%s237 + $0x2040] sm:$0xff]
        %v1338 = vld [vmem:[%s237 + $0x2048] sm:$0xff]
        %v1339 = vld [vmem:[%s237 + $0x2050] sm:$0xff]
        %v1340 = vld [vmem:[%s237 + $0x2058] sm:$0xff]
        %v1341 = vld [vmem:[%s237 + $0x2060] sm:$0xff]
        %v1342 = vld [vmem:[%s237 + $0x2068] sm:$0xff]
        %v1343 = vld [vmem:[%s237 + $0x2070] sm:$0xff]
        %v1344 = vld [vmem:[%s237 + $0x2078] sm:$0xff]
        %v1345 = vld [vmem:[%s237 + $0x2080] sm:$0xff]
        %v1346 = vld [vmem:[%s237 + $0x2088] sm:$0xff]
        %v1347 = vld [vmem:[%s237 + $0x2090] sm:$0xff]
        %v1348 = vld [vmem:[%s237 + $0x2098] sm:$0xff]
        %v1349 = vld [vmem:[%s237 + $0x20a0] sm:$0xff]
        %v1350 = vld [vmem:[%s237 + $0x20a8] sm:$0xff]
        %v1351 = vld [vmem:[%s237 + $0x20b0] sm:$0xff]
        %v1352 = vld [vmem:[%s237 + $0x20b8] sm:$0xff]
        %v1353 = vld [vmem:[%s237 + $0x20c0] sm:$0xff]
        %v1354 = vld [vmem:[%s237 + $0x20c8] sm:$0xff]
        %v1355 = vld [vmem:[%s237 + $0x20d0] sm:$0xff]
        %v1356 = vld [vmem:[%s237 + $0x20d8] sm:$0xff]
        %v1357 = vld [vmem:[%s237 + $0x20e0] sm:$0xff]
        %v1358 = vld [vmem:[%s237 + $0x20e8] sm:$0xff]
        %v1359 = vld [vmem:[%s237 + $0x20f0] sm:$0xff]
        %v1360 = vld [vmem:[%s237 + $0x20f8] sm:$0xff]
        %v1361 = vld [vmem:[%s237 + $0x2100] sm:$0xff]
        %v1362 = vld [vmem:[%s237 + $0x2108] sm:$0xff]
        %v1363 = vld [vmem:[%s237 + $0x2110] sm:$0xff]
        %v1364 = vld [vmem:[%s237 + $0x2118] sm:$0xff]
        %v1365 = vld [vmem:[%s237 + $0x2120] sm:$0xff]
        %v1366 = vld [vmem:[%s237 + $0x2128] sm:$0xff]
        %v1367 = vld [vmem:[%s237 + $0x2130] sm:$0xff]
        %v1368 = vld [vmem:[%s237 + $0x2138] sm:$0xff]
        %v1369 = vld [vmem:[%s237 + $0x2140] sm:$0xff]
        %v1370 = vld [vmem:[%s237 + $0x2148] sm:$0xff]
        %v1371 = vld [vmem:[%s237 + $0x2150] sm:$0xff]
        %v1372 = vld [vmem:[%s237 + $0x2158] sm:$0xff]
        %v1373 = vld [vmem:[%s237 + $0x2160] sm:$0xff]
        %v1374 = vld [vmem:[%s237 + $0x2168] sm:$0xff]
        %v1375 = vld [vmem:[%s237 + $0x2170] sm:$0xff]
        %v1376 = vld [vmem:[%s237 + $0x2178] sm:$0xff]
        %v1377 = vld [vmem:[%s237 + $0x2180] sm:$0xff]
        %v1378 = vld [vmem:[%s237 + $0x2188] sm:$0xff]
        %v1379 = vld [vmem:[%s237 + $0x2190] sm:$0xff]
        %v1380 = vld [vmem:[%s237 + $0x2198] sm:$0xff]
        %v1381 = vld [vmem:[%s237 + $0x21a0] sm:$0xff]
        %v1382 = vld [vmem:[%s237 + $0x21a8] sm:$0xff]
        %v1383 = vld [vmem:[%s237 + $0x21b0] sm:$0xff]
        %v1384 = vld [vmem:[%s237 + $0x21b8] sm:$0xff]
        %v1385 = vld [vmem:[%s237 + $0x21c0] sm:$0xff]
        %v1386 = vld [vmem:[%s237 + $0x21c8] sm:$0xff]
        %v1387 = vld [vmem:[%s237 + $0x21d0] sm:$0xff]
        %v1388 = vld [vmem:[%s237 + $0x21d8] sm:$0xff]
        %v1389 = vld [vmem:[%s237 + $0x21e0] sm:$0xff]
        %v1390 = vld [vmem:[%s237 + $0x21e8] sm:$0xff]
        %v1391 = vld [vmem:[%s237 + $0x21f0] sm:$0xff]
        %v1392 = vld [vmem:[%s237 + $0x21f8] sm:$0xff]
        %v1393 = vld [vmem:[%s237 + $0x2200] sm:$0xff]
        %v1394 = vld [vmem:[%s237 + $0x2208] sm:$0xff]
        %v1395 = vld [vmem:[%s237 + $0x2210] sm:$0xff]
        %v1396 = vld [vmem:[%s237 + $0x2218] sm:$0xff]
        %v1397 = vld [vmem:[%s237 + $0x2220] sm:$0xff]
        %v1398 = vld [vmem:[%s237 + $0x2228] sm:$0xff]
        %v1399 = vld [vmem:[%s237 + $0x2230] sm:$0xff]
        %v1400 = vld [vmem:[%s237 + $0x2238] sm:$0xff]
        %v1401 = vld [vmem:[%s237 + $0x2240] sm:$0xff]
        %v1402 = vld [vmem:[%s237 + $0x2248] sm:$0xff]
        %v1403 = vld [vmem:[%s237 + $0x2250] sm:$0xff]
        %v1404 = vld [vmem:[%s237 + $0x2258] sm:$0xff]
        %v1405 = vld [vmem:[%s237 + $0x2260] sm:$0xff]
        %v1406 = vld [vmem:[%s237 + $0x2268] sm:$0xff]
        %v1407 = vld [vmem:[%s237 + $0x2270] sm:$0xff]
        %v1408 = vld [vmem:[%s237 + $0x2278] sm:$0xff]
        %v1409 = vld [vmem:[%s237 + $0x2280] sm:$0xff]
        %v1410 = vld [vmem:[%s237 + $0x2288] sm:$0xff]
        %v1411 = vld [vmem:[%s237 + $0x2290] sm:$0xff]
        %v1412 = vld [vmem:[%s237 + $0x2298] sm:$0xff]
        %v1413 = vld [vmem:[%s237 + $0x22a0] sm:$0xff]
        %v1414 = vld [vmem:[%s237 + $0x22a8] sm:$0xff]
        %v1415 = vld [vmem:[%s237 + $0x22b0] sm:$0xff]
        %v1416 = vld [vmem:[%s237 + $0x22b8] sm:$0xff]
        %v1417 = vld [vmem:[%s237 + $0x22c0] sm:$0xff]
        %v1418 = vld [vmem:[%s237 + $0x22c8] sm:$0xff]
        %v1419 = vld [vmem:[%s237 + $0x22d0] sm:$0xff]
        %v1420 = vld [vmem:[%s237 + $0x22d8] sm:$0xff]
        %v1421 = vld [vmem:[%s237 + $0x22e0] sm:$0xff]
        %v1422 = vld [vmem:[%s237 + $0x22e8] sm:$0xff]
        %v1423 = vld [vmem:[%s237 + $0x22f0] sm:$0xff]
        %v1424 = vld [vmem:[%s237 + $0x22f8] sm:$0xff]
        %v1425 = vld [vmem:[%s237 + $0x2300] sm:$0xff]
        %v1426 = vld [vmem:[%s237 + $0x2308] sm:$0xff]
        %v1427 = vld [vmem:[%s237 + $0x2310] sm:$0xff]
        %v1428 = vld [vmem:[%s237 + $0x2318] sm:$0xff]
        %v1429 = vld [vmem:[%s237 + $0x2320] sm:$0xff]
        %v1430 = vld [vmem:[%s237 + $0x2328] sm:$0xff]
        %v1431 = vld [vmem:[%s237 + $0x2330] sm:$0xff]
        %v1432 = vld [vmem:[%s237 + $0x2338] sm:$0xff]
        %v1433 = vld [vmem:[%s237 + $0x2340] sm:$0xff]
        %v1434 = vld [vmem:[%s237 + $0x2348] sm:$0xff]
        %v1435 = vld [vmem:[%s237 + $0x2350] sm:$0xff]
        %v1436 = vld [vmem:[%s237 + $0x2358] sm:$0xff]
        %v1437 = vld [vmem:[%s237 + $0x2360] sm:$0xff]
        %v1438 = vld [vmem:[%s237 + $0x2368] sm:$0xff]
        %v1439 = vld [vmem:[%s237 + $0x2370] sm:$0xff]
        %v1440 = vld [vmem:[%s237 + $0x2378] sm:$0xff]
        %v1441 = vld [vmem:[%s237 + $0x2380] sm:$0xff]
        %v1442 = vld [vmem:[%s237 + $0x2388] sm:$0xff]
        %v1443 = vld [vmem:[%s237 + $0x2390] sm:$0xff]
        %v1444 = vld [vmem:[%s237 + $0x2398] sm:$0xff]
        %v1445 = vld [vmem:[%s237 + $0x23a0] sm:$0xff]
        %v1446 = vld [vmem:[%s237 + $0x23a8] sm:$0xff]
        %v1447 = vld [vmem:[%s237 + $0x23b0] sm:$0xff]
        %v1448 = vld [vmem:[%s237 + $0x23b8] sm:$0xff]
        %v1449 = vld [vmem:[%s237 + $0x23c0] sm:$0xff]
        %v1450 = vld [vmem:[%s237 + $0x23c8] sm:$0xff]
        %v1451 = vld [vmem:[%s237 + $0x23d0] sm:$0xff]
        %v1452 = vld [vmem:[%s237 + $0x23d8] sm:$0xff]
        %v1453 = vld [vmem:[%s237 + $0x23e0] sm:$0xff]
        %v1454 = vld [vmem:[%s237 + $0x23e8] sm:$0xff]
        %v1455 = vld [vmem:[%s237 + $0x23f0] sm:$0xff]
        %v1456 = vld [vmem:[%s237 + $0x23f8] sm:$0xff]
        %v1457 = vld [vmem:[%s237 + $0x2400] sm:$0xff]
        %v1458 = vld [vmem:[%s237 + $0x2408] sm:$0xff]
        %v1459 = vld [vmem:[%s237 + $0x2410] sm:$0xff]
        %v1460 = vld [vmem:[%s237 + $0x2418] sm:$0xff]
        %v1461 = vld [vmem:[%s237 + $0x2420] sm:$0xff]
        %v1462 = vld [vmem:[%s237 + $0x2428] sm:$0xff]
        %v1463 = vld [vmem:[%s237 + $0x2430] sm:$0xff]
        %v1464 = vld [vmem:[%s237 + $0x2438] sm:$0xff]
        %v1465 = vld [vmem:[%s237 + $0x2440] sm:$0xff]
        %v1466 = vld [vmem:[%s237 + $0x2448] sm:$0xff]
        %v1467 = vld [vmem:[%s237 + $0x2450] sm:$0xff]
        %v1468 = vld [vmem:[%s237 + $0x2458] sm:$0xff]
        %v1469 = vld [vmem:[%s237 + $0x2460] sm:$0xff]
        %v1470 = vld [vmem:[%s237 + $0x2468] sm:$0xff]
        %v1471 = vld [vmem:[%s237 + $0x2470] sm:$0xff]
        %v1472 = vld [vmem:[%s237 + $0x2478] sm:$0xff]
        %v1473 = vld [vmem:[%s237 + $0x2480] sm:$0xff]
        %v1474 = vld [vmem:[%s237 + $0x2488] sm:$0xff]
        %v1475 = vld [vmem:[%s237 + $0x2490] sm:$0xff]
        %v1476 = vld [vmem:[%s237 + $0x2498] sm:$0xff]
        %v1477 = vld [vmem:[%s237 + $0x24a0] sm:$0xff]
        %v1478 = vld [vmem:[%s237 + $0x24a8] sm:$0xff]
        %v1479 = vld [vmem:[%s237 + $0x24b0] sm:$0xff]
        %v1480 = vld [vmem:[%s237 + $0x24b8] sm:$0xff]
        %v1481 = vld [vmem:[%s237 + $0x24c0] sm:$0xff]
        %v1482 = vld [vmem:[%s237 + $0x24c8] sm:$0xff]
        %v1483 = vld [vmem:[%s237 + $0x24d0] sm:$0xff]
        %v1484 = vld [vmem:[%s237 + $0x24d8] sm:$0xff]
        %v1485 = vld [vmem:[%s237 + $0x24e0] sm:$0xff]
        %v1486 = vld [vmem:[%s237 + $0x24e8] sm:$0xff]
        %v1487 = vld [vmem:[%s237 + $0x24f0] sm:$0xff]
        %v1488 = vld [vmem:[%s237 + $0x24f8] sm:$0xff]
        %v1489 = vld [vmem:[%s237 + $0x2500] sm:$0xff]
        %v1490 = vld [vmem:[%s237 + $0x2508] sm:$0xff]
        %v1491 = vld [vmem:[%s237 + $0x2510] sm:$0xff]
        %v1492 = vld [vmem:[%s237 + $0x2518] sm:$0xff]
        %v1493 = vld [vmem:[%s237 + $0x2520] sm:$0xff]
        %v1494 = vld [vmem:[%s237 + $0x2528] sm:$0xff]
        %v1495 = vld [vmem:[%s237 + $0x2530] sm:$0xff]
        %v1496 = vld [vmem:[%s237 + $0x2538] sm:$0xff]
        %v1497 = vld [vmem:[%s237 + $0x2540] sm:$0xff]
        %v1498 = vld [vmem:[%s237 + $0x2548] sm:$0xff]
        %v1499 = vld [vmem:[%s237 + $0x2550] sm:$0xff]
        %v1500 = vld [vmem:[%s237 + $0x2558] sm:$0xff]
        %v1501 = vld [vmem:[%s237 + $0x2560] sm:$0xff]
        %v1502 = vld [vmem:[%s237 + $0x2568] sm:$0xff]
        %v1503 = vld [vmem:[%s237 + $0x2570] sm:$0xff]
        %v1504 = vld [vmem:[%s237 + $0x2578] sm:$0xff]
        %v1505 = vld [vmem:[%s237 + $0x2580] sm:$0xff]
        %v1506 = vld [vmem:[%s237 + $0x2588] sm:$0xff]
        %v1507 = vld [vmem:[%s237 + $0x2590] sm:$0xff]
        %v1508 = vld [vmem:[%s237 + $0x2598] sm:$0xff]
        %v1509 = vld [vmem:[%s237 + $0x25a0] sm:$0xff]
        %v1510 = vld [vmem:[%s237 + $0x25a8] sm:$0xff]
        %v1511 = vld [vmem:[%s237 + $0x25b0] sm:$0xff]
        %v1512 = vld [vmem:[%s237 + $0x25b8] sm:$0xff]
        %v1513 = vld [vmem:[%s237 + $0x25c0] sm:$0xff]
        %v1514 = vld [vmem:[%s237 + $0x25c8] sm:$0xff]
        %v1515 = vld [vmem:[%s237 + $0x25d0] sm:$0xff]
        %v1516 = vld [vmem:[%s237 + $0x25d8] sm:$0xff]
        %v1517 = vld [vmem:[%s237 + $0x25e0] sm:$0xff]
        %v1518 = vld [vmem:[%s237 + $0x25e8] sm:$0xff]
        %v1519 = vld [vmem:[%s237 + $0x25f0] sm:$0xff]
        %v1520 = vld [vmem:[%s237 + $0x25f8] sm:$0xff]
        %v1521 = vld [vmem:[%s237 + $0x2600] sm:$0xff]
        %v1522 = vld [vmem:[%s237 + $0x2608] sm:$0xff]
        %v1523 = vld [vmem:[%s237 + $0x2610] sm:$0xff]
        %v1524 = vld [vmem:[%s237 + $0x2618] sm:$0xff]
        %v1525 = vld [vmem:[%s237 + $0x2620] sm:$0xff]
        %v1526 = vld [vmem:[%s237 + $0x2628] sm:$0xff]
        %v1527 = vld [vmem:[%s237 + $0x2630] sm:$0xff]
        %v1528 = vld [vmem:[%s237 + $0x2638] sm:$0xff]
        %v1529 = vld [vmem:[%s237 + $0x2640] sm:$0xff]
        %v1530 = vld [vmem:[%s237 + $0x2648] sm:$0xff]
        %v1531 = vld [vmem:[%s237 + $0x2650] sm:$0xff]
        %v1532 = vld [vmem:[%s237 + $0x2658] sm:$0xff]
        %v1533 = vld [vmem:[%s237 + $0x2660] sm:$0xff]
        %v1534 = vld [vmem:[%s237 + $0x2668] sm:$0xff]
        %v1535 = vld [vmem:[%s237 + $0x2670] sm:$0xff]
        %v1536 = vld [vmem:[%s237 + $0x2678] sm:$0xff]
        %v1537 = vld [vmem:[%s237 + $0x2680] sm:$0xff]
        %v1538 = vld [vmem:[%s237 + $0x2688] sm:$0xff]
        %v1539 = vld [vmem:[%s237 + $0x2690] sm:$0xff]
        %v1540 = vld [vmem:[%s237 + $0x2698] sm:$0xff]
        %v1541 = vld [vmem:[%s237 + $0x26a0] sm:$0xff]
        %v1542 = vld [vmem:[%s237 + $0x26a8] sm:$0xff]
        %v1543 = vld [vmem:[%s237 + $0x26b0] sm:$0xff]
        %v1544 = vld [vmem:[%s237 + $0x26b8] sm:$0xff]
        %v1545 = vld [vmem:[%s237 + $0x26c0] sm:$0xff]
        %v1546 = vld [vmem:[%s237 + $0x26c8] sm:$0xff]
        %v1547 = vld [vmem:[%s237 + $0x26d0] sm:$0xff]
        %v1548 = vld [vmem:[%s237 + $0x26d8] sm:$0xff]
        %v1549 = vld [vmem:[%s237 + $0x26e0] sm:$0xff]
        %v1550 = vld [vmem:[%s237 + $0x26e8] sm:$0xff]
        %v1551 = vld [vmem:[%s237 + $0x26f0] sm:$0xff]
        %v1552 = vld [vmem:[%s237 + $0x26f8] sm:$0xff]
        %v1553 = vld [vmem:[%s237 + $0x2700] sm:$0xff]
        %v1554 = vld [vmem:[%s237 + $0x2708] sm:$0xff]
        %v1555 = vld [vmem:[%s237 + $0x2710] sm:$0xff]
        %v1556 = vld [vmem:[%s237 + $0x2718] sm:$0xff]
        %v1557 = vld [vmem:[%s237 + $0x2720] sm:$0xff]
        %v1558 = vld [vmem:[%s237 + $0x2728] sm:$0xff]
        %v1559 = vld [vmem:[%s237 + $0x2730] sm:$0xff]
        %v1560 = vld [vmem:[%s237 + $0x2738] sm:$0xff]
        %v1561 = vld [vmem:[%s237 + $0x2740] sm:$0xff]
        %v1562 = vld [vmem:[%s237 + $0x2748] sm:$0xff]
        %v1563 = vld [vmem:[%s237 + $0x2750] sm:$0xff]
        %v1564 = vld [vmem:[%s237 + $0x2758] sm:$0xff]
        %v1565 = vld [vmem:[%s237 + $0x2760] sm:$0xff]
        %v1566 = vld [vmem:[%s237 + $0x2768] sm:$0xff]
        %v1567 = vld [vmem:[%s237 + $0x2770] sm:$0xff]
        %v1568 = vld [vmem:[%s237 + $0x2778] sm:$0xff]
        %v1569 = vld [vmem:[%s237 + $0x2780] sm:$0xff]
        %v1570 = vld [vmem:[%s237 + $0x2788] sm:$0xff]
        %v1571 = vld [vmem:[%s237 + $0x2790] sm:$0xff]
        %v1572 = vld [vmem:[%s237 + $0x2798] sm:$0xff]
        %v1573 = vld [vmem:[%s237 + $0x27a0] sm:$0xff]
        %v1574 = vld [vmem:[%s237 + $0x27a8] sm:$0xff]
        %v1575 = vld [vmem:[%s237 + $0x27b0] sm:$0xff]
        %v1576 = vld [vmem:[%s237 + $0x27b8] sm:$0xff]
        %v1577 = vld [vmem:[%s237 + $0x27c0] sm:$0xff]
        %v1578 = vld [vmem:[%s237 + $0x27c8] sm:$0xff]
        %v1579 = vld [vmem:[%s237 + $0x27d0] sm:$0xff]
        %v1580 = vld [vmem:[%s237 + $0x27d8] sm:$0xff]
        %v1581 = vld [vmem:[%s237 + $0x27e0] sm:$0xff]
        %v1582 = vld [vmem:[%s237 + $0x27e8] sm:$0xff]
        %v1583 = vld [vmem:[%s237 + $0x27f0] sm:$0xff]
        %v1584 = vld [vmem:[%s237 + $0x27f8] sm:$0xff]
        %v1585 = vld [vmem:[%s237 + $0x2800] sm:$0xff]
        %v1586 = vld [vmem:[%s237 + $0x2808] sm:$0xff]
        %v1587 = vld [vmem:[%s237 + $0x2810] sm:$0xff]
        %v1588 = vld [vmem:[%s237 + $0x2818] sm:$0xff]
        %v1589 = vld [vmem:[%s237 + $0x2820] sm:$0xff]
        %v1590 = vld [vmem:[%s237 + $0x2828] sm:$0xff]
        %v1591 = vld [vmem:[%s237 + $0x2830] sm:$0xff]
        %v1592 = vld [vmem:[%s237 + $0x2838] sm:$0xff]
        %v1593 = vld [vmem:[%s237 + $0x2840] sm:$0xff]
        %v1594 = vld [vmem:[%s237 + $0x2848] sm:$0xff]
        %v1595 = vld [vmem:[%s237 + $0x2850] sm:$0xff]
        %v1596 = vld [vmem:[%s237 + $0x2858] sm:$0xff]
        %v1597 = vld [vmem:[%s237 + $0x2860] sm:$0xff]
        %v1598 = vld [vmem:[%s237 + $0x2868] sm:$0xff]
        %v1599 = vld [vmem:[%s237 + $0x2870] sm:$0xff]
        %v1600 = vld [vmem:[%s237 + $0x2878] sm:$0xff]
        %v1601 = vld [vmem:[%s237 + $0x2880] sm:$0xff]
        %v1602 = vld [vmem:[%s237 + $0x2888] sm:$0xff]
        %v1603 = vld [vmem:[%s237 + $0x2890] sm:$0xff]
        %v1604 = vld [vmem:[%s237 + $0x2898] sm:$0xff]
        %v1605 = vld [vmem:[%s237 + $0x28a0] sm:$0xff]
        %v1606 = vld [vmem:[%s237 + $0x28a8] sm:$0xff]
        %v1607 = vld [vmem:[%s237 + $0x28b0] sm:$0xff]
        %v1608 = vld [vmem:[%s237 + $0x28b8] sm:$0xff]
        %v1609 = vld [vmem:[%s237 + $0x28c0] sm:$0xff]
        %v1610 = vld [vmem:[%s237 + $0x28c8] sm:$0xff]
        %v1611 = vld [vmem:[%s237 + $0x28d0] sm:$0xff]
        %v1612 = vld [vmem:[%s237 + $0x28d8] sm:$0xff]
        %v1613 = vld [vmem:[%s237 + $0x28e0] sm:$0xff]
        %v1614 = vld [vmem:[%s237 + $0x28e8] sm:$0xff]
        %v1615 = vld [vmem:[%s237 + $0x28f0] sm:$0xff]
        %v1616 = vld [vmem:[%s237 + $0x28f8] sm:$0xff]
        %v1617 = vld [vmem:[%s237 + $0x2900] sm:$0xff]
        %v1618 = vld [vmem:[%s237 + $0x2908] sm:$0xff]
        %v1619 = vld [vmem:[%s237 + $0x2910] sm:$0xff]
        %v1620 = vld [vmem:[%s237 + $0x2918] sm:$0xff]
        %v1621 = vld [vmem:[%s237 + $0x2920] sm:$0xff]
        %v1622 = vld [vmem:[%s237 + $0x2928] sm:$0xff]
        %v1623 = vld [vmem:[%s237 + $0x2930] sm:$0xff]
        %v1624 = vld [vmem:[%s237 + $0x2938] sm:$0xff]
        %v1625 = vld [vmem:[%s237 + $0x2940] sm:$0xff]
        %v1626 = vld [vmem:[%s237 + $0x2948] sm:$0xff]
        %v1627 = vld [vmem:[%s237 + $0x2950] sm:$0xff]
        %v1628 = vld [vmem:[%s237 + $0x2958] sm:$0xff]
        %v1629 = vld [vmem:[%s237 + $0x2960] sm:$0xff]
        %v1630 = vld [vmem:[%s237 + $0x2968] sm:$0xff]
        %v1631 = vld [vmem:[%s237 + $0x2970] sm:$0xff]
        %v1632 = vld [vmem:[%s237 + $0x2978] sm:$0xff]
        %v1633 = vld [vmem:[%s237 + $0x2980] sm:$0xff]
        %v1634 = vld [vmem:[%s237 + $0x2988] sm:$0xff]
        %v1635 = vld [vmem:[%s237 + $0x2990] sm:$0xff]
        %v1636 = vld [vmem:[%s237 + $0x2998] sm:$0xff]
        %v1637 = vld [vmem:[%s237 + $0x29a0] sm:$0xff]
        %v1638 = vld [vmem:[%s237 + $0x29a8] sm:$0xff]
        %v1639 = vld [vmem:[%s237 + $0x29b0] sm:$0xff]
        %v1640 = vld [vmem:[%s237 + $0x29b8] sm:$0xff]
        %v1641 = vld [vmem:[%s237 + $0x29c0] sm:$0xff]
        %v1642 = vld [vmem:[%s237 + $0x29c8] sm:$0xff]
        %v1643 = vld [vmem:[%s237 + $0x29d0] sm:$0xff]
        %v1644 = vld [vmem:[%s237 + $0x29d8] sm:$0xff]
        %v1645 = vld [vmem:[%s237 + $0x29e0] sm:$0xff]
        %v1646 = vld [vmem:[%s237 + $0x29e8] sm:$0xff]
        %v1647 = vld [vmem:[%s237 + $0x29f0] sm:$0xff]
        %v1648 = vld [vmem:[%s237 + $0x29f8] sm:$0xff]
        %v1649 = vld [vmem:[%s237 + $0x2a00] sm:$0xff]
        %v1650 = vld [vmem:[%s237 + $0x2a08] sm:$0xff]
        %v1651 = vld [vmem:[%s237 + $0x2a10] sm:$0xff]
        %v1652 = vld [vmem:[%s237 + $0x2a18] sm:$0xff]
        %v1653 = vld [vmem:[%s237 + $0x2a20] sm:$0xff]
        %v1654 = vld [vmem:[%s237 + $0x2a28] sm:$0xff]
        %v1655 = vld [vmem:[%s237 + $0x2a30] sm:$0xff]
        %v1656 = vld [vmem:[%s237 + $0x2a38] sm:$0xff]
        %v1657 = vld [vmem:[%s237 + $0x2a40] sm:$0xff]
        %v1658 = vld [vmem:[%s237 + $0x2a48] sm:$0xff]
        %v1659 = vld [vmem:[%s237 + $0x2a50] sm:$0xff]
        %v1660 = vld [vmem:[%s237 + $0x2a58] sm:$0xff]
        %v1661 = vld [vmem:[%s237 + $0x2a60] sm:$0xff]
        %v1662 = vld [vmem:[%s237 + $0x2a68] sm:$0xff]
        %v1663 = vld [vmem:[%s237 + $0x2a70] sm:$0xff]
        %v1664 = vld [vmem:[%s237 + $0x2a78] sm:$0xff]
        %v1665 = vld [vmem:[%s237 + $0x2a80] sm:$0xff]
        %v1666 = vld [vmem:[%s237 + $0x2a88] sm:$0xff]
        %v1667 = vld [vmem:[%s237 + $0x2a90] sm:$0xff]
        %v1668 = vld [vmem:[%s237 + $0x2a98] sm:$0xff]
        %v1669 = vld [vmem:[%s237 + $0x2aa0] sm:$0xff]
        %v1670 = vld [vmem:[%s237 + $0x2aa8] sm:$0xff]
        %v1671 = vld [vmem:[%s237 + $0x2ab0] sm:$0xff]
        %v1672 = vld [vmem:[%s237 + $0x2ab8] sm:$0xff]
        %v1673 = vld [vmem:[%s237 + $0x2ac0] sm:$0xff]
        %v1674 = vld [vmem:[%s237 + $0x2ac8] sm:$0xff]
        %v1675 = vld [vmem:[%s237 + $0x2ad0] sm:$0xff]
        %v1676 = vld [vmem:[%s237 + $0x2ad8] sm:$0xff]
        %v1677 = vld [vmem:[%s237 + $0x2ae0] sm:$0xff]
        %v1678 = vld [vmem:[%s237 + $0x2ae8] sm:$0xff]
        %v1679 = vld [vmem:[%s237 + $0x2af0] sm:$0xff]
        %v1680 = vld [vmem:[%s237 + $0x2af8] sm:$0xff]
        %v1681 = vld [vmem:[%s237 + $0x2b00] sm:$0xff]
        %v1682 = vld [vmem:[%s237 + $0x2b08] sm:$0xff]
        %v1683 = vld [vmem:[%s237 + $0x2b10] sm:$0xff]
        %v1684 = vld [vmem:[%s237 + $0x2b18] sm:$0xff]
        %v1685 = vld [vmem:[%s237 + $0x2b20] sm:$0xff]
        %v1686 = vld [vmem:[%s237 + $0x2b28] sm:$0xff]
        %v1687 = vld [vmem:[%s237 + $0x2b30] sm:$0xff]
        %v1688 = vld [vmem:[%s237 + $0x2b38] sm:$0xff]
        %v1689 = vld [vmem:[%s237 + $0x2b40] sm:$0xff]
        %v1690 = vld [vmem:[%s237 + $0x2b48] sm:$0xff]
        %v1691 = vld [vmem:[%s237 + $0x2b50] sm:$0xff]
        %v1692 = vld [vmem:[%s237 + $0x2b58] sm:$0xff]
        %v1693 = vld [vmem:[%s237 + $0x2b60] sm:$0xff]
        %v1694 = vld [vmem:[%s237 + $0x2b68] sm:$0xff]
        %v1695 = vld [vmem:[%s237 + $0x2b70] sm:$0xff]
        %v1696 = vld [vmem:[%s237 + $0x2b78] sm:$0xff]
        %v1697 = vld [vmem:[%s237 + $0x2b80] sm:$0xff]
        %v1698 = vld [vmem:[%s237 + $0x2b88] sm:$0xff]
        %v1699 = vld [vmem:[%s237 + $0x2b90] sm:$0xff]
        %v1700 = vld [vmem:[%s237 + $0x2b98] sm:$0xff]
        %v1701 = vld [vmem:[%s237 + $0x2ba0] sm:$0xff]
        %v1702 = vld [vmem:[%s237 + $0x2ba8] sm:$0xff]
        %v1703 = vld [vmem:[%s237 + $0x2bb0] sm:$0xff]
        %v1704 = vld [vmem:[%s237 + $0x2bb8] sm:$0xff]
        %v1705 = vld [vmem:[%s237 + $0x2bc0] sm:$0xff]
        %v1706 = vld [vmem:[%s237 + $0x2bc8] sm:$0xff]
        %v1707 = vld [vmem:[%s237 + $0x2bd0] sm:$0xff]
        %v1708 = vld [vmem:[%s237 + $0x2bd8] sm:$0xff]
        %v1709 = vld [vmem:[%s237 + $0x2be0] sm:$0xff]
        %v1710 = vld [vmem:[%s237 + $0x2be8] sm:$0xff]
        %v1711 = vld [vmem:[%s237 + $0x2bf0] sm:$0xff]
        %v1712 = vld [vmem:[%s237 + $0x2bf8] sm:$0xff]
        %v1713 = vld [vmem:[%s237 + $0x2c00] sm:$0xff]
        %v1714 = vld [vmem:[%s237 + $0x2c08] sm:$0xff]
        %v1715 = vld [vmem:[%s237 + $0x2c10] sm:$0xff]
        %v1716 = vld [vmem:[%s237 + $0x2c18] sm:$0xff]
        %v1717 = vld [vmem:[%s237 + $0x2c20] sm:$0xff]
        %v1718 = vld [vmem:[%s237 + $0x2c28] sm:$0xff]
        %v1719 = vld [vmem:[%s237 + $0x2c30] sm:$0xff]
        %v1720 = vld [vmem:[%s237 + $0x2c38] sm:$0xff]
        %v1721 = vld [vmem:[%s237 + $0x2c40] sm:$0xff]
        %v1722 = vld [vmem:[%s237 + $0x2c48] sm:$0xff]
        %v1723 = vld [vmem:[%s237 + $0x2c50] sm:$0xff]
        %v1724 = vld [vmem:[%s237 + $0x2c58] sm:$0xff]
        %v1725 = vld [vmem:[%s237 + $0x2c60] sm:$0xff]
        %v1726 = vld [vmem:[%s237 + $0x2c68] sm:$0xff]
        %v1727 = vld [vmem:[%s237 + $0x2c70] sm:$0xff]
        %v1728 = vld [vmem:[%s237 + $0x2c78] sm:$0xff]
        %v1729 = vld [vmem:[%s237 + $0x2c80] sm:$0xff]
        %v1730 = vld [vmem:[%s237 + $0x2c88] sm:$0xff]
        %v1731 = vld [vmem:[%s237 + $0x2c90] sm:$0xff]
        %v1732 = vld [vmem:[%s237 + $0x2c98] sm:$0xff]
        %v1733 = vld [vmem:[%s237 + $0x2ca0] sm:$0xff]
        %v1734 = vld [vmem:[%s237 + $0x2ca8] sm:$0xff]
        %v1735 = vld [vmem:[%s237 + $0x2cb0] sm:$0xff]
        %v1736 = vld [vmem:[%s237 + $0x2cb8] sm:$0xff]
        %v1737 = vld [vmem:[%s237 + $0x2cc0] sm:$0xff]
        %v1738 = vld [vmem:[%s237 + $0x2cc8] sm:$0xff]
        %v1739 = vld [vmem:[%s237 + $0x2cd0] sm:$0xff]
        %v1740 = vld [vmem:[%s237 + $0x2cd8] sm:$0xff]
        %v1741 = vld [vmem:[%s237 + $0x2ce0] sm:$0xff]
        %v1742 = vld [vmem:[%s237 + $0x2ce8] sm:$0xff]
        %v1743 = vld [vmem:[%s237 + $0x2cf0] sm:$0xff]
        %v1744 = vld [vmem:[%s237 + $0x2cf8] sm:$0xff]
        %v1745 = vld [vmem:[%s237 + $0x2d00] sm:$0xff]
        %v1746 = vld [vmem:[%s237 + $0x2d08] sm:$0xff]
        %v1747 = vld [vmem:[%s237 + $0x2d10] sm:$0xff]
        %v1748 = vld [vmem:[%s237 + $0x2d18] sm:$0xff]
        %v1749 = vld [vmem:[%s237 + $0x2d20] sm:$0xff]
        %v1750 = vld [vmem:[%s237 + $0x2d28] sm:$0xff]
        %v1751 = vld [vmem:[%s237 + $0x2d30] sm:$0xff]
        %v1752 = vld [vmem:[%s237 + $0x2d38] sm:$0xff]
        %v1753 = vld [vmem:[%s237 + $0x2d40] sm:$0xff]
        %v1754 = vld [vmem:[%s237 + $0x2d48] sm:$0xff]
        %v1755 = vld [vmem:[%s237 + $0x2d50] sm:$0xff]
        %v1756 = vld [vmem:[%s237 + $0x2d58] sm:$0xff]
        %v1757 = vld [vmem:[%s237 + $0x2d60] sm:$0xff]
        %v1758 = vld [vmem:[%s237 + $0x2d68] sm:$0xff]
        %v1759 = vld [vmem:[%s237 + $0x2d70] sm:$0xff]
        %v1760 = vld [vmem:[%s237 + $0x2d78] sm:$0xff]
        %v1761 = vld [vmem:[%s237 + $0x2d80] sm:$0xff]
        %v1762 = vld [vmem:[%s237 + $0x2d88] sm:$0xff]
        %v1763 = vld [vmem:[%s237 + $0x2d90] sm:$0xff]
        %v1764 = vld [vmem:[%s237 + $0x2d98] sm:$0xff]
        %v1765 = vld [vmem:[%s237 + $0x2da0] sm:$0xff]
        %v1766 = vld [vmem:[%s237 + $0x2da8] sm:$0xff]
        %v1767 = vld [vmem:[%s237 + $0x2db0] sm:$0xff]
        %v1768 = vld [vmem:[%s237 + $0x2db8] sm:$0xff]
        %v1769 = vld [vmem:[%s237 + $0x2dc0] sm:$0xff]
        %v1770 = vld [vmem:[%s237 + $0x2dc8] sm:$0xff]
        %v1771 = vld [vmem:[%s237 + $0x2dd0] sm:$0xff]
        %v1772 = vld [vmem:[%s237 + $0x2dd8] sm:$0xff]
        %v1773 = vld [vmem:[%s237 + $0x2de0] sm:$0xff]
        %v1774 = vld [vmem:[%s237 + $0x2de8] sm:$0xff]
        %v1775 = vld [vmem:[%s237 + $0x2df0] sm:$0xff]
        %v1776 = vld [vmem:[%s237 + $0x2df8] sm:$0xff]
        %v1777 = vld [vmem:[%s237 + $0x2e00] sm:$0xff]
        %v1778 = vld [vmem:[%s237 + $0x2e08] sm:$0xff]
        %v1779 = vld [vmem:[%s237 + $0x2e10] sm:$0xff]
        %v1780 = vld [vmem:[%s237 + $0x2e18] sm:$0xff]
        %v1781 = vld [vmem:[%s237 + $0x2e20] sm:$0xff]
        %v1782 = vld [vmem:[%s237 + $0x2e28] sm:$0xff]
        %v1783 = vld [vmem:[%s237 + $0x2e30] sm:$0xff]
        %v1784 = vld [vmem:[%s237 + $0x2e38] sm:$0xff]
        %v1785 = vld [vmem:[%s237 + $0x2e40] sm:$0xff]
        %v1786 = vld [vmem:[%s237 + $0x2e48] sm:$0xff]
        %v1787 = vld [vmem:[%s237 + $0x2e50] sm:$0xff]
        %v1788 = vld [vmem:[%s237 + $0x2e58] sm:$0xff]
        %v1789 = vld [vmem:[%s237 + $0x2e60] sm:$0xff]
        %v1790 = vld [vmem:[%s237 + $0x2e68] sm:$0xff]
        %v1791 = vld [vmem:[%s237 + $0x2e70] sm:$0xff]
        %v1792 = vld [vmem:[%s237 + $0x2e78] sm:$0xff]
        %v1793 = vld [vmem:[%s237 + $0x2e80] sm:$0xff]
        %v1794 = vld [vmem:[%s237 + $0x2e88] sm:$0xff]
        %v1795 = vld [vmem:[%s237 + $0x2e90] sm:$0xff]
        %v1796 = vld [vmem:[%s237 + $0x2e98] sm:$0xff]
        %v1797 = vld [vmem:[%s237 + $0x2ea0] sm:$0xff]
        %v1798 = vld [vmem:[%s237 + $0x2ea8] sm:$0xff]
        %v1799 = vld [vmem:[%s237 + $0x2eb0] sm:$0xff]
        %v1800 = vld [vmem:[%s237 + $0x2eb8] sm:$0xff]
        %v1801 = vld [vmem:[%s237 + $0x2ec0] sm:$0xff]
        %v1802 = vld [vmem:[%s237 + $0x2ec8] sm:$0xff]
        %v1803 = vld [vmem:[%s237 + $0x2ed0] sm:$0xff]
        %v1804 = vld [vmem:[%s237 + $0x2ed8] sm:$0xff]
        %v1805 = vld [vmem:[%s237 + $0x2ee0] sm:$0xff]
        %v1806 = vld [vmem:[%s237 + $0x2ee8] sm:$0xff]
        %v1807 = vld [vmem:[%s237 + $0x2ef0] sm:$0xff]
        %v1808 = vld [vmem:[%s237 + $0x2ef8] sm:$0xff]
        %v1809 = vld [vmem:[%s237 + $0x2f00] sm:$0xff]
        %v1810 = vld [vmem:[%s237 + $0x2f08] sm:$0xff]
        %v1811 = vld [vmem:[%s237 + $0x2f10] sm:$0xff]
        %v1812 = vld [vmem:[%s237 + $0x2f18] sm:$0xff]
        %v1813 = vld [vmem:[%s237 + $0x2f20] sm:$0xff]
        %v1814 = vld [vmem:[%s237 + $0x2f28] sm:$0xff]
        %v1815 = vld [vmem:[%s237 + $0x2f30] sm:$0xff]
        %v1816 = vld [vmem:[%s237 + $0x2f38] sm:$0xff]
        %v1817 = vld [vmem:[%s237 + $0x2f40] sm:$0xff]
        %v1818 = vld [vmem:[%s237 + $0x2f48] sm:$0xff]
        %v1819 = vld [vmem:[%s237 + $0x2f50] sm:$0xff]
        %v1820 = vld [vmem:[%s237 + $0x2f58] sm:$0xff]
        %v1821 = vld [vmem:[%s237 + $0x2f60] sm:$0xff]
        %v1822 = vld [vmem:[%s237 + $0x2f68] sm:$0xff]
        %v1823 = vld [vmem:[%s237 + $0x2f70] sm:$0xff]
        %v1824 = vld [vmem:[%s237 + $0x2f78] sm:$0xff]
        %v1825 = vld [vmem:[%s237 + $0x2f80] sm:$0xff]
        %v1826 = vld [vmem:[%s237 + $0x2f88] sm:$0xff]
        %v1827 = vld [vmem:[%s237 + $0x2f90] sm:$0xff]
        %v1828 = vld [vmem:[%s237 + $0x2f98] sm:$0xff]
        %v1829 = vld [vmem:[%s237 + $0x2fa0] sm:$0xff]
        %v1830 = vld [vmem:[%s237 + $0x2fa8] sm:$0xff]
        %v1831 = vld [vmem:[%s237 + $0x2fb0] sm:$0xff]
        %v1832 = vld [vmem:[%s237 + $0x2fb8] sm:$0xff]
        %v1833 = vld [vmem:[%s237 + $0x2fc0] sm:$0xff]
        %v1834 = vld [vmem:[%s237 + $0x2fc8] sm:$0xff]
        %v1835 = vld [vmem:[%s237 + $0x2fd0] sm:$0xff]
        %v1836 = vld [vmem:[%s237 + $0x2fd8] sm:$0xff]
        %v1837 = vld [vmem:[%s237 + $0x2fe0] sm:$0xff]
        %v1838 = vld [vmem:[%s237 + $0x2fe8] sm:$0xff]
        %v1839 = vld [vmem:[%s237 + $0x2ff0] sm:$0xff]
        %v1840 = vld [vmem:[%s237 + $0x2ff8] sm:$0xff]
        %v1841 = vld [vmem:[%s237 + $0x3000] sm:$0xff]
        %v1842 = vld [vmem:[%s237 + $0x3008] sm:$0xff]
        %v1843 = vld [vmem:[%s237 + $0x3010] sm:$0xff]
        %v1844 = vld [vmem:[%s237 + $0x3018] sm:$0xff]
        %v1845 = vld [vmem:[%s237 + $0x3020] sm:$0xff]
        %v1846 = vld [vmem:[%s237 + $0x3028] sm:$0xff]
        %v1847 = vld [vmem:[%s237 + $0x3030] sm:$0xff]
        %v1848 = vld [vmem:[%s237 + $0x3038] sm:$0xff]
        %v1849 = vld [vmem:[%s237 + $0x3040] sm:$0xff]
        %v1850 = vld [vmem:[%s237 + $0x3048] sm:$0xff]
        %v1851 = vld [vmem:[%s237 + $0x3050] sm:$0xff]
        %v1852 = vld [vmem:[%s237 + $0x3058] sm:$0xff]
        %v1853 = vld [vmem:[%s237 + $0x3060] sm:$0xff]
        %v1854 = vld [vmem:[%s237 + $0x3068] sm:$0xff]
        %v1855 = vld [vmem:[%s237 + $0x3070] sm:$0xff]
        %v1856 = vld [vmem:[%s237 + $0x3078] sm:$0xff]
        %v1857 = vld [vmem:[%s237 + $0x3080] sm:$0xff]
        %v1858 = vld [vmem:[%s237 + $0x3088] sm:$0xff]
        %v1859 = vld [vmem:[%s237 + $0x3090] sm:$0xff]
        %v1860 = vld [vmem:[%s237 + $0x3098] sm:$0xff]
        %v1861 = vld [vmem:[%s237 + $0x30a0] sm:$0xff]
        %v1862 = vld [vmem:[%s237 + $0x30a8] sm:$0xff]
        %v1863 = vld [vmem:[%s237 + $0x30b0] sm:$0xff]
        %v1864 = vld [vmem:[%s237 + $0x30b8] sm:$0xff]
        %v1865 = vld [vmem:[%s237 + $0x30c0] sm:$0xff]
        %v1866 = vld [vmem:[%s237 + $0x30c8] sm:$0xff]
        %v1867 = vld [vmem:[%s237 + $0x30d0] sm:$0xff]
        %v1868 = vld [vmem:[%s237 + $0x30d8] sm:$0xff]
        %v1869 = vld [vmem:[%s237 + $0x30e0] sm:$0xff]
        %v1870 = vld [vmem:[%s237 + $0x30e8] sm:$0xff]
        %v1871 = vld [vmem:[%s237 + $0x30f0] sm:$0xff]
        %v1872 = vld [vmem:[%s237 + $0x30f8] sm:$0xff]
        %v1873 = vld [vmem:[%s237 + $0x3100] sm:$0xff]
        %v1874 = vld [vmem:[%s237 + $0x3108] sm:$0xff]
        %v1875 = vld [vmem:[%s237 + $0x3110] sm:$0xff]
        %v1876 = vld [vmem:[%s237 + $0x3118] sm:$0xff]
        %v1877 = vld [vmem:[%s237 + $0x3120] sm:$0xff]
        %v1878 = vld [vmem:[%s237 + $0x3128] sm:$0xff]
        %v1879 = vld [vmem:[%s237 + $0x3130] sm:$0xff]
        %v1880 = vld [vmem:[%s237 + $0x3138] sm:$0xff]
        %v1881 = vld [vmem:[%s237 + $0x3140] sm:$0xff]
        %v1882 = vld [vmem:[%s237 + $0x3148] sm:$0xff]
        %v1883 = vld [vmem:[%s237 + $0x3150] sm:$0xff]
        %v1884 = vld [vmem:[%s237 + $0x3158] sm:$0xff]
        %v1885 = vld [vmem:[%s237 + $0x3160] sm:$0xff]
        %v1886 = vld [vmem:[%s237 + $0x3168] sm:$0xff]
        %v1887 = vld [vmem:[%s237 + $0x3170] sm:$0xff]
        %v1888 = vld [vmem:[%s237 + $0x3178] sm:$0xff]
        %v1889 = vld [vmem:[%s237 + $0x3180] sm:$0xff]
        %v1890 = vld [vmem:[%s237 + $0x3188] sm:$0xff]
        %v1891 = vld [vmem:[%s237 + $0x3190] sm:$0xff]
        %v1892 = vld [vmem:[%s237 + $0x3198] sm:$0xff]
        %v1893 = vld [vmem:[%s237 + $0x31a0] sm:$0xff]
        %v1894 = vld [vmem:[%s237 + $0x31a8] sm:$0xff]
        %v1895 = vld [vmem:[%s237 + $0x31b0] sm:$0xff]
        %v1896 = vld [vmem:[%s237 + $0x31b8] sm:$0xff]
        %v1897 = vld [vmem:[%s237 + $0x31c0] sm:$0xff]
        %v1898 = vld [vmem:[%s237 + $0x31c8] sm:$0xff]
        %v1899 = vld [vmem:[%s237 + $0x31d0] sm:$0xff]
        %v1900 = vld [vmem:[%s237 + $0x31d8] sm:$0xff]
        %v1901 = vld [vmem:[%s237 + $0x31e0] sm:$0xff]
        %v1902 = vld [vmem:[%s237 + $0x31e8] sm:$0xff]
        %v1903 = vld [vmem:[%s237 + $0x31f0] sm:$0xff]
        %v1904 = vld [vmem:[%s237 + $0x31f8] sm:$0xff]
        %v1905 = vld [vmem:[%s237 + $0x3200] sm:$0xff]
        %v1906 = vld [vmem:[%s237 + $0x3208] sm:$0xff]
        %v1907 = vld [vmem:[%s237 + $0x3210] sm:$0xff]
        %v1908 = vld [vmem:[%s237 + $0x3218] sm:$0xff]
        %v1909 = vld [vmem:[%s237 + $0x3220] sm:$0xff]
        %v1910 = vld [vmem:[%s237 + $0x3228] sm:$0xff]
        %v1911 = vld [vmem:[%s237 + $0x3230] sm:$0xff]
        %v1912 = vld [vmem:[%s237 + $0x3238] sm:$0xff]
        %v1913 = vld [vmem:[%s237 + $0x3240] sm:$0xff]
        %v1914 = vld [vmem:[%s237 + $0x3248] sm:$0xff]
        %v1915 = vld [vmem:[%s237 + $0x3250] sm:$0xff]
        %v1916 = vld [vmem:[%s237 + $0x3258] sm:$0xff]
        %v1917 = vld [vmem:[%s237 + $0x3260] sm:$0xff]
        %v1918 = vld [vmem:[%s237 + $0x3268] sm:$0xff]
        %v1919 = vld [vmem:[%s237 + $0x3270] sm:$0xff]
        %v1920 = vld [vmem:[%s237 + $0x3278] sm:$0xff]
        %v1921 = vld [vmem:[%s237 + $0x3280] sm:$0xff]
        %v1922 = vld [vmem:[%s237 + $0x3288] sm:$0xff]
        %v1923 = vld [vmem:[%s237 + $0x3290] sm:$0xff]
        %v1924 = vld [vmem:[%s237 + $0x3298] sm:$0xff]
        %v1925 = vld [vmem:[%s237 + $0x32a0] sm:$0xff]
        %v1926 = vld [vmem:[%s237 + $0x32a8] sm:$0xff]
        %v1927 = vld [vmem:[%s237 + $0x32b0] sm:$0xff]
        %v1928 = vld [vmem:[%s237 + $0x32b8] sm:$0xff]
        %v1929 = vld [vmem:[%s237 + $0x32c0] sm:$0xff]
        %v1930 = vld [vmem:[%s237 + $0x32c8] sm:$0xff]
        %v1931 = vld [vmem:[%s237 + $0x32d0] sm:$0xff]
        %v1932 = vld [vmem:[%s237 + $0x32d8] sm:$0xff]
        %v1933 = vld [vmem:[%s237 + $0x32e0] sm:$0xff]
        %v1934 = vld [vmem:[%s237 + $0x32e8] sm:$0xff]
        %v1935 = vld [vmem:[%s237 + $0x32f0] sm:$0xff]
        %v1936 = vld [vmem:[%s237 + $0x32f8] sm:$0xff]
        %v1937 = vld [vmem:[%s237 + $0x3300] sm:$0xff]
        %v1938 = vld [vmem:[%s237 + $0x3308] sm:$0xff]
        %v1939 = vld [vmem:[%s237 + $0x3310] sm:$0xff]
        %v1940 = vld [vmem:[%s237 + $0x3318] sm:$0xff]
        %v1941 = vld [vmem:[%s237 + $0x3320] sm:$0xff]
        %v1942 = vld [vmem:[%s237 + $0x3328] sm:$0xff]
        %v1943 = vld [vmem:[%s237 + $0x3330] sm:$0xff]
        %v1944 = vld [vmem:[%s237 + $0x3338] sm:$0xff]
        %v1945 = vld [vmem:[%s237 + $0x3340] sm:$0xff]
        %v1946 = vld [vmem:[%s237 + $0x3348] sm:$0xff]
        %v1947 = vld [vmem:[%s237 + $0x3350] sm:$0xff]
        %v1948 = vld [vmem:[%s237 + $0x3358] sm:$0xff]
        %v1949 = vld [vmem:[%s237 + $0x3360] sm:$0xff]
        %v1950 = vld [vmem:[%s237 + $0x3368] sm:$0xff]
        %v1951 = vld [vmem:[%s237 + $0x3370] sm:$0xff]
        %v1952 = vld [vmem:[%s237 + $0x3378] sm:$0xff]
        %v1953 = vld [vmem:[%s237 + $0x3380] sm:$0xff]
        %v1954 = vld [vmem:[%s237 + $0x3388] sm:$0xff]
        %v1955 = vld [vmem:[%s237 + $0x3390] sm:$0xff]
        %v1956 = vld [vmem:[%s237 + $0x3398] sm:$0xff]
        %v1957 = vld [vmem:[%s237 + $0x33a0] sm:$0xff]
        %v1958 = vld [vmem:[%s237 + $0x33a8] sm:$0xff]
        %v1959 = vld [vmem:[%s237 + $0x33b0] sm:$0xff]
        %v1960 = vld [vmem:[%s237 + $0x33b8] sm:$0xff]
        %v1961 = vld [vmem:[%s237 + $0x33c0] sm:$0xff]
        %v1962 = vld [vmem:[%s237 + $0x33c8] sm:$0xff]
        %v1963 = vld [vmem:[%s237 + $0x33d0] sm:$0xff]
        %v1964 = vld [vmem:[%s237 + $0x33d8] sm:$0xff]
        %v1965 = vld [vmem:[%s237 + $0x33e0] sm:$0xff]
        %v1966 = vld [vmem:[%s237 + $0x33e8] sm:$0xff]
        %v1967 = vld [vmem:[%s237 + $0x33f0] sm:$0xff]
        %v1968 = vld [vmem:[%s237 + $0x33f8] sm:$0xff]
        %v1969 = vld [vmem:[%s237 + $0x3400] sm:$0xff]
        %v1970 = vld [vmem:[%s237 + $0x3408] sm:$0xff]
        %v1971 = vld [vmem:[%s237 + $0x3410] sm:$0xff]
        %v1972 = vld [vmem:[%s237 + $0x3418] sm:$0xff]
        %v1973 = vld [vmem:[%s237 + $0x3420] sm:$0xff]
        %v1974 = vld [vmem:[%s237 + $0x3428] sm:$0xff]
        %v1975 = vld [vmem:[%s237 + $0x3430] sm:$0xff]
        %v1976 = vld [vmem:[%s237 + $0x3438] sm:$0xff]
        %v1977 = vld [vmem:[%s237 + $0x3440] sm:$0xff]
        %v1978 = vld [vmem:[%s237 + $0x3448] sm:$0xff]
        %v1979 = vld [vmem:[%s237 + $0x3450] sm:$0xff]
        %v1980 = vld [vmem:[%s237 + $0x3458] sm:$0xff]
        %v1981 = vld [vmem:[%s237 + $0x3460] sm:$0xff]
        %v1982 = vld [vmem:[%s237 + $0x3468] sm:$0xff]
        %v1983 = vld [vmem:[%s237 + $0x3470] sm:$0xff]
        %v1984 = vld [vmem:[%s237 + $0x3478] sm:$0xff]
        %v1985 = vld [vmem:[%s237 + $0x3480] sm:$0xff]
        %v1986 = vld [vmem:[%s237 + $0x3488] sm:$0xff]
        %v1987 = vld [vmem:[%s237 + $0x3490] sm:$0xff]
        %v1988 = vld [vmem:[%s237 + $0x3498] sm:$0xff]
        %v1989 = vld [vmem:[%s237 + $0x34a0] sm:$0xff]
        %v1990 = vld [vmem:[%s237 + $0x34a8] sm:$0xff]
        %v1991 = vld [vmem:[%s237 + $0x34b0] sm:$0xff]
        %v1992 = vld [vmem:[%s237 + $0x34b8] sm:$0xff]
        %v1993 = vld [vmem:[%s237 + $0x34c0] sm:$0xff]
        %v1994 = vld [vmem:[%s237 + $0x34c8] sm:$0xff]
        %v1995 = vld [vmem:[%s237 + $0x34d0] sm:$0xff]
        %v1996 = vld [vmem:[%s237 + $0x34d8] sm:$0xff]
        %v1997 = vld [vmem:[%s237 + $0x34e0] sm:$0xff]
        %v1998 = vld [vmem:[%s237 + $0x34e8] sm:$0xff]
        %v1999 = vld [vmem:[%s237 + $0x34f0] sm:$0xff]
        %v2000 = vld [vmem:[%s237 + $0x34f8] sm:$0xff]
        %v2001 = vld [vmem:[%s237 + $0x3500] sm:$0xff]
        %v2002 = vld [vmem:[%s237 + $0x3508] sm:$0xff]
        %v2003 = vld [vmem:[%s237 + $0x3510] sm:$0xff]
        %v2004 = vld [vmem:[%s237 + $0x3518] sm:$0xff]
        %v2005 = vld [vmem:[%s237 + $0x3520] sm:$0xff]
        %v2006 = vld [vmem:[%s237 + $0x3528] sm:$0xff]
        %v2007 = vld [vmem:[%s237 + $0x3530] sm:$0xff]
        %v2008 = vld [vmem:[%s237 + $0x3538] sm:$0xff]
        %v2009 = vld [vmem:[%s237 + $0x3540] sm:$0xff]
        %v2010 = vld [vmem:[%s237 + $0x3548] sm:$0xff]
        %v2011 = vld [vmem:[%s237 + $0x3550] sm:$0xff]
        %v2012 = vld [vmem:[%s237 + $0x3558] sm:$0xff]
        %v2013 = vld [vmem:[%s237 + $0x3560] sm:$0xff]
        %v2014 = vld [vmem:[%s237 + $0x3568] sm:$0xff]
        %v2015 = vld [vmem:[%s237 + $0x3570] sm:$0xff]
        %v2016 = vld [vmem:[%s237 + $0x3578] sm:$0xff]
        %v2017 = vld [vmem:[%s237 + $0x3580] sm:$0xff]
        %v2018 = vld [vmem:[%s237 + $0x3588] sm:$0xff]
        %v2019 = vld [vmem:[%s237 + $0x3590] sm:$0xff]
        %v2020 = vld [vmem:[%s237 + $0x3598] sm:$0xff]
        %v2021 = vld [vmem:[%s237 + $0x35a0] sm:$0xff]
        %v2022 = vld [vmem:[%s237 + $0x35a8] sm:$0xff]
        %v2023 = vld [vmem:[%s237 + $0x35b0] sm:$0xff]
        %v2024 = vld [vmem:[%s237 + $0x35b8] sm:$0xff]
        %v2025 = vld [vmem:[%s237 + $0x35c0] sm:$0xff]
        %v2026 = vld [vmem:[%s237 + $0x35c8] sm:$0xff]
        %v2027 = vld [vmem:[%s237 + $0x35d0] sm:$0xff]
        %v2028 = vld [vmem:[%s237 + $0x35d8] sm:$0xff]
        %v2029 = vld [vmem:[%s237 + $0x35e0] sm:$0xff]
        %v2030 = vld [vmem:[%s237 + $0x35e8] sm:$0xff]
        %v2031 = vld [vmem:[%s237 + $0x35f0] sm:$0xff]
        %v2032 = vld [vmem:[%s237 + $0x35f8] sm:$0xff]
        %v2033 = vld [vmem:[%s237 + $0x3600] sm:$0xff]
        %v2034 = vld [vmem:[%s237 + $0x3608] sm:$0xff]
        %v2035 = vld [vmem:[%s237 + $0x3610] sm:$0xff]
        %v2036 = vld [vmem:[%s237 + $0x3618] sm:$0xff]
        %v2037 = vld [vmem:[%s237 + $0x3620] sm:$0xff]
        %v2038 = vld [vmem:[%s237 + $0x3628] sm:$0xff]
        %v2039 = vld [vmem:[%s237 + $0x3630] sm:$0xff]
        %v2040 = vld [vmem:[%s237 + $0x3638] sm:$0xff]
        %v2041 = vld [vmem:[%s237 + $0x3640] sm:$0xff]
        %v2042 = vld [vmem:[%s237 + $0x3648] sm:$0xff]
        %v2043 = vld [vmem:[%s237 + $0x3650] sm:$0xff]
        %v2044 = vld [vmem:[%s237 + $0x3658] sm:$0xff]
        %v2045 = vld [vmem:[%s237 + $0x3660] sm:$0xff]
        %v2046 = vld [vmem:[%s237 + $0x3668] sm:$0xff]
        %v2047 = vld [vmem:[%s237 + $0x3670] sm:$0xff]
        %v2048 = vld [vmem:[%s237 + $0x3678] sm:$0xff]
        %v2049 = vld [vmem:[%s237 + $0x3680] sm:$0xff]
        %v2050 = vld [vmem:[%s237 + $0x3688] sm:$0xff]
        %v2051 = vld [vmem:[%s237 + $0x3690] sm:$0xff]
        %v2052 = vld [vmem:[%s237 + $0x3698] sm:$0xff]
        %v2053 = vld [vmem:[%s237 + $0x36a0] sm:$0xff]
        %v2054 = vld [vmem:[%s237 + $0x36a8] sm:$0xff]
        %v2055 = vld [vmem:[%s237 + $0x36b0] sm:$0xff]
        %v2056 = vld [vmem:[%s237 + $0x36b8] sm:$0xff]
        %v2057 = vld [vmem:[%s237 + $0x36c0] sm:$0xff]
        %v2058 = vld [vmem:[%s237 + $0x36c8] sm:$0xff]
        %v2059 = vld [vmem:[%s237 + $0x36d0] sm:$0xff]
        %v2060 = vld [vmem:[%s237 + $0x36d8] sm:$0xff]
        %v2061 = vld [vmem:[%s237 + $0x36e0] sm:$0xff]
        %v2062 = vld [vmem:[%s237 + $0x36e8] sm:$0xff]
        %v2063 = vld [vmem:[%s237 + $0x36f0] sm:$0xff]
        %v2064 = vld [vmem:[%s237 + $0x36f8] sm:$0xff]
        %v2065 = vld [vmem:[%s237 + $0x3700] sm:$0xff]
        %v2066 = vld [vmem:[%s237 + $0x3708] sm:$0xff]
        %v2067 = vld [vmem:[%s237 + $0x3710] sm:$0xff]
        %v2068 = vld [vmem:[%s237 + $0x3718] sm:$0xff]
        %v2069 = vld [vmem:[%s237 + $0x3720] sm:$0xff]
        %v2070 = vld [vmem:[%s237 + $0x3728] sm:$0xff]
        %v2071 = vld [vmem:[%s237 + $0x3730] sm:$0xff]
        %v2072 = vld [vmem:[%s237 + $0x3738] sm:$0xff]
        %v2073 = vld [vmem:[%s237 + $0x3740] sm:$0xff]
        %v2074 = vld [vmem:[%s237 + $0x3748] sm:$0xff]
        %v2075 = vld [vmem:[%s237 + $0x3750] sm:$0xff]
        %v2076 = vld [vmem:[%s237 + $0x3758] sm:$0xff]
        %v2077 = vld [vmem:[%s237 + $0x3760] sm:$0xff]
        %v2078 = vld [vmem:[%s237 + $0x3768] sm:$0xff]
        %v2079 = vld [vmem:[%s237 + $0x3770] sm:$0xff]
        %v2080 = vld [vmem:[%s237 + $0x3778] sm:$0xff]
        %v2081 = vld [vmem:[%s237 + $0x3780] sm:$0xff]
        %v2082 = vld [vmem:[%s237 + $0x3788] sm:$0xff]
        %v2083 = vld [vmem:[%s237 + $0x3790] sm:$0xff]
        %v2084 = vld [vmem:[%s237 + $0x3798] sm:$0xff]
        %v2085 = vld [vmem:[%s237 + $0x37a0] sm:$0xff]
        %v2086 = vld [vmem:[%s237 + $0x37a8] sm:$0xff]
        %v2087 = vld [vmem:[%s237 + $0x37b0] sm:$0xff]
        %v2088 = vld [vmem:[%s237 + $0x37b8] sm:$0xff]
        %v2089 = vld [vmem:[%s237 + $0x37c0] sm:$0xff]
        %v2090 = vld [vmem:[%s237 + $0x37c8] sm:$0xff]
        %v2091 = vld [vmem:[%s237 + $0x37d0] sm:$0xff]
        %v2092 = vld [vmem:[%s237 + $0x37d8] sm:$0xff]
        %v2093 = vld [vmem:[%s237 + $0x37e0] sm:$0xff]
        %v2094 = vld [vmem:[%s237 + $0x37e8] sm:$0xff]
        %v2095 = vld [vmem:[%s237 + $0x37f0] sm:$0xff]
        %v2096 = vld [vmem:[%s237 + $0x37f8] sm:$0xff]
        %v2097 = vld [vmem:[%s237 + $0x3800] sm:$0xff]
        %v2098 = vld [vmem:[%s237 + $0x3808] sm:$0xff]
        %v2099 = vld [vmem:[%s237 + $0x3810] sm:$0xff]
        %v2100 = vld [vmem:[%s237 + $0x3818] sm:$0xff]
        %v2101 = vld [vmem:[%s237 + $0x3820] sm:$0xff]
        %v2102 = vld [vmem:[%s237 + $0x3828] sm:$0xff]
        %v2103 = vld [vmem:[%s237 + $0x3830] sm:$0xff]
        %v2104 = vld [vmem:[%s237 + $0x3838] sm:$0xff]
        %v2105 = vld [vmem:[%s237 + $0x3840] sm:$0xff]
        %v2106 = vld [vmem:[%s237 + $0x3848] sm:$0xff]
        %v2107 = vld [vmem:[%s237 + $0x3850] sm:$0xff]
        %v2108 = vld [vmem:[%s237 + $0x3858] sm:$0xff]
        %v2109 = vld [vmem:[%s237 + $0x3860] sm:$0xff]
        %v2110 = vld [vmem:[%s237 + $0x3868] sm:$0xff]
        %v2111 = vld [vmem:[%s237 + $0x3870] sm:$0xff]
        %v2112 = vld [vmem:[%s237 + $0x3878] sm:$0xff]
        %v2113 = vld [vmem:[%s237 + $0x3880] sm:$0xff]
        %v2114 = vld [vmem:[%s237 + $0x3888] sm:$0xff]
        %v2115 = vld [vmem:[%s237 + $0x3890] sm:$0xff]
        %v2116 = vld [vmem:[%s237 + $0x3898] sm:$0xff]
        %v2117 = vld [vmem:[%s237 + $0x38a0] sm:$0xff]
        %v2118 = vld [vmem:[%s237 + $0x38a8] sm:$0xff]
        %v2119 = vld [vmem:[%s237 + $0x38b0] sm:$0xff]
        %v2120 = vld [vmem:[%s237 + $0x38b8] sm:$0xff]
        %v2121 = vld [vmem:[%s237 + $0x38c0] sm:$0xff]
        %v2122 = vld [vmem:[%s237 + $0x38c8] sm:$0xff]
        %v2123 = vld [vmem:[%s237 + $0x38d0] sm:$0xff]
        %v2124 = vld [vmem:[%s237 + $0x38d8] sm:$0xff]
        %v2125 = vld [vmem:[%s237 + $0x38e0] sm:$0xff]
        %v2126 = vld [vmem:[%s237 + $0x38e8] sm:$0xff]
        %v2127 = vld [vmem:[%s237 + $0x38f0] sm:$0xff]
        %v2128 = vld [vmem:[%s237 + $0x38f8] sm:$0xff]
        %v2129 = vld [vmem:[%s237 + $0x3900] sm:$0xff]
        %v2130 = vld [vmem:[%s237 + $0x3908] sm:$0xff]
        %v2131 = vld [vmem:[%s237 + $0x3910] sm:$0xff]
        %v2132 = vld [vmem:[%s237 + $0x3918] sm:$0xff]
        %v2133 = vld [vmem:[%s237 + $0x3920] sm:$0xff]
        %v2134 = vld [vmem:[%s237 + $0x3928] sm:$0xff]
        %v2135 = vld [vmem:[%s237 + $0x3930] sm:$0xff]
        %v2136 = vld [vmem:[%s237 + $0x3938] sm:$0xff]
        %v2137 = vld [vmem:[%s237 + $0x3940] sm:$0xff]
        %v2138 = vld [vmem:[%s237 + $0x3948] sm:$0xff]
        %v2139 = vld [vmem:[%s237 + $0x3950] sm:$0xff]
        %v2140 = vld [vmem:[%s237 + $0x3958] sm:$0xff]
        %v2141 = vld [vmem:[%s237 + $0x3960] sm:$0xff]
        %v2142 = vld [vmem:[%s237 + $0x3968] sm:$0xff]
        %v2143 = vld [vmem:[%s237 + $0x3970] sm:$0xff]
        %v2144 = vld [vmem:[%s237 + $0x3978] sm:$0xff]
        %v2145 = vld [vmem:[%s237 + $0x3980] sm:$0xff]
        %v2146 = vld [vmem:[%s237 + $0x3988] sm:$0xff]
        %v2147 = vld [vmem:[%s237 + $0x3990] sm:$0xff]
        %v2148 = vld [vmem:[%s237 + $0x3998] sm:$0xff]
        %v2149 = vld [vmem:[%s237 + $0x39a0] sm:$0xff]
        %v2150 = vld [vmem:[%s237 + $0x39a8] sm:$0xff]
        %v2151 = vld [vmem:[%s237 + $0x39b0] sm:$0xff]
        %v2152 = vld [vmem:[%s237 + $0x39b8] sm:$0xff]
        %v2153 = vld [vmem:[%s237 + $0x39c0] sm:$0xff]
        %v2154 = vld [vmem:[%s237 + $0x39c8] sm:$0xff]
        %v2155 = vld [vmem:[%s237 + $0x39d0] sm:$0xff]
        %v2156 = vld [vmem:[%s237 + $0x39d8] sm:$0xff]
        %v2157 = vld [vmem:[%s237 + $0x39e0] sm:$0xff]
        %v2158 = vld [vmem:[%s237 + $0x39e8] sm:$0xff]
        %v2159 = vld [vmem:[%s237 + $0x39f0] sm:$0xff]
        %v2160 = vld [vmem:[%s237 + $0x39f8] sm:$0xff]
        %v2161 = vld [vmem:[%s237 + $0x3a00] sm:$0xff]
        %v2162 = vld [vmem:[%s237 + $0x3a08] sm:$0xff]
        %v2163 = vld [vmem:[%s237 + $0x3a10] sm:$0xff]
        %v2164 = vld [vmem:[%s237 + $0x3a18] sm:$0xff]
        %v2165 = vld [vmem:[%s237 + $0x3a20] sm:$0xff]
        %v2166 = vld [vmem:[%s237 + $0x3a28] sm:$0xff]
        %v2167 = vld [vmem:[%s237 + $0x3a30] sm:$0xff]
        %v2168 = vld [vmem:[%s237 + $0x3a38] sm:$0xff]
        %v2169 = vld [vmem:[%s237 + $0x3a40] sm:$0xff]
        %v2170 = vld [vmem:[%s237 + $0x3a48] sm:$0xff]
        %v2171 = vld [vmem:[%s237 + $0x3a50] sm:$0xff]
        %v2172 = vld [vmem:[%s237 + $0x3a58] sm:$0xff]
        %v2173 = vld [vmem:[%s237 + $0x3a60] sm:$0xff]
        %v2174 = vld [vmem:[%s237 + $0x3a68] sm:$0xff]
        %v2175 = vld [vmem:[%s237 + $0x3a70] sm:$0xff]
        %v2176 = vld [vmem:[%s237 + $0x3a78] sm:$0xff]
        %v2177 = vld [vmem:[%s237 + $0x3a80] sm:$0xff]
        %v2178 = vld [vmem:[%s237 + $0x3a88] sm:$0xff]
        %v2179 = vld [vmem:[%s237 + $0x3a90] sm:$0xff]
        %v2180 = vld [vmem:[%s237 + $0x3a98] sm:$0xff]
        %v2181 = vld [vmem:[%s237 + $0x3aa0] sm:$0xff]
        %v2182 = vld [vmem:[%s237 + $0x3aa8] sm:$0xff]
        %v2183 = vld [vmem:[%s237 + $0x3ab0] sm:$0xff]
        %v2184 = vld [vmem:[%s237 + $0x3ab8] sm:$0xff]
        %v2185 = vld [vmem:[%s237 + $0x3ac0] sm:$0xff]
        %v2186 = vld [vmem:[%s237 + $0x3ac8] sm:$0xff]
        %v2187 = vld [vmem:[%s237 + $0x3ad0] sm:$0xff]
        %v2188 = vld [vmem:[%s237 + $0x3ad8] sm:$0xff]
        %v2189 = vld [vmem:[%s237 + $0x3ae0] sm:$0xff]
        %v2190 = vld [vmem:[%s237 + $0x3ae8] sm:$0xff]
        %v2191 = vld [vmem:[%s237 + $0x3af0] sm:$0xff]
        %v2192 = vld [vmem:[%s237 + $0x3af8] sm:$0xff]
        %v2193 = vld [vmem:[%s237 + $0x3b00] sm:$0xff]
        %v2194 = vld [vmem:[%s237 + $0x3b08] sm:$0xff]
        %v2195 = vld [vmem:[%s237 + $0x3b10] sm:$0xff]
        %v2196 = vld [vmem:[%s237 + $0x3b18] sm:$0xff]
        %v2197 = vld [vmem:[%s237 + $0x3b20] sm:$0xff]
        %v2198 = vld [vmem:[%s237 + $0x3b28] sm:$0xff]
        %v2199 = vld [vmem:[%s237 + $0x3b30] sm:$0xff]
        %v2200 = vld [vmem:[%s237 + $0x3b38] sm:$0xff]
        %v2201 = vld [vmem:[%s237 + $0x3b40] sm:$0xff]
        %v2202 = vld [vmem:[%s237 + $0x3b48] sm:$0xff]
        %v2203 = vld [vmem:[%s237 + $0x3b50] sm:$0xff]
        %v2204 = vld [vmem:[%s237 + $0x3b58] sm:$0xff]
        %v2205 = vld [vmem:[%s237 + $0x3b60] sm:$0xff]
        %v2206 = vld [vmem:[%s237 + $0x3b68] sm:$0xff]
        %v2207 = vld [vmem:[%s237 + $0x3b70] sm:$0xff]
        %v2208 = vld [vmem:[%s237 + $0x3b78] sm:$0xff]
        %v2209 = vld [vmem:[%s237 + $0x3b80] sm:$0xff]
        %v2210 = vld [vmem:[%s237 + $0x3b88] sm:$0xff]
        %v2211 = vld [vmem:[%s237 + $0x3b90] sm:$0xff]
        %v2212 = vld [vmem:[%s237 + $0x3b98] sm:$0xff]
        %v2213 = vld [vmem:[%s237 + $0x3ba0] sm:$0xff]
        %v2214 = vld [vmem:[%s237 + $0x3ba8] sm:$0xff]
        %v2215 = vld [vmem:[%s237 + $0x3bb0] sm:$0xff]
        %v2216 = vld [vmem:[%s237 + $0x3bb8] sm:$0xff]
        %v2217 = vld [vmem:[%s237 + $0x3bc0] sm:$0xff]
        %v2218 = vld [vmem:[%s237 + $0x3bc8] sm:$0xff]
        %v2219 = vld [vmem:[%s237 + $0x3bd0] sm:$0xff]
        %v2220 = vld [vmem:[%s237 + $0x3bd8] sm:$0xff]
        %v2221 = vld [vmem:[%s237 + $0x3be0] sm:$0xff]
        %v2222 = vld [vmem:[%s237 + $0x3be8] sm:$0xff]
        %v2223 = vld [vmem:[%s237 + $0x3bf0] sm:$0xff]
        %v2224 = vld [vmem:[%s237 + $0x3bf8] sm:$0xff]
        %v2240 = vcombine.high %v290, %v290
        %v2242 = vunpack.c.l.s4 1983009808
        %v2243 = vunpack.c.0.s8 %v2242
        %v2244 = vlaneseq
        %v2245 = vshrl.u32 %v2244, 7
        %v2246 = vsub.s32 %v2243, %v2245
        %v2247 = vrot.slane %v290, %v2246
        %v2249 = vunpack.c.l.s4 1983009808
        %v2250 = vunpack.c.0.s8 %v2249
        %v2251 = vlaneseq
        %v2252 = vshrl.u32 %v2251, 7
        %v2253 = vsub.s32 %v2250, %v2252
        %v2254 = vrot.slane %v2240, %v2253
        %v2255 = vcombine.high %v2247, %v2247
        %v2256 = vcombine.high %v2254, %v2254
        %v2257 = vcombine.high %v291, %v291
        %v2259 = vunpack.c.l.s4 1983009808
        %v2260 = vunpack.c.0.s8 %v2259
        %v2261 = vlaneseq
        %v2262 = vshrl.u32 %v2261, 7
        %v2263 = vsub.s32 %v2260, %v2262
        %v2264 = vrot.slane %v291, %v2263
        %v2266 = vunpack.c.l.s4 1983009808
        %v2267 = vunpack.c.0.s8 %v2266
        %v2268 = vlaneseq
        %v2269 = vshrl.u32 %v2268, 7
        %v2270 = vsub.s32 %v2267, %v2269
        %v2271 = vrot.slane %v2257, %v2270
        %v2272 = vcombine.high %v2264, %v2264
        %v2273 = vcombine.high %v2271, %v2271
        %v2274 = vcombine.high %v292, %v292
        %v2276 = vunpack.c.l.s4 1983009808
        %v2277 = vunpack.c.0.s8 %v2276
        %v2278 = vlaneseq
        %v2279 = vshrl.u32 %v2278, 7
        %v2280 = vsub.s32 %v2277, %v2279
        %v2281 = vrot.slane %v292, %v2280
        %v2283 = vunpack.c.l.s4 1983009808
        %v2284 = vunpack.c.0.s8 %v2283
        %v2285 = vlaneseq
        %v2286 = vshrl.u32 %v2285, 7
        %v2287 = vsub.s32 %v2284, %v2286
        %v2288 = vrot.slane %v2274, %v2287
        %v2289 = vcombine.high %v2281, %v2281
        %v2290 = vcombine.high %v2288, %v2288
        %v2291 = vcombine.high %v293, %v293
        %v2293 = vunpack.c.l.s4 1983009808
        %v2294 = vunpack.c.0.s8 %v2293
        %v2295 = vlaneseq
        %v2296 = vshrl.u32 %v2295, 7
        %v2297 = vsub.s32 %v2294, %v2296
        %v2298 = vrot.slane %v293, %v2297
        %v2300 = vunpack.c.l.s4 1983009808
        %v2301 = vunpack.c.0.s8 %v2300
        %v2302 = vlaneseq
        %v2303 = vshrl.u32 %v2302, 7
        %v2304 = vsub.s32 %v2301, %v2303
        %v2305 = vrot.slane %v2291, %v2304
        %v2306 = vcombine.high %v2298, %v2298
        %v2307 = vcombine.high %v2305, %v2305
        %v2308 = vcombine.high %v294, %v294
        %v2310 = vunpack.c.l.s4 1983009808
        %v2311 = vunpack.c.0.s8 %v2310
        %v2312 = vlaneseq
        %v2313 = vshrl.u32 %v2312, 7
        %v2314 = vsub.s32 %v2311, %v2313
        %v2315 = vrot.slane %v294, %v2314
        %v2317 = vunpack.c.l.s4 1983009808
        %v2318 = vunpack.c.0.s8 %v2317
        %v2319 = vlaneseq
        %v2320 = vshrl.u32 %v2319, 7
        %v2321 = vsub.s32 %v2318, %v2320
        %v2322 = vrot.slane %v2308, %v2321
        %v2323 = vcombine.high %v2315, %v2315
        %v2324 = vcombine.high %v2322, %v2322
        %v2325 = vcombine.high %v295, %v295
        %v2327 = vunpack.c.l.s4 1983009808
        %v2328 = vunpack.c.0.s8 %v2327
        %v2329 = vlaneseq
        %v2330 = vshrl.u32 %v2329, 7
        %v2331 = vsub.s32 %v2328, %v2330
        %v2332 = vrot.slane %v295, %v2331
        %v2334 = vunpack.c.l.s4 1983009808
        %v2335 = vunpack.c.0.s8 %v2334
        %v2336 = vlaneseq
        %v2337 = vshrl.u32 %v2336, 7
        %v2338 = vsub.s32 %v2335, %v2337
        %v2339 = vrot.slane %v2325, %v2338
        %v2340 = vcombine.high %v2332, %v2332
        %v2341 = vcombine.high %v2339, %v2339
        %v2342 = vcombine.high %v296, %v296
        %v2344 = vunpack.c.l.s4 1983009808
        %v2345 = vunpack.c.0.s8 %v2344
        %v2346 = vlaneseq
        %v2347 = vshrl.u32 %v2346, 7
        %v2348 = vsub.s32 %v2345, %v2347
        %v2349 = vrot.slane %v296, %v2348
        %v2351 = vunpack.c.l.s4 1983009808
        %v2352 = vunpack.c.0.s8 %v2351
        %v2353 = vlaneseq
        %v2354 = vshrl.u32 %v2353, 7
        %v2355 = vsub.s32 %v2352, %v2354
        %v2356 = vrot.slane %v2342, %v2355
        %v2357 = vcombine.high %v2349, %v2349
        %v2358 = vcombine.high %v2356, %v2356
        %v2359 = vcombine.high %v297, %v297
        %v2361 = vunpack.c.l.s4 1983009808
        %v2362 = vunpack.c.0.s8 %v2361
        %v2363 = vlaneseq
        %v2364 = vshrl.u32 %v2363, 7
        %v2365 = vsub.s32 %v2362, %v2364
        %v2366 = vrot.slane %v297, %v2365
        %v2368 = vunpack.c.l.s4 1983009808
        %v2369 = vunpack.c.0.s8 %v2368
        %v2370 = vlaneseq
        %v2371 = vshrl.u32 %v2370, 7
        %v2372 = vsub.s32 %v2369, %v2371
        %v2373 = vrot.slane %v2359, %v2372
        %v2374 = vcombine.high %v2366, %v2366
        %v2375 = vcombine.high %v2373, %v2373
        %v2376 = vcombine.high %v298, %v298
        %v2378 = vunpack.c.l.s4 1983009808
        %v2379 = vunpack.c.0.s8 %v2378
        %v2380 = vlaneseq
        %v2381 = vshrl.u32 %v2380, 7
        %v2382 = vsub.s32 %v2379, %v2381
        %v2383 = vrot.slane %v298, %v2382
        %v2385 = vunpack.c.l.s4 1983009808
        %v2386 = vunpack.c.0.s8 %v2385
        %v2387 = vlaneseq
        %v2388 = vshrl.u32 %v2387, 7
        %v2389 = vsub.s32 %v2386, %v2388
        %v2390 = vrot.slane %v2376, %v2389
        %v2391 = vcombine.high %v2383, %v2383
        %v2392 = vcombine.high %v2390, %v2390
        %v2393 = vcombine.high %v299, %v299
        %v2395 = vunpack.c.l.s4 1983009808
        %v2396 = vunpack.c.0.s8 %v2395
        %v2397 = vlaneseq
        %v2398 = vshrl.u32 %v2397, 7
        %v2399 = vsub.s32 %v2396, %v2398
        %v2400 = vrot.slane %v299, %v2399
        %v2402 = vunpack.c.l.s4 1983009808
        %v2403 = vunpack.c.0.s8 %v2402
        %v2404 = vlaneseq
        %v2405 = vshrl.u32 %v2404, 7
        %v2406 = vsub.s32 %v2403, %v2405
        %v2407 = vrot.slane %v2393, %v2406
        %v2408 = vcombine.high %v2400, %v2400
        %v2409 = vcombine.high %v2407, %v2407
        %v2410 = vcombine.high %v300, %v300
        %v2412 = vunpack.c.l.s4 1983009808
        %v2413 = vunpack.c.0.s8 %v2412
        %v2414 = vlaneseq
        %v2415 = vshrl.u32 %v2414, 7
        %v2416 = vsub.s32 %v2413, %v2415
        %v2417 = vrot.slane %v300, %v2416
        %v2419 = vunpack.c.l.s4 1983009808
        %v2420 = vunpack.c.0.s8 %v2419
        %v2421 = vlaneseq
        %v2422 = vshrl.u32 %v2421, 7
        %v2423 = vsub.s32 %v2420, %v2422
        %v2424 = vrot.slane %v2410, %v2423
        %v2425 = vcombine.high %v2417, %v2417
        %v2426 = vcombine.high %v2424, %v2424
        %v2427 = vcombine.high %v301, %v301
        %v2429 = vunpack.c.l.s4 1983009808
        %v2430 = vunpack.c.0.s8 %v2429
        %v2431 = vlaneseq
        %v2432 = vshrl.u32 %v2431, 7
        %v2433 = vsub.s32 %v2430, %v2432
        %v2434 = vrot.slane %v301, %v2433
        %v2436 = vunpack.c.l.s4 1983009808
        %v2437 = vunpack.c.0.s8 %v2436
        %v2438 = vlaneseq
        %v2439 = vshrl.u32 %v2438, 7
        %v2440 = vsub.s32 %v2437, %v2439
        %v2441 = vrot.slane %v2427, %v2440
        %v2442 = vcombine.high %v2434, %v2434
        %v2443 = vcombine.high %v2441, %v2441
        %v2444 = vcombine.high %v302, %v302
        %v2446 = vunpack.c.l.s4 1983009808
        %v2447 = vunpack.c.0.s8 %v2446
        %v2448 = vlaneseq
        %v2449 = vshrl.u32 %v2448, 7
        %v2450 = vsub.s32 %v2447, %v2449
        %v2451 = vrot.slane %v302, %v2450
        %v2453 = vunpack.c.l.s4 1983009808
        %v2454 = vunpack.c.0.s8 %v2453
        %v2455 = vlaneseq
        %v2456 = vshrl.u32 %v2455, 7
        %v2457 = vsub.s32 %v2454, %v2456
        %v2458 = vrot.slane %v2444, %v2457
        %v2459 = vcombine.high %v2451, %v2451
        %v2460 = vcombine.high %v2458, %v2458
        %v2461 = vcombine.high %v303, %v303
        %v2463 = vunpack.c.l.s4 1983009808
        %v2464 = vunpack.c.0.s8 %v2463
        %v2465 = vlaneseq
        %v2466 = vshrl.u32 %v2465, 7
        %v2467 = vsub.s32 %v2464, %v2466
        %v2468 = vrot.slane %v303, %v2467
        %v2470 = vunpack.c.l.s4 1983009808
        %v2471 = vunpack.c.0.s8 %v2470
        %v2472 = vlaneseq
        %v2473 = vshrl.u32 %v2472, 7
        %v2474 = vsub.s32 %v2471, %v2473
        %v2475 = vrot.slane %v2461, %v2474
        %v2476 = vcombine.high %v2468, %v2468
        %v2477 = vcombine.high %v2475, %v2475
        %v2478 = vcombine.high %v304, %v304
        %v2480 = vunpack.c.l.s4 1983009808
        %v2481 = vunpack.c.0.s8 %v2480
        %v2482 = vlaneseq
        %v2483 = vshrl.u32 %v2482, 7
        %v2484 = vsub.s32 %v2481, %v2483
        %v2485 = vrot.slane %v304, %v2484
        %v2487 = vunpack.c.l.s4 1983009808
        %v2488 = vunpack.c.0.s8 %v2487
        %v2489 = vlaneseq
        %v2490 = vshrl.u32 %v2489, 7
        %v2491 = vsub.s32 %v2488, %v2490
        %v2492 = vrot.slane %v2478, %v2491
        %v2493 = vcombine.high %v2485, %v2485
        %v2494 = vcombine.high %v2492, %v2492
        %2555 = vmatprep.subr.mxu0 %v306
        %2556 = vmatpush1.msra.mxu0 %v305
        %2557 = vmatprep.subr.mxu0 %v308
        %2558 = vmatpush1.msra.mxu0 %v307
        %2559 = vmatprep.subr.mxu0 %v310
        %2560 = vmatpush1.msra.mxu0 %v309
        %2561 = vmatprep.subr.mxu0 %v312
        %2562 = vmatpush1.msra.mxu0 %v311
        %2563 = vmatprep.subr.mxu0 %v314
        %2564 = vmatpush1.msra.mxu0 %v313
        %2565 = vmatprep.subr.mxu0 %v316
        %2566 = vmatpush1.msra.mxu0 %v315
        %2567 = vmatprep.subr.mxu0 %v318
        %2568 = vmatpush1.msra.mxu0 %v317
        %2569 = vmatprep.subr.mxu0 %v320
        %2570 = vmatpush1.msra.mxu0 %v319
        %2571 = vmatprep.subr.mxu0 %v322
        %2572 = vmatpush1.msra.mxu0 %v321
        %2573 = vmatprep.subr.mxu0 %v324
        %2574 = vmatpush1.msra.mxu0 %v323
        %2575 = vmatprep.subr.mxu0 %v326
        %2576 = vmatpush1.msra.mxu0 %v325
        %2577 = vmatprep.subr.mxu0 %v328
        %2578 = vmatpush1.msra.mxu0 %v327
        %2579 = vmatprep.subr.mxu0 %v330
        %2580 = vmatpush1.msra.mxu0 %v329
        %2581 = vmatprep.subr.mxu0 %v332
        %2582 = vmatpush1.msra.mxu0 %v331
        %2583 = vmatprep.subr.mxu0 %v334
        %2584 = vmatpush1.msra.mxu0 %v333
        %2585 = vmatprep.subr.mxu0 %v336
        %2586 = vmatpush1.msra.mxu0 %v335
        %2587 = vmatprep.subr.mxu0 %v338
        %2588 = vmatpush1.msra.mxu0 %v337
        %2589 = vmatprep.subr.mxu0 %v340
        %2590 = vmatpush1.msra.mxu0 %v339
        %2591 = vmatprep.subr.mxu0 %v342
        %2592 = vmatpush1.msra.mxu0 %v341
        %2593 = vmatprep.subr.mxu0 %v344
        %2594 = vmatpush1.msra.mxu0 %v343
        %2595 = vmatprep.subr.mxu0 %v346
        %2596 = vmatpush1.msra.mxu0 %v345
        %2597 = vmatprep.subr.mxu0 %v348
        %2598 = vmatpush1.msra.mxu0 %v347
        %2599 = vmatprep.subr.mxu0 %v350
        %2600 = vmatpush1.msra.mxu0 %v349
        %2601 = vmatprep.subr.mxu0 %v352
        %2602 = vmatpush1.msra.mxu0 %v351
        %2603 = vmatprep.subr.mxu0 %v354
        %2604 = vmatpush1.msra.mxu0 %v353
        %2605 = vmatprep.subr.mxu0 %v356
        %2606 = vmatpush1.msra.mxu0 %v355
        %2607 = vmatprep.subr.mxu0 %v358
        %2608 = vmatpush1.msra.mxu0 %v357
        %2609 = vmatprep.subr.mxu0 %v360
        %2610 = vmatpush1.msra.mxu0 %v359
        %2611 = vmatprep.subr.mxu0 %v362
        %2612 = vmatpush1.msra.mxu0 %v361
        %2613 = vmatprep.subr.mxu0 %v364
        %2614 = vmatpush1.msra.mxu0 %v363
        %2615 = vmatprep.subr.mxu0 %v366
        %2616 = vmatpush1.msra.mxu0 %v365
        %2617 = vmatprep.subr.mxu0 %v368
        %2618 = vmatpush1.msra.mxu0 %v367
        %2619 = vmatprep.mubr.f32.mxu0 %v2255
        %2620 = vmatmul.mubr.f32.gmra.mrb[0].mxu0 %v2247
        %v2621 = vpop.f32.mrb[0].mxu0
        %v2622 = vadd.f32 0.0, %v2621
        %v2623 = vpop.f32.mrb[0].mxu0
        %v2624 = vadd.f32 0.0, %v2623
        %2625 = vdwg.mxu0
        %2626 = vmatprep.subr.mxu0 %v370
        %2627 = vmatpush1.msra.mxu0 %v369
        %2628 = vmatprep.subr.mxu0 %v372
        %2629 = vmatpush1.msra.mxu0 %v371
        %2630 = vmatprep.subr.mxu0 %v374
        %2631 = vmatpush1.msra.mxu0 %v373
        %2632 = vmatprep.subr.mxu0 %v376
        %2633 = vmatpush1.msra.mxu0 %v375
        %2634 = vmatprep.subr.mxu0 %v378
        %2635 = vmatpush1.msra.mxu0 %v377
        %2636 = vmatprep.subr.mxu0 %v380
        %2637 = vmatpush1.msra.mxu0 %v379
        %2638 = vmatprep.subr.mxu0 %v382
        %2639 = vmatpush1.msra.mxu0 %v381
        %2640 = vmatprep.subr.mxu0 %v384
        %2641 = vmatpush1.msra.mxu0 %v383
        %2642 = vmatprep.subr.mxu0 %v386
        %2643 = vmatpush1.msra.mxu0 %v385
        %2644 = vmatprep.subr.mxu0 %v388
        %2645 = vmatpush1.msra.mxu0 %v387
        %2646 = vmatprep.subr.mxu0 %v390
        %2647 = vmatpush1.msra.mxu0 %v389
        %2648 = vmatprep.subr.mxu0 %v392
        %2649 = vmatpush1.msra.mxu0 %v391
        %2650 = vmatprep.subr.mxu0 %v394
        %2651 = vmatpush1.msra.mxu0 %v393
        %2652 = vmatprep.subr.mxu0 %v396
        %2653 = vmatpush1.msra.mxu0 %v395
        %2654 = vmatprep.subr.mxu0 %v398
        %2655 = vmatpush1.msra.mxu0 %v397
        %2656 = vmatprep.subr.mxu0 %v400
        %2657 = vmatpush1.msra.mxu0 %v399
        %2658 = vmatprep.subr.mxu0 %v402
        %2659 = vmatpush1.msra.mxu0 %v401
        %2660 = vmatprep.subr.mxu0 %v404
        %2661 = vmatpush1.msra.mxu0 %v403
        %2662 = vmatprep.subr.mxu0 %v406
        %2663 = vmatpush1.msra.mxu0 %v405
        %2664 = vmatprep.subr.mxu0 %v408
        %2665 = vmatpush1.msra.mxu0 %v407
        %2666 = vmatprep.subr.mxu0 %v410
        %2667 = vmatpush1.msra.mxu0 %v409
        %2668 = vmatprep.subr.mxu0 %v412
        %2669 = vmatpush1.msra.mxu0 %v411
        %2670 = vmatprep.subr.mxu0 %v414
        %2671 = vmatpush1.msra.mxu0 %v413
        %2672 = vmatprep.subr.mxu0 %v416
        %2673 = vmatpush1.msra.mxu0 %v415
        %2674 = vmatprep.subr.mxu0 %v418
        %2675 = vmatpush1.msra.mxu0 %v417
        %2676 = vmatprep.subr.mxu0 %v420
        %2677 = vmatpush1.msra.mxu0 %v419
        %2678 = vmatprep.subr.mxu0 %v422
        %2679 = vmatpush1.msra.mxu0 %v421
        %2680 = vmatprep.subr.mxu0 %v424
        %2681 = vmatpush1.msra.mxu0 %v423
        %2682 = vmatprep.subr.mxu0 %v426
        %2683 = vmatpush1.msra.mxu0 %v425
        %2684 = vmatprep.subr.mxu0 %v428
        %2685 = vmatpush1.msra.mxu0 %v427
        %2686 = vmatprep.subr.mxu0 %v430
        %2687 = vmatpush1.msra.mxu0 %v429
        %2688 = vmatprep.subr.mxu0 %v432
        %2689 = vmatpush1.msra.mxu0 %v431
        %2690 = vmatprep.mubr.f32.mxu0 %v2256
        %2691 = vmatmul.mubr.f32.gmra.mrb[0].mxu0 %v2254
        %v2692 = vpop.f32.mrb[0].mxu0
        %v2693 = vadd.f32 %v2622, %v2692
        %v2694 = vpop.f32.mrb[0].mxu0
        %v2695 = vadd.f32 %v2624, %v2694
        %2696 = vdwg.mxu0
        %2697 = vmatprep.subr.mxu0 %v434
        %2698 = vmatpush1.msra.mxu0 %v433
        %2699 = vmatprep.subr.mxu0 %v436
        %2700 = vmatpush1.msra.mxu0 %v435
        %2701 = vmatprep.subr.mxu0 %v438
        %2702 = vmatpush1.msra.mxu0 %v437
        %2703 = vmatprep.subr.mxu0 %v440
        %2704 = vmatpush1.msra.mxu0 %v439
        %2705 = vmatprep.subr.mxu0 %v442
        %2706 = vmatpush1.msra.mxu0 %v441
        %2707 = vmatprep.subr.mxu0 %v444
        %2708 = vmatpush1.msra.mxu0 %v443
        %2709 = vmatprep.subr.mxu0 %v446
        %2710 = vmatpush1.msra.mxu0 %v445
        %2711 = vmatprep.subr.mxu0 %v448
        %2712 = vmatpush1.msra.mxu0 %v447
        %2713 = vmatprep.subr.mxu0 %v450
        %2714 = vmatpush1.msra.mxu0 %v449
        %2715 = vmatprep.subr.mxu0 %v452
        %2716 = vmatpush1.msra.mxu0 %v451
        %2717 = vmatprep.subr.mxu0 %v454
        %2718 = vmatpush1.msra.mxu0 %v453
        %2719 = vmatprep.subr.mxu0 %v456
        %2720 = vmatpush1.msra.mxu0 %v455
        %2721 = vmatprep.subr.mxu0 %v458
        %2722 = vmatpush1.msra.mxu0 %v457
        %2723 = vmatprep.subr.mxu0 %v460
        %2724 = vmatpush1.msra.mxu0 %v459
        %2725 = vmatprep.subr.mxu0 %v462
        %2726 = vmatpush1.msra.mxu0 %v461
        %2727 = vmatprep.subr.mxu0 %v464
        %2728 = vmatpush1.msra.mxu0 %v463
        %2729 = vmatprep.subr.mxu0 %v466
        %2730 = vmatpush1.msra.mxu0 %v465
        %2731 = vmatprep.subr.mxu0 %v468
        %2732 = vmatpush1.msra.mxu0 %v467
        %2733 = vmatprep.subr.mxu0 %v470
        %2734 = vmatpush1.msra.mxu0 %v469
        %2735 = vmatprep.subr.mxu0 %v472
        %2736 = vmatpush1.msra.mxu0 %v471
        %2737 = vmatprep.subr.mxu0 %v474
        %2738 = vmatpush1.msra.mxu0 %v473
        %2739 = vmatprep.subr.mxu0 %v476
        %2740 = vmatpush1.msra.mxu0 %v475
        %2741 = vmatprep.subr.mxu0 %v478
        %2742 = vmatpush1.msra.mxu0 %v477
        %2743 = vmatprep.subr.mxu0 %v480
        %2744 = vmatpush1.msra.mxu0 %v479
        %2745 = vmatprep.subr.mxu0 %v482
        %2746 = vmatpush1.msra.mxu0 %v481
        %2747 = vmatprep.subr.mxu0 %v484
        %2748 = vmatpush1.msra.mxu0 %v483
        %2749 = vmatprep.subr.mxu0 %v486
        %2750 = vmatpush1.msra.mxu0 %v485
        %2751 = vmatprep.subr.mxu0 %v488
        %2752 = vmatpush1.msra.mxu0 %v487
        %2753 = vmatprep.subr.mxu0 %v490
        %2754 = vmatpush1.msra.mxu0 %v489
        %2755 = vmatprep.subr.mxu0 %v492
        %2756 = vmatpush1.msra.mxu0 %v491
        %2757 = vmatprep.subr.mxu0 %v494
        %2758 = vmatpush1.msra.mxu0 %v493
        %2759 = vmatprep.subr.mxu0 %v496
        %2760 = vmatpush1.msra.mxu0 %v495
        %2761 = vmatprep.mubr.f32.mxu0 %v2272
        %2762 = vmatmul.mubr.f32.gmra.mrb[0].mxu0 %v2264
        %v2763 = vpop.f32.mrb[0].mxu0
        %v2764 = vadd.f32 %v2693, %v2763
        %v2765 = vpop.f32.mrb[0].mxu0
        %v2766 = vadd.f32 %v2695, %v2765
        %2767 = vdwg.mxu0
        %2768 = vmatprep.subr.mxu0 %v498
        %2769 = vmatpush1.msra.mxu0 %v497
        %2770 = vmatprep.subr.mxu0 %v500
        %2771 = vmatpush1.msra.mxu0 %v499
        %2772 = vmatprep.subr.mxu0 %v502
        %2773 = vmatpush1.msra.mxu0 %v501
        %2774 = vmatprep.subr.mxu0 %v504
        %2775 = vmatpush1.msra.mxu0 %v503
        %2776 = vmatprep.subr.mxu0 %v506
        %2777 = vmatpush1.msra.mxu0 %v505
        %2778 = vmatprep.subr.mxu0 %v508
        %2779 = vmatpush1.msra.mxu0 %v507
        %2780 = vmatprep.subr.mxu0 %v510
        %2781 = vmatpush1.msra.mxu0 %v509
        %2782 = vmatprep.subr.mxu0 %v512
        %2783 = vmatpush1.msra.mxu0 %v511
        %2784 = vmatprep.subr.mxu0 %v514
        %2785 = vmatpush1.msra.mxu0 %v513
        %2786 = vmatprep.subr.mxu0 %v516
        %2787 = vmatpush1.msra.mxu0 %v515
        %2788 = vmatprep.subr.mxu0 %v518
        %2789 = vmatpush1.msra.mxu0 %v517
        %2790 = vmatprep.subr.mxu0 %v520
        %2791 = vmatpush1.msra.mxu0 %v519
        %2792 = vmatprep.subr.mxu0 %v522
        %2793 = vmatpush1.msra.mxu0 %v521
        %2794 = vmatprep.subr.mxu0 %v524
        %2795 = vmatpush1.msra.mxu0 %v523
        %2796 = vmatprep.subr.mxu0 %v526
        %2797 = vmatpush1.msra.mxu0 %v525
        %2798 = vmatprep.subr.mxu0 %v528
        %2799 = vmatpush1.msra.mxu0 %v527
        %2800 = vmatprep.subr.mxu0 %v530
        %2801 = vmatpush1.msra.mxu0 %v529
        %2802 = vmatprep.subr.mxu0 %v532
        %2803 = vmatpush1.msra.mxu0 %v531
        %2804 = vmatprep.subr.mxu0 %v534
        %2805 = vmatpush1.msra.mxu0 %v533
        %2806 = vmatprep.subr.mxu0 %v536
        %2807 = vmatpush1.msra.mxu0 %v535
        %2808 = vmatprep.subr.mxu0 %v538
        %2809 = vmatpush1.msra.mxu0 %v537
        %2810 = vmatprep.subr.mxu0 %v540
        %2811 = vmatpush1.msra.mxu0 %v539
        %2812 = vmatprep.subr.mxu0 %v542
        %2813 = vmatpush1.msra.mxu0 %v541
        %2814 = vmatprep.subr.mxu0 %v544
        %2815 = vmatpush1.msra.mxu0 %v543
        %2816 = vmatprep.subr.mxu0 %v546
        %2817 = vmatpush1.msra.mxu0 %v545
        %2818 = vmatprep.subr.mxu0 %v548
        %2819 = vmatpush1.msra.mxu0 %v547
        %2820 = vmatprep.subr.mxu0 %v550
        %2821 = vmatpush1.msra.mxu0 %v549
        %2822 = vmatprep.subr.mxu0 %v552
        %2823 = vmatpush1.msra.mxu0 %v551
        %2824 = vmatprep.subr.mxu0 %v554
        %2825 = vmatpush1.msra.mxu0 %v553
        %2826 = vmatprep.subr.mxu0 %v556
        %2827 = vmatpush1.msra.mxu0 %v555
        %2828 = vmatprep.subr.mxu0 %v558
        %2829 = vmatpush1.msra.mxu0 %v557
        %2830 = vmatprep.subr.mxu0 %v560
        %2831 = vmatpush1.msra.mxu0 %v559
        %2832 = vmatprep.mubr.f32.mxu0 %v2273
        %2833 = vmatmul.mubr.f32.gmra.mrb[0].mxu0 %v2271
        %v2834 = vpop.f32.mrb[0].mxu0
        %v2835 = vadd.f32 %v2764, %v2834
        %v2836 = vpop.f32.mrb[0].mxu0
        %v2837 = vadd.f32 %v2766, %v2836
        %2838 = vdwg.mxu0
        %2839 = vmatprep.subr.mxu0 %v562
        %2840 = vmatpush1.msra.mxu0 %v561
        %2841 = vmatprep.subr.mxu0 %v564
        %2842 = vmatpush1.msra.mxu0 %v563
        %2843 = vmatprep.subr.mxu0 %v566
        %2844 = vmatpush1.msra.mxu0 %v565
        %2845 = vmatprep.subr.mxu0 %v568
        %2846 = vmatpush1.msra.mxu0 %v567
        %2847 = vmatprep.subr.mxu0 %v570
        %2848 = vmatpush1.msra.mxu0 %v569
        %2849 = vmatprep.subr.mxu0 %v572
        %2850 = vmatpush1.msra.mxu0 %v571
        %2851 = vmatprep.subr.mxu0 %v574
        %2852 = vmatpush1.msra.mxu0 %v573
        %2853 = vmatprep.subr.mxu0 %v576
        %2854 = vmatpush1.msra.mxu0 %v575
        %2855 = vmatprep.subr.mxu0 %v578
        %2856 = vmatpush1.msra.mxu0 %v577
        %2857 = vmatprep.subr.mxu0 %v580
        %2858 = vmatpush1.msra.mxu0 %v579
        %2859 = vmatprep.subr.mxu0 %v582
        %2860 = vmatpush1.msra.mxu0 %v581
        %2861 = vmatprep.subr.mxu0 %v584
        %2862 = vmatpush1.msra.mxu0 %v583
        %2863 = vmatprep.subr.mxu0 %v586
        %2864 = vmatpush1.msra.mxu0 %v585
        %2865 = vmatprep.subr.mxu0 %v588
        %2866 = vmatpush1.msra.mxu0 %v587
        %2867 = vmatprep.subr.mxu0 %v590
        %2868 = vmatpush1.msra.mxu0 %v589
        %2869 = vmatprep.subr.mxu0 %v592
        %2870 = vmatpush1.msra.mxu0 %v591
        %2871 = vmatprep.subr.mxu0 %v594
        %2872 = vmatpush1.msra.mxu0 %v593
        %2873 = vmatprep.subr.mxu0 %v596
        %2874 = vmatpush1.msra.mxu0 %v595
        %2875 = vmatprep.subr.mxu0 %v598
        %2876 = vmatpush1.msra.mxu0 %v597
        %2877 = vmatprep.subr.mxu0 %v600
        %2878 = vmatpush1.msra.mxu0 %v599
        %2879 = vmatprep.subr.mxu0 %v602
        %2880 = vmatpush1.msra.mxu0 %v601
        %2881 = vmatprep.subr.mxu0 %v604
        %2882 = vmatpush1.msra.mxu0 %v603
        %2883 = vmatprep.subr.mxu0 %v606
        %2884 = vmatpush1.msra.mxu0 %v605
        %2885 = vmatprep.subr.mxu0 %v608
        %2886 = vmatpush1.msra.mxu0 %v607
        %2887 = vmatprep.subr.mxu0 %v610
        %2888 = vmatpush1.msra.mxu0 %v609
        %2889 = vmatprep.subr.mxu0 %v612
        %2890 = vmatpush1.msra.mxu0 %v611
        %2891 = vmatprep.subr.mxu0 %v614
        %2892 = vmatpush1.msra.mxu0 %v613
        %2893 = vmatprep.subr.mxu0 %v616
        %2894 = vmatpush1.msra.mxu0 %v615
        %2895 = vmatprep.subr.mxu0 %v618
        %2896 = vmatpush1.msra.mxu0 %v617
        %2897 = vmatprep.subr.mxu0 %v620
        %2898 = vmatpush1.msra.mxu0 %v619
        %2899 = vmatprep.subr.mxu0 %v622
        %2900 = vmatpush1.msra.mxu0 %v621
        %2901 = vmatprep.subr.mxu0 %v624
        %2902 = vmatpush1.msra.mxu0 %v623
        %2903 = vmatprep.mubr.f32.mxu0 %v2289
        %2904 = vmatmul.mubr.f32.gmra.mrb[0].mxu0 %v2281
        %v2905 = vpop.f32.mrb[0].mxu0
        %v2906 = vadd.f32 %v2835, %v2905
        %v2907 = vpop.f32.mrb[0].mxu0
        %v2908 = vadd.f32 %v2837, %v2907
        %2909 = vdwg.mxu0
        %2910 = vmatprep.subr.mxu0 %v626
        %2911 = vmatpush1.msra.mxu0 %v625
        %2912 = vmatprep.subr.mxu0 %v628
        %2913 = vmatpush1.msra.mxu0 %v627
        %2914 = vmatprep.subr.mxu0 %v630
        %2915 = vmatpush1.msra.mxu0 %v629
        %2916 = vmatprep.subr.mxu0 %v632
        %2917 = vmatpush1.msra.mxu0 %v631
        %2918 = vmatprep.subr.mxu0 %v634
        %2919 = vmatpush1.msra.mxu0 %v633
        %2920 = vmatprep.subr.mxu0 %v636
        %2921 = vmatpush1.msra.mxu0 %v635
        %2922 = vmatprep.subr.mxu0 %v638
        %2923 = vmatpush1.msra.mxu0 %v637
        %2924 = vmatprep.subr.mxu0 %v640
        %2925 = vmatpush1.msra.mxu0 %v639
        %2926 = vmatprep.subr.mxu0 %v642
        %2927 = vmatpush1.msra.mxu0 %v641
        %2928 = vmatprep.subr.mxu0 %v644
        %2929 = vmatpush1.msra.mxu0 %v643
        %2930 = vmatprep.subr.mxu0 %v646
        %2931 = vmatpush1.msra.mxu0 %v645
        %2932 = vmatprep.subr.mxu0 %v648
        %2933 = vmatpush1.msra.mxu0 %v647
        %2934 = vmatprep.subr.mxu0 %v650
        %2935 = vmatpush1.msra.mxu0 %v649
        %2936 = vmatprep.subr.mxu0 %v652
        %2937 = vmatpush1.msra.mxu0 %v651
        %2938 = vmatprep.subr.mxu0 %v654
        %2939 = vmatpush1.msra.mxu0 %v653
        %2940 = vmatprep.subr.mxu0 %v656
        %2941 = vmatpush1.msra.mxu0 %v655
        %2942 = vmatprep.subr.mxu0 %v658
        %2943 = vmatpush1.msra.mxu0 %v657
        %2944 = vmatprep.subr.mxu0 %v660
        %2945 = vmatpush1.msra.mxu0 %v659
        %2946 = vmatprep.subr.mxu0 %v662
        %2947 = vmatpush1.msra.mxu0 %v661
        %2948 = vmatprep.subr.mxu0 %v664
        %2949 = vmatpush1.msra.mxu0 %v663
        %2950 = vmatprep.subr.mxu0 %v666
        %2951 = vmatpush1.msra.mxu0 %v665
        %2952 = vmatprep.subr.mxu0 %v668
        %2953 = vmatpush1.msra.mxu0 %v667
        %2954 = vmatprep.subr.mxu0 %v670
        %2955 = vmatpush1.msra.mxu0 %v669
        %2956 = vmatprep.subr.mxu0 %v672
        %2957 = vmatpush1.msra.mxu0 %v671
        %2958 = vmatprep.subr.mxu0 %v674
        %2959 = vmatpush1.msra.mxu0 %v673
        %2960 = vmatprep.subr.mxu0 %v676
        %2961 = vmatpush1.msra.mxu0 %v675
        %2962 = vmatprep.subr.mxu0 %v678
        %2963 = vmatpush1.msra.mxu0 %v677
        %2964 = vmatprep.subr.mxu0 %v680
        %2965 = vmatpush1.msra.mxu0 %v679
        %2966 = vmatprep.subr.mxu0 %v682
        %2967 = vmatpush1.msra.mxu0 %v681
        %2968 = vmatprep.subr.mxu0 %v684
        %2969 = vmatpush1.msra.mxu0 %v683
        %2970 = vmatprep.subr.mxu0 %v686
        %2971 = vmatpush1.msra.mxu0 %v685
        %2972 = vmatprep.subr.mxu0 %v688
        %2973 = vmatpush1.msra.mxu0 %v687
        %2974 = vmatprep.mubr.f32.mxu0 %v2290
        %2975 = vmatmul.mubr.f32.gmra.mrb[0].mxu0 %v2288
        %v2976 = vpop.f32.mrb[0].mxu0
        %v2977 = vadd.f32 %v2906, %v2976
        %v2978 = vpop.f32.mrb[0].mxu0
        %v2979 = vadd.f32 %v2908, %v2978
        %2980 = vdwg.mxu0
        %2981 = vmatprep.subr.mxu0 %v690
        %2982 = vmatpush1.msra.mxu0 %v689
        %2983 = vmatprep.subr.mxu0 %v692
        %2984 = vmatpush1.msra.mxu0 %v691
        %2985 = vmatprep.subr.mxu0 %v694
        %2986 = vmatpush1.msra.mxu0 %v693
        %2987 = vmatprep.subr.mxu0 %v696
        %2988 = vmatpush1.msra.mxu0 %v695
        %2989 = vmatprep.subr.mxu0 %v698
        %2990 = vmatpush1.msra.mxu0 %v697
        %2991 = vmatprep.subr.mxu0 %v700
        %2992 = vmatpush1.msra.mxu0 %v699
        %2993 = vmatprep.subr.mxu0 %v702
        %2994 = vmatpush1.msra.mxu0 %v701
        %2995 = vmatprep.subr.mxu0 %v704
        %2996 = vmatpush1.msra.mxu0 %v703
        %2997 = vmatprep.subr.mxu0 %v706
        %2998 = vmatpush1.msra.mxu0 %v705
        %2999 = vmatprep.subr.mxu0 %v708
        %3000 = vmatpush1.msra.mxu0 %v707
        %3001 = vmatprep.subr.mxu0 %v710
        %3002 = vmatpush1.msra.mxu0 %v709
        %3003 = vmatprep.subr.mxu0 %v712
        %3004 = vmatpush1.msra.mxu0 %v711
        %3005 = vmatprep.subr.mxu0 %v714
        %3006 = vmatpush1.msra.mxu0 %v713
        %3007 = vmatprep.subr.mxu0 %v716
        %3008 = vmatpush1.msra.mxu0 %v715
        %3009 = vmatprep.subr.mxu0 %v718
        %3010 = vmatpush1.msra.mxu0 %v717
        %3011 = vmatprep.subr.mxu0 %v720
        %3012 = vmatpush1.msra.mxu0 %v719
        %3013 = vmatprep.subr.mxu0 %v722
        %3014 = vmatpush1.msra.mxu0 %v721
        %3015 = vmatprep.subr.mxu0 %v724
        %3016 = vmatpush1.msra.mxu0 %v723
        %3017 = vmatprep.subr.mxu0 %v726
        %3018 = vmatpush1.msra.mxu0 %v725
        %3019 = vmatprep.subr.mxu0 %v728
        %3020 = vmatpush1.msra.mxu0 %v727
        %3021 = vmatprep.subr.mxu0 %v730
        %3022 = vmatpush1.msra.mxu0 %v729
        %3023 = vmatprep.subr.mxu0 %v732
        %3024 = vmatpush1.msra.mxu0 %v731
        %3025 = vmatprep.subr.mxu0 %v734
        %3026 = vmatpush1.msra.mxu0 %v733
        %3027 = vmatprep.subr.mxu0 %v736
        %3028 = vmatpush1.msra.mxu0 %v735
        %3029 = vmatprep.subr.mxu0 %v738
        %3030 = vmatpush1.msra.mxu0 %v737
        %3031 = vmatprep.subr.mxu0 %v740
        %3032 = vmatpush1.msra.mxu0 %v739
        %3033 = vmatprep.subr.mxu0 %v742
        %3034 = vmatpush1.msra.mxu0 %v741
        %3035 = vmatprep.subr.mxu0 %v744
        %3036 = vmatpush1.msra.mxu0 %v743
        %3037 = vmatprep.subr.mxu0 %v746
        %3038 = vmatpush1.msra.mxu0 %v745
        %3039 = vmatprep.subr.mxu0 %v748
        %3040 = vmatpush1.msra.mxu0 %v747
        %3041 = vmatprep.subr.mxu0 %v750
        %3042 = vmatpush1.msra.mxu0 %v749
        %3043 = vmatprep.subr.mxu0 %v752
        %3044 = vmatpush1.msra.mxu0 %v751
        %3045 = vmatprep.mubr.f32.mxu0 %v2306
        %3046 = vmatmul.mubr.f32.gmra.mrb[0].mxu0 %v2298
        %v3047 = vpop.f32.mrb[0].mxu0
        %v3048 = vadd.f32 %v2977, %v3047
        %v3049 = vpop.f32.mrb[0].mxu0
        %v3050 = vadd.f32 %v2979, %v3049
        %3051 = vdwg.mxu0
        %3052 = vmatprep.subr.mxu0 %v754
        %3053 = vmatpush1.msra.mxu0 %v753
        %3054 = vmatprep.subr.mxu0 %v756
        %3055 = vmatpush1.msra.mxu0 %v755
        %3056 = vmatprep.subr.mxu0 %v758
        %3057 = vmatpush1.msra.mxu0 %v757
        %3058 = vmatprep.subr.mxu0 %v760
        %3059 = vmatpush1.msra.mxu0 %v759
        %3060 = vmatprep.subr.mxu0 %v762
        %3061 = vmatpush1.msra.mxu0 %v761
        %3062 = vmatprep.subr.mxu0 %v764
        %3063 = vmatpush1.msra.mxu0 %v763
        %3064 = vmatprep.subr.mxu0 %v766
        %3065 = vmatpush1.msra.mxu0 %v765
        %3066 = vmatprep.subr.mxu0 %v768
        %3067 = vmatpush1.msra.mxu0 %v767
        %3068 = vmatprep.subr.mxu0 %v770
        %3069 = vmatpush1.msra.mxu0 %v769
        %3070 = vmatprep.subr.mxu0 %v772
        %3071 = vmatpush1.msra.mxu0 %v771
        %3072 = vmatprep.subr.mxu0 %v774
        %3073 = vmatpush1.msra.mxu0 %v773
        %3074 = vmatprep.subr.mxu0 %v776
        %3075 = vmatpush1.msra.mxu0 %v775
        %3076 = vmatprep.subr.mxu0 %v778
        %3077 = vmatpush1.msra.mxu0 %v777
        %3078 = vmatprep.subr.mxu0 %v780
        %3079 = vmatpush1.msra.mxu0 %v779
        %3080 = vmatprep.subr.mxu0 %v782
        %3081 = vmatpush1.msra.mxu0 %v781
        %3082 = vmatprep.subr.mxu0 %v784
        %3083 = vmatpush1.msra.mxu0 %v783
        %3084 = vmatprep.subr.mxu0 %v786
        %3085 = vmatpush1.msra.mxu0 %v785
        %3086 = vmatprep.subr.mxu0 %v788
        %3087 = vmatpush1.msra.mxu0 %v787
        %3088 = vmatprep.subr.mxu0 %v790
        %3089 = vmatpush1.msra.mxu0 %v789
        %3090 = vmatprep.subr.mxu0 %v792
        %3091 = vmatpush1.msra.mxu0 %v791
        %3092 = vmatprep.subr.mxu0 %v794
        %3093 = vmatpush1.msra.mxu0 %v793
        %3094 = vmatprep.subr.mxu0 %v796
        %3095 = vmatpush1.msra.mxu0 %v795
        %3096 = vmatprep.subr.mxu0 %v798
        %3097 = vmatpush1.msra.mxu0 %v797
        %3098 = vmatprep.subr.mxu0 %v800
        %3099 = vmatpush1.msra.mxu0 %v799
        %3100 = vmatprep.subr.mxu0 %v802
        %3101 = vmatpush1.msra.mxu0 %v801
        %3102 = vmatprep.subr.mxu0 %v804
        %3103 = vmatpush1.msra.mxu0 %v803
        %3104 = vmatprep.subr.mxu0 %v806
        %3105 = vmatpush1.msra.mxu0 %v805
        %3106 = vmatprep.subr.mxu0 %v808
        %3107 = vmatpush1.msra.mxu0 %v807
        %3108 = vmatprep.subr.mxu0 %v810
        %3109 = vmatpush1.msra.mxu0 %v809
        %3110 = vmatprep.subr.mxu0 %v812
        %3111 = vmatpush1.msra.mxu0 %v811
        %3112 = vmatprep.subr.mxu0 %v814
        %3113 = vmatpush1.msra.mxu0 %v813
        %3114 = vmatprep.subr.mxu0 %v816
        %3115 = vmatpush1.msra.mxu0 %v815
        %3116 = vmatprep.mubr.f32.mxu0 %v2307
        %3117 = vmatmul.mubr.f32.gmra.mrb[0].mxu0 %v2305
        %v3118 = vpop.f32.mrb[0].mxu0
        %v3119 = vadd.f32 %v3048, %v3118
        %v3120 = vpop.f32.mrb[0].mxu0
        %v3121 = vadd.f32 %v3050, %v3120
        %3122 = vdwg.mxu0
        %3123 = vmatprep.subr.mxu0 %v818
        %3124 = vmatpush1.msra.mxu0 %v817
        %3125 = vmatprep.subr.mxu0 %v820
        %3126 = vmatpush1.msra.mxu0 %v819
        %3127 = vmatprep.subr.mxu0 %v822
        %3128 = vmatpush1.msra.mxu0 %v821
        %3129 = vmatprep.subr.mxu0 %v824
        %3130 = vmatpush1.msra.mxu0 %v823
        %3131 = vmatprep.subr.mxu0 %v826
        %3132 = vmatpush1.msra.mxu0 %v825
        %3133 = vmatprep.subr.mxu0 %v828
        %3134 = vmatpush1.msra.mxu0 %v827
        %3135 = vmatprep.subr.mxu0 %v830
        %3136 = vmatpush1.msra.mxu0 %v829
        %3137 = vmatprep.subr.mxu0 %v832
        %3138 = vmatpush1.msra.mxu0 %v831
        %3139 = vmatprep.subr.mxu0 %v834
        %3140 = vmatpush1.msra.mxu0 %v833
        %3141 = vmatprep.subr.mxu0 %v836
        %3142 = vmatpush1.msra.mxu0 %v835
        %3143 = vmatprep.subr.mxu0 %v838
        %3144 = vmatpush1.msra.mxu0 %v837
        %3145 = vmatprep.subr.mxu0 %v840
        %3146 = vmatpush1.msra.mxu0 %v839
        %3147 = vmatprep.subr.mxu0 %v842
        %3148 = vmatpush1.msra.mxu0 %v841
        %3149 = vmatprep.subr.mxu0 %v844
        %3150 = vmatpush1.msra.mxu0 %v843
        %3151 = vmatprep.subr.mxu0 %v846
        %3152 = vmatpush1.msra.mxu0 %v845
        %3153 = vmatprep.subr.mxu0 %v848
        %3154 = vmatpush1.msra.mxu0 %v847
        %3155 = vmatprep.subr.mxu0 %v850
        %3156 = vmatpush1.msra.mxu0 %v849
        %3157 = vmatprep.subr.mxu0 %v852
        %3158 = vmatpush1.msra.mxu0 %v851
        %3159 = vmatprep.subr.mxu0 %v854
        %3160 = vmatpush1.msra.mxu0 %v853
        %3161 = vmatprep.subr.mxu0 %v856
        %3162 = vmatpush1.msra.mxu0 %v855
        %3163 = vmatprep.subr.mxu0 %v858
        %3164 = vmatpush1.msra.mxu0 %v857
        %3165 = vmatprep.subr.mxu0 %v860
        %3166 = vmatpush1.msra.mxu0 %v859
        %3167 = vmatprep.subr.mxu0 %v862
        %3168 = vmatpush1.msra.mxu0 %v861
        %3169 = vmatprep.subr.mxu0 %v864
        %3170 = vmatpush1.msra.mxu0 %v863
        %3171 = vmatprep.subr.mxu0 %v866
        %3172 = vmatpush1.msra.mxu0 %v865
        %3173 = vmatprep.subr.mxu0 %v868
        %3174 = vmatpush1.msra.mxu0 %v867
        %3175 = vmatprep.subr.mxu0 %v870
        %3176 = vmatpush1.msra.mxu0 %v869
        %3177 = vmatprep.subr.mxu0 %v872
        %3178 = vmatpush1.msra.mxu0 %v871
        %3179 = vmatprep.subr.mxu0 %v874
        %3180 = vmatpush1.msra.mxu0 %v873
        %3181 = vmatprep.subr.mxu0 %v876
        %3182 = vmatpush1.msra.mxu0 %v875
        %3183 = vmatprep.subr.mxu0 %v878
        %3184 = vmatpush1.msra.mxu0 %v877
        %3185 = vmatprep.subr.mxu0 %v880
        %3186 = vmatpush1.msra.mxu0 %v879
        %3187 = vmatprep.mubr.f32.mxu0 %v2323
        %3188 = vmatmul.mubr.f32.gmra.mrb[0].mxu0 %v2315
        %v3189 = vpop.f32.mrb[0].mxu0
        %v3190 = vadd.f32 %v3119, %v3189
        %v3191 = vpop.f32.mrb[0].mxu0
        %v3192 = vadd.f32 %v3121, %v3191
        %3193 = vdwg.mxu0
        %3194 = vmatprep.subr.mxu0 %v882
        %3195 = vmatpush1.msra.mxu0 %v881
        %3196 = vmatprep.subr.mxu0 %v884
        %3197 = vmatpush1.msra.mxu0 %v883
        %3198 = vmatprep.subr.mxu0 %v886
        %3199 = vmatpush1.msra.mxu0 %v885
        %3200 = vmatprep.subr.mxu0 %v888
        %3201 = vmatpush1.msra.mxu0 %v887
        %3202 = vmatprep.subr.mxu0 %v890
        %3203 = vmatpush1.msra.mxu0 %v889
        %3204 = vmatprep.subr.mxu0 %v892
        %3205 = vmatpush1.msra.mxu0 %v891
        %3206 = vmatprep.subr.mxu0 %v894
        %3207 = vmatpush1.msra.mxu0 %v893
        %3208 = vmatprep.subr.mxu0 %v896
        %3209 = vmatpush1.msra.mxu0 %v895
        %3210 = vmatprep.subr.mxu0 %v898
        %3211 = vmatpush1.msra.mxu0 %v897
        %3212 = vmatprep.subr.mxu0 %v900
        %3213 = vmatpush1.msra.mxu0 %v899
        %3214 = vmatprep.subr.mxu0 %v902
        %3215 = vmatpush1.msra.mxu0 %v901
        %3216 = vmatprep.subr.mxu0 %v904
        %3217 = vmatpush1.msra.mxu0 %v903
        %3218 = vmatprep.subr.mxu0 %v906
        %3219 = vmatpush1.msra.mxu0 %v905
        %3220 = vmatprep.subr.mxu0 %v908
        %3221 = vmatpush1.msra.mxu0 %v907
        %3222 = vmatprep.subr.mxu0 %v910
        %3223 = vmatpush1.msra.mxu0 %v909
        %3224 = vmatprep.subr.mxu0 %v912
        %3225 = vmatpush1.msra.mxu0 %v911
        %3226 = vmatprep.subr.mxu0 %v914
        %3227 = vmatpush1.msra.mxu0 %v913
        %3228 = vmatprep.subr.mxu0 %v916
        %3229 = vmatpush1.msra.mxu0 %v915
        %3230 = vmatprep.subr.mxu0 %v918
        %3231 = vmatpush1.msra.mxu0 %v917
        %3232 = vmatprep.subr.mxu0 %v920
        %3233 = vmatpush1.msra.mxu0 %v919
        %3234 = vmatprep.subr.mxu0 %v922
        %3235 = vmatpush1.msra.mxu0 %v921
        %3236 = vmatprep.subr.mxu0 %v924
        %3237 = vmatpush1.msra.mxu0 %v923
        %3238 = vmatprep.subr.mxu0 %v926
        %3239 = vmatpush1.msra.mxu0 %v925
        %3240 = vmatprep.subr.mxu0 %v928
        %3241 = vmatpush1.msra.mxu0 %v927
        %3242 = vmatprep.subr.mxu0 %v930
        %3243 = vmatpush1.msra.mxu0 %v929
        %3244 = vmatprep.subr.mxu0 %v932
        %3245 = vmatpush1.msra.mxu0 %v931
        %3246 = vmatprep.subr.mxu0 %v934
        %3247 = vmatpush1.msra.mxu0 %v933
        %3248 = vmatprep.subr.mxu0 %v936
        %3249 = vmatpush1.msra.mxu0 %v935
        %3250 = vmatprep.subr.mxu0 %v938
        %3251 = vmatpush1.msra.mxu0 %v937
        %3252 = vmatprep.subr.mxu0 %v940
        %3253 = vmatpush1.msra.mxu0 %v939
        %3254 = vmatprep.subr.mxu0 %v942
        %3255 = vmatpush1.msra.mxu0 %v941
        %3256 = vmatprep.subr.mxu0 %v944
        %3257 = vmatpush1.msra.mxu0 %v943
        %3258 = vmatprep.mubr.f32.mxu0 %v2324
        %3259 = vmatmul.mubr.f32.gmra.mrb[0].mxu0 %v2322
        %v3260 = vpop.f32.mrb[0].mxu0
        %v3261 = vadd.f32 %v3190, %v3260
        %v3262 = vpop.f32.mrb[0].mxu0
        %v3263 = vadd.f32 %v3192, %v3262
        %3264 = vdwg.mxu0
        %3265 = vmatprep.subr.mxu0 %v946
        %3266 = vmatpush1.msra.mxu0 %v945
        %3267 = vmatprep.subr.mxu0 %v948
        %3268 = vmatpush1.msra.mxu0 %v947
        %3269 = vmatprep.subr.mxu0 %v950
        %3270 = vmatpush1.msra.mxu0 %v949
        %3271 = vmatprep.subr.mxu0 %v952
        %3272 = vmatpush1.msra.mxu0 %v951
        %3273 = vmatprep.subr.mxu0 %v954
        %3274 = vmatpush1.msra.mxu0 %v953
        %3275 = vmatprep.subr.mxu0 %v956
        %3276 = vmatpush1.msra.mxu0 %v955
        %3277 = vmatprep.subr.mxu0 %v958
        %3278 = vmatpush1.msra.mxu0 %v957
        %3279 = vmatprep.subr.mxu0 %v960
        %3280 = vmatpush1.msra.mxu0 %v959
        %3281 = vmatprep.subr.mxu0 %v962
        %3282 = vmatpush1.msra.mxu0 %v961
        %3283 = vmatprep.subr.mxu0 %v964
        %3284 = vmatpush1.msra.mxu0 %v963
        %3285 = vmatprep.subr.mxu0 %v966
        %3286 = vmatpush1.msra.mxu0 %v965
        %3287 = vmatprep.subr.mxu0 %v968
        %3288 = vmatpush1.msra.mxu0 %v967
        %3289 = vmatprep.subr.mxu0 %v970
        %3290 = vmatpush1.msra.mxu0 %v969
        %3291 = vmatprep.subr.mxu0 %v972
        %3292 = vmatpush1.msra.mxu0 %v971
        %3293 = vmatprep.subr.mxu0 %v974
        %3294 = vmatpush1.msra.mxu0 %v973
        %3295 = vmatprep.subr.mxu0 %v976
        %3296 = vmatpush1.msra.mxu0 %v975
        %3297 = vmatprep.subr.mxu0 %v978
        %3298 = vmatpush1.msra.mxu0 %v977
        %3299 = vmatprep.subr.mxu0 %v980
        %3300 = vmatpush1.msra.mxu0 %v979
        %3301 = vmatprep.subr.mxu0 %v982
        %3302 = vmatpush1.msra.mxu0 %v981
        %3303 = vmatprep.subr.mxu0 %v984
        %3304 = vmatpush1.msra.mxu0 %v983
        %3305 = vmatprep.subr.mxu0 %v986
        %3306 = vmatpush1.msra.mxu0 %v985
        %3307 = vmatprep.subr.mxu0 %v988
        %3308 = vmatpush1.msra.mxu0 %v987
        %3309 = vmatprep.subr.mxu0 %v990
        %3310 = vmatpush1.msra.mxu0 %v989
        %3311 = vmatprep.subr.mxu0 %v992
        %3312 = vmatpush1.msra.mxu0 %v991
        %3313 = vmatprep.subr.mxu0 %v994
        %3314 = vmatpush1.msra.mxu0 %v993
        %3315 = vmatprep.subr.mxu0 %v996
        %3316 = vmatpush1.msra.mxu0 %v995
        %3317 = vmatprep.subr.mxu0 %v998
        %3318 = vmatpush1.msra.mxu0 %v997
        %3319 = vmatprep.subr.mxu0 %v1000
        %3320 = vmatpush1.msra.mxu0 %v999
        %3321 = vmatprep.subr.mxu0 %v1002
        %3322 = vmatpush1.msra.mxu0 %v1001
        %3323 = vmatprep.subr.mxu0 %v1004
        %3324 = vmatpush1.msra.mxu0 %v1003
        %3325 = vmatprep.subr.mxu0 %v1006
        %3326 = vmatpush1.msra.mxu0 %v1005
        %3327 = vmatprep.subr.mxu0 %v1008
        %3328 = vmatpush1.msra.mxu0 %v1007
        %3329 = vmatprep.mubr.f32.mxu0 %v2340
        %3330 = vmatmul.mubr.f32.gmra.mrb[0].mxu0 %v2332
        %v3331 = vpop.f32.mrb[0].mxu0
        %v3332 = vadd.f32 %v3261, %v3331
        %v3333 = vpop.f32.mrb[0].mxu0
        %v3334 = vadd.f32 %v3263, %v3333
        %3335 = vdwg.mxu0
        %3336 = vmatprep.subr.mxu0 %v1010
        %3337 = vmatpush1.msra.mxu0 %v1009
        %3338 = vmatprep.subr.mxu0 %v1012
        %3339 = vmatpush1.msra.mxu0 %v1011
        %3340 = vmatprep.subr.mxu0 %v1014
        %3341 = vmatpush1.msra.mxu0 %v1013
        %3342 = vmatprep.subr.mxu0 %v1016
        %3343 = vmatpush1.msra.mxu0 %v1015
        %3344 = vmatprep.subr.mxu0 %v1018
        %3345 = vmatpush1.msra.mxu0 %v1017
        %3346 = vmatprep.subr.mxu0 %v1020
        %3347 = vmatpush1.msra.mxu0 %v1019
        %3348 = vmatprep.subr.mxu0 %v1022
        %3349 = vmatpush1.msra.mxu0 %v1021
        %3350 = vmatprep.subr.mxu0 %v1024
        %3351 = vmatpush1.msra.mxu0 %v1023
        %3352 = vmatprep.subr.mxu0 %v1026
        %3353 = vmatpush1.msra.mxu0 %v1025
        %3354 = vmatprep.subr.mxu0 %v1028
        %3355 = vmatpush1.msra.mxu0 %v1027
        %3356 = vmatprep.subr.mxu0 %v1030
        %3357 = vmatpush1.msra.mxu0 %v1029
        %3358 = vmatprep.subr.mxu0 %v1032
        %3359 = vmatpush1.msra.mxu0 %v1031
        %3360 = vmatprep.subr.mxu0 %v1034
        %3361 = vmatpush1.msra.mxu0 %v1033
        %3362 = vmatprep.subr.mxu0 %v1036
        %3363 = vmatpush1.msra.mxu0 %v1035
        %3364 = vmatprep.subr.mxu0 %v1038
        %3365 = vmatpush1.msra.mxu0 %v1037
        %3366 = vmatprep.subr.mxu0 %v1040
        %3367 = vmatpush1.msra.mxu0 %v1039
        %3368 = vmatprep.subr.mxu0 %v1042
        %3369 = vmatpush1.msra.mxu0 %v1041
        %3370 = vmatprep.subr.mxu0 %v1044
        %3371 = vmatpush1.msra.mxu0 %v1043
        %3372 = vmatprep.subr.mxu0 %v1046
        %3373 = vmatpush1.msra.mxu0 %v1045
        %3374 = vmatprep.subr.mxu0 %v1048
        %3375 = vmatpush1.msra.mxu0 %v1047
        %3376 = vmatprep.subr.mxu0 %v1050
        %3377 = vmatpush1.msra.mxu0 %v1049
        %3378 = vmatprep.subr.mxu0 %v1052
        %3379 = vmatpush1.msra.mxu0 %v1051
        %3380 = vmatprep.subr.mxu0 %v1054
        %3381 = vmatpush1.msra.mxu0 %v1053
        %3382 = vmatprep.subr.mxu0 %v1056
        %3383 = vmatpush1.msra.mxu0 %v1055
        %3384 = vmatprep.subr.mxu0 %v1058
        %3385 = vmatpush1.msra.mxu0 %v1057
        %3386 = vmatprep.subr.mxu0 %v1060
        %3387 = vmatpush1.msra.mxu0 %v1059
        %3388 = vmatprep.subr.mxu0 %v1062
        %3389 = vmatpush1.msra.mxu0 %v1061
        %3390 = vmatprep.subr.mxu0 %v1064
        %3391 = vmatpush1.msra.mxu0 %v1063
        %3392 = vmatprep.subr.mxu0 %v1066
        %3393 = vmatpush1.msra.mxu0 %v1065
        %3394 = vmatprep.subr.mxu0 %v1068
        %3395 = vmatpush1.msra.mxu0 %v1067
        %3396 = vmatprep.subr.mxu0 %v1070
        %3397 = vmatpush1.msra.mxu0 %v1069
        %3398 = vmatprep.subr.mxu0 %v1072
        %3399 = vmatpush1.msra.mxu0 %v1071
        %3400 = vmatprep.mubr.f32.mxu0 %v2341
        %3401 = vmatmul.mubr.f32.gmra.mrb[0].mxu0 %v2339
        %v3402 = vpop.f32.mrb[0].mxu0
        %v3403 = vadd.f32 %v3332, %v3402
        %v3404 = vpop.f32.mrb[0].mxu0
        %v3405 = vadd.f32 %v3334, %v3404
        %3406 = vdwg.mxu0
        %3407 = vmatprep.subr.mxu0 %v1074
        %3408 = vmatpush1.msra.mxu0 %v1073
        %3409 = vmatprep.subr.mxu0 %v1076
        %3410 = vmatpush1.msra.mxu0 %v1075
        %3411 = vmatprep.subr.mxu0 %v1078
        %3412 = vmatpush1.msra.mxu0 %v1077
        %3413 = vmatprep.subr.mxu0 %v1080
        %3414 = vmatpush1.msra.mxu0 %v1079
        %3415 = vmatprep.subr.mxu0 %v1082
        %3416 = vmatpush1.msra.mxu0 %v1081
        %3417 = vmatprep.subr.mxu0 %v1084
        %3418 = vmatpush1.msra.mxu0 %v1083
        %3419 = vmatprep.subr.mxu0 %v1086
        %3420 = vmatpush1.msra.mxu0 %v1085
        %3421 = vmatprep.subr.mxu0 %v1088
        %3422 = vmatpush1.msra.mxu0 %v1087
        %3423 = vmatprep.subr.mxu0 %v1090
        %3424 = vmatpush1.msra.mxu0 %v1089
        %3425 = vmatprep.subr.mxu0 %v1092
        %3426 = vmatpush1.msra.mxu0 %v1091
        %3427 = vmatprep.subr.mxu0 %v1094
        %3428 = vmatpush1.msra.mxu0 %v1093
        %3429 = vmatprep.subr.mxu0 %v1096
        %3430 = vmatpush1.msra.mxu0 %v1095
        %3431 = vmatprep.subr.mxu0 %v1098
        %3432 = vmatpush1.msra.mxu0 %v1097
        %3433 = vmatprep.subr.mxu0 %v1100
        %3434 = vmatpush1.msra.mxu0 %v1099
        %3435 = vmatprep.subr.mxu0 %v1102
        %3436 = vmatpush1.msra.mxu0 %v1101
        %3437 = vmatprep.subr.mxu0 %v1104
        %3438 = vmatpush1.msra.mxu0 %v1103
        %3439 = vmatprep.subr.mxu0 %v1106
        %3440 = vmatpush1.msra.mxu0 %v1105
        %3441 = vmatprep.subr.mxu0 %v1108
        %3442 = vmatpush1.msra.mxu0 %v1107
        %3443 = vmatprep.subr.mxu0 %v1110
        %3444 = vmatpush1.msra.mxu0 %v1109
        %3445 = vmatprep.subr.mxu0 %v1112
        %3446 = vmatpush1.msra.mxu0 %v1111
        %3447 = vmatprep.subr.mxu0 %v1114
        %3448 = vmatpush1.msra.mxu0 %v1113
        %3449 = vmatprep.subr.mxu0 %v1116
        %3450 = vmatpush1.msra.mxu0 %v1115
        %3451 = vmatprep.subr.mxu0 %v1118
        %3452 = vmatpush1.msra.mxu0 %v1117
        %3453 = vmatprep.subr.mxu0 %v1120
        %3454 = vmatpush1.msra.mxu0 %v1119
        %3455 = vmatprep.subr.mxu0 %v1122
        %3456 = vmatpush1.msra.mxu0 %v1121
        %3457 = vmatprep.subr.mxu0 %v1124
        %3458 = vmatpush1.msra.mxu0 %v1123
        %3459 = vmatprep.subr.mxu0 %v1126
        %3460 = vmatpush1.msra.mxu0 %v1125
        %3461 = vmatprep.subr.mxu0 %v1128
        %3462 = vmatpush1.msra.mxu0 %v1127
        %3463 = vmatprep.subr.mxu0 %v1130
        %3464 = vmatpush1.msra.mxu0 %v1129
        %3465 = vmatprep.subr.mxu0 %v1132
        %3466 = vmatpush1.msra.mxu0 %v1131
        %3467 = vmatprep.subr.mxu0 %v1134
        %3468 = vmatpush1.msra.mxu0 %v1133
        %3469 = vmatprep.subr.mxu0 %v1136
        %3470 = vmatpush1.msra.mxu0 %v1135
        %3471 = vmatprep.mubr.f32.mxu0 %v2357
        %3472 = vmatmul.mubr.f32.gmra.mrb[0].mxu0 %v2349
        %v3473 = vpop.f32.mrb[0].mxu0
        %v3474 = vadd.f32 %v3403, %v3473
        %v3475 = vpop.f32.mrb[0].mxu0
        %v3476 = vadd.f32 %v3405, %v3475
        %3477 = vdwg.mxu0
        %3478 = vmatprep.subr.mxu0 %v1138
        %3479 = vmatpush1.msra.mxu0 %v1137
        %3480 = vmatprep.subr.mxu0 %v1140
        %3481 = vmatpush1.msra.mxu0 %v1139
        %3482 = vmatprep.subr.mxu0 %v1142
        %3483 = vmatpush1.msra.mxu0 %v1141
        %3484 = vmatprep.subr.mxu0 %v1144
        %3485 = vmatpush1.msra.mxu0 %v1143
        %3486 = vmatprep.subr.mxu0 %v1146
        %3487 = vmatpush1.msra.mxu0 %v1145
        %3488 = vmatprep.subr.mxu0 %v1148
        %3489 = vmatpush1.msra.mxu0 %v1147
        %3490 = vmatprep.subr.mxu0 %v1150
        %3491 = vmatpush1.msra.mxu0 %v1149
        %3492 = vmatprep.subr.mxu0 %v1152
        %3493 = vmatpush1.msra.mxu0 %v1151
        %3494 = vmatprep.subr.mxu0 %v1154
        %3495 = vmatpush1.msra.mxu0 %v1153
        %3496 = vmatprep.subr.mxu0 %v1156
        %3497 = vmatpush1.msra.mxu0 %v1155
        %3498 = vmatprep.subr.mxu0 %v1158
        %3499 = vmatpush1.msra.mxu0 %v1157
        %3500 = vmatprep.subr.mxu0 %v1160
        %3501 = vmatpush1.msra.mxu0 %v1159
        %3502 = vmatprep.subr.mxu0 %v1162
        %3503 = vmatpush1.msra.mxu0 %v1161
        %3504 = vmatprep.subr.mxu0 %v1164
        %3505 = vmatpush1.msra.mxu0 %v1163
        %3506 = vmatprep.subr.mxu0 %v1166
        %3507 = vmatpush1.msra.mxu0 %v1165
        %3508 = vmatprep.subr.mxu0 %v1168
        %3509 = vmatpush1.msra.mxu0 %v1167
        %3510 = vmatprep.subr.mxu0 %v1170
        %3511 = vmatpush1.msra.mxu0 %v1169
        %3512 = vmatprep.subr.mxu0 %v1172
        %3513 = vmatpush1.msra.mxu0 %v1171
        %3514 = vmatprep.subr.mxu0 %v1174
        %3515 = vmatpush1.msra.mxu0 %v1173
        %3516 = vmatprep.subr.mxu0 %v1176
        %3517 = vmatpush1.msra.mxu0 %v1175
        %3518 = vmatprep.subr.mxu0 %v1178
        %3519 = vmatpush1.msra.mxu0 %v1177
        %3520 = vmatprep.subr.mxu0 %v1180
        %3521 = vmatpush1.msra.mxu0 %v1179
        %3522 = vmatprep.subr.mxu0 %v1182
        %3523 = vmatpush1.msra.mxu0 %v1181
        %3524 = vmatprep.subr.mxu0 %v1184
        %3525 = vmatpush1.msra.mxu0 %v1183
        %3526 = vmatprep.subr.mxu0 %v1186
        %3527 = vmatpush1.msra.mxu0 %v1185
        %3528 = vmatprep.subr.mxu0 %v1188
        %3529 = vmatpush1.msra.mxu0 %v1187
        %3530 = vmatprep.subr.mxu0 %v1190
        %3531 = vmatpush1.msra.mxu0 %v1189
        %3532 = vmatprep.subr.mxu0 %v1192
        %3533 = vmatpush1.msra.mxu0 %v1191
        %3534 = vmatprep.subr.mxu0 %v1194
        %3535 = vmatpush1.msra.mxu0 %v1193
        %3536 = vmatprep.subr.mxu0 %v1196
        %3537 = vmatpush1.msra.mxu0 %v1195
        %3538 = vmatprep.subr.mxu0 %v1198
        %3539 = vmatpush1.msra.mxu0 %v1197
        %3540 = vmatprep.subr.mxu0 %v1200
        %3541 = vmatpush1.msra.mxu0 %v1199
        %3542 = vmatprep.mubr.f32.mxu0 %v2358
        %3543 = vmatmul.mubr.f32.gmra.mrb[0].mxu0 %v2356
        %v3544 = vpop.f32.mrb[0].mxu0
        %v3545 = vadd.f32 %v3474, %v3544
        %v3546 = vpop.f32.mrb[0].mxu0
        %v3547 = vadd.f32 %v3476, %v3546
        %3548 = vdwg.mxu0
        %3549 = vmatprep.subr.mxu0 %v1202
        %3550 = vmatpush1.msra.mxu0 %v1201
        %3551 = vmatprep.subr.mxu0 %v1204
        %3552 = vmatpush1.msra.mxu0 %v1203
        %3553 = vmatprep.subr.mxu0 %v1206
        %3554 = vmatpush1.msra.mxu0 %v1205
        %3555 = vmatprep.subr.mxu0 %v1208
        %3556 = vmatpush1.msra.mxu0 %v1207
        %3557 = vmatprep.subr.mxu0 %v1210
        %3558 = vmatpush1.msra.mxu0 %v1209
        %3559 = vmatprep.subr.mxu0 %v1212
        %3560 = vmatpush1.msra.mxu0 %v1211
        %3561 = vmatprep.subr.mxu0 %v1214
        %3562 = vmatpush1.msra.mxu0 %v1213
        %3563 = vmatprep.subr.mxu0 %v1216
        %3564 = vmatpush1.msra.mxu0 %v1215
        %3565 = vmatprep.subr.mxu0 %v1218
        %3566 = vmatpush1.msra.mxu0 %v1217
        %3567 = vmatprep.subr.mxu0 %v1220
        %3568 = vmatpush1.msra.mxu0 %v1219
        %3569 = vmatprep.subr.mxu0 %v1222
        %3570 = vmatpush1.msra.mxu0 %v1221
        %3571 = vmatprep.subr.mxu0 %v1224
        %3572 = vmatpush1.msra.mxu0 %v1223
        %3573 = vmatprep.subr.mxu0 %v1226
        %3574 = vmatpush1.msra.mxu0 %v1225
        %3575 = vmatprep.subr.mxu0 %v1228
        %3576 = vmatpush1.msra.mxu0 %v1227
        %3577 = vmatprep.subr.mxu0 %v1230
        %3578 = vmatpush1.msra.mxu0 %v1229
        %3579 = vmatprep.subr.mxu0 %v1232
        %3580 = vmatpush1.msra.mxu0 %v1231
        %3581 = vmatprep.subr.mxu0 %v1234
        %3582 = vmatpush1.msra.mxu0 %v1233
        %3583 = vmatprep.subr.mxu0 %v1236
        %3584 = vmatpush1.msra.mxu0 %v1235
        %3585 = vmatprep.subr.mxu0 %v1238
        %3586 = vmatpush1.msra.mxu0 %v1237
        %3587 = vmatprep.subr.mxu0 %v1240
        %3588 = vmatpush1.msra.mxu0 %v1239
        %3589 = vmatprep.subr.mxu0 %v1242
        %3590 = vmatpush1.msra.mxu0 %v1241
        %3591 = vmatprep.subr.mxu0 %v1244
        %3592 = vmatpush1.msra.mxu0 %v1243
        %3593 = vmatprep.subr.mxu0 %v1246
        %3594 = vmatpush1.msra.mxu0 %v1245
        %3595 = vmatprep.subr.mxu0 %v1248
        %3596 = vmatpush1.msra.mxu0 %v1247
        %3597 = vmatprep.subr.mxu0 %v1250
        %3598 = vmatpush1.msra.mxu0 %v1249
        %3599 = vmatprep.subr.mxu0 %v1252
        %3600 = vmatpush1.msra.mxu0 %v1251
        %3601 = vmatprep.subr.mxu0 %v1254
        %3602 = vmatpush1.msra.mxu0 %v1253
        %3603 = vmatprep.subr.mxu0 %v1256
        %3604 = vmatpush1.msra.mxu0 %v1255
        %3605 = vmatprep.subr.mxu0 %v1258
        %3606 = vmatpush1.msra.mxu0 %v1257
        %3607 = vmatprep.subr.mxu0 %v1260
        %3608 = vmatpush1.msra.mxu0 %v1259
        %3609 = vmatprep.subr.mxu0 %v1262
        %3610 = vmatpush1.msra.mxu0 %v1261
        %3611 = vmatprep.subr.mxu0 %v1264
        %3612 = vmatpush1.msra.mxu0 %v1263
        %3613 = vmatprep.mubr.f32.mxu0 %v2374
        %3614 = vmatmul.mubr.f32.gmra.mrb[0].mxu0 %v2366
        %v3615 = vpop.f32.mrb[0].mxu0
        %v3616 = vadd.f32 %v3545, %v3615
        %v3617 = vpop.f32.mrb[0].mxu0
        %v3618 = vadd.f32 %v3547, %v3617
        %3619 = vdwg.mxu0
        %3620 = vmatprep.subr.mxu0 %v1266
        %3621 = vmatpush1.msra.mxu0 %v1265
        %3622 = vmatprep.subr.mxu0 %v1268
        %3623 = vmatpush1.msra.mxu0 %v1267
        %3624 = vmatprep.subr.mxu0 %v1270
        %3625 = vmatpush1.msra.mxu0 %v1269
        %3626 = vmatprep.subr.mxu0 %v1272
        %3627 = vmatpush1.msra.mxu0 %v1271
        %3628 = vmatprep.subr.mxu0 %v1274
        %3629 = vmatpush1.msra.mxu0 %v1273
        %3630 = vmatprep.subr.mxu0 %v1276
        %3631 = vmatpush1.msra.mxu0 %v1275
        %3632 = vmatprep.subr.mxu0 %v1278
        %3633 = vmatpush1.msra.mxu0 %v1277
        %3634 = vmatprep.subr.mxu0 %v1280
        %3635 = vmatpush1.msra.mxu0 %v1279
        %3636 = vmatprep.subr.mxu0 %v1282
        %3637 = vmatpush1.msra.mxu0 %v1281
        %3638 = vmatprep.subr.mxu0 %v1284
        %3639 = vmatpush1.msra.mxu0 %v1283
        %3640 = vmatprep.subr.mxu0 %v1286
        %3641 = vmatpush1.msra.mxu0 %v1285
        %3642 = vmatprep.subr.mxu0 %v1288
        %3643 = vmatpush1.msra.mxu0 %v1287
        %3644 = vmatprep.subr.mxu0 %v1290
        %3645 = vmatpush1.msra.mxu0 %v1289
        %3646 = vmatprep.subr.mxu0 %v1292
        %3647 = vmatpush1.msra.mxu0 %v1291
        %3648 = vmatprep.subr.mxu0 %v1294
        %3649 = vmatpush1.msra.mxu0 %v1293
        %3650 = vmatprep.subr.mxu0 %v1296
        %3651 = vmatpush1.msra.mxu0 %v1295
        %3652 = vmatprep.subr.mxu0 %v1298
        %3653 = vmatpush1.msra.mxu0 %v1297
        %3654 = vmatprep.subr.mxu0 %v1300
        %3655 = vmatpush1.msra.mxu0 %v1299
        %3656 = vmatprep.subr.mxu0 %v1302
        %3657 = vmatpush1.msra.mxu0 %v1301
        %3658 = vmatprep.subr.mxu0 %v1304
        %3659 = vmatpush1.msra.mxu0 %v1303
        %3660 = vmatprep.subr.mxu0 %v1306
        %3661 = vmatpush1.msra.mxu0 %v1305
        %3662 = vmatprep.subr.mxu0 %v1308
        %3663 = vmatpush1.msra.mxu0 %v1307
        %3664 = vmatprep.subr.mxu0 %v1310
        %3665 = vmatpush1.msra.mxu0 %v1309
        %3666 = vmatprep.subr.mxu0 %v1312
        %3667 = vmatpush1.msra.mxu0 %v1311
        %3668 = vmatprep.subr.mxu0 %v1314
        %3669 = vmatpush1.msra.mxu0 %v1313
        %3670 = vmatprep.subr.mxu0 %v1316
        %3671 = vmatpush1.msra.mxu0 %v1315
        %3672 = vmatprep.subr.mxu0 %v1318
        %3673 = vmatpush1.msra.mxu0 %v1317
        %3674 = vmatprep.subr.mxu0 %v1320
        %3675 = vmatpush1.msra.mxu0 %v1319
        %3676 = vmatprep.subr.mxu0 %v1322
        %3677 = vmatpush1.msra.mxu0 %v1321
        %3678 = vmatprep.subr.mxu0 %v1324
        %3679 = vmatpush1.msra.mxu0 %v1323
        %3680 = vmatprep.subr.mxu0 %v1326
        %3681 = vmatpush1.msra.mxu0 %v1325
        %3682 = vmatprep.subr.mxu0 %v1328
        %3683 = vmatpush1.msra.mxu0 %v1327
        %3684 = vmatprep.mubr.f32.mxu0 %v2375
        %3685 = vmatmul.mubr.f32.gmra.mrb[0].mxu0 %v2373
        %v3686 = vpop.f32.mrb[0].mxu0
        %v3687 = vadd.f32 %v3616, %v3686
        %v3688 = vpop.f32.mrb[0].mxu0
        %v3689 = vadd.f32 %v3618, %v3688
        %3690 = vdwg.mxu0
        %3691 = vmatprep.subr.mxu0 %v1330
        %3692 = vmatpush1.msra.mxu0 %v1329
        %3693 = vmatprep.subr.mxu0 %v1332
        %3694 = vmatpush1.msra.mxu0 %v1331
        %3695 = vmatprep.subr.mxu0 %v1334
        %3696 = vmatpush1.msra.mxu0 %v1333
        %3697 = vmatprep.subr.mxu0 %v1336
        %3698 = vmatpush1.msra.mxu0 %v1335
        %3699 = vmatprep.subr.mxu0 %v1338
        %3700 = vmatpush1.msra.mxu0 %v1337
        %3701 = vmatprep.subr.mxu0 %v1340
        %3702 = vmatpush1.msra.mxu0 %v1339
        %3703 = vmatprep.subr.mxu0 %v1342
        %3704 = vmatpush1.msra.mxu0 %v1341
        %3705 = vmatprep.subr.mxu0 %v1344
        %3706 = vmatpush1.msra.mxu0 %v1343
        %3707 = vmatprep.subr.mxu0 %v1346
        %3708 = vmatpush1.msra.mxu0 %v1345
        %3709 = vmatprep.subr.mxu0 %v1348
        %3710 = vmatpush1.msra.mxu0 %v1347
        %3711 = vmatprep.subr.mxu0 %v1350
        %3712 = vmatpush1.msra.mxu0 %v1349
        %3713 = vmatprep.subr.mxu0 %v1352
        %3714 = vmatpush1.msra.mxu0 %v1351
        %3715 = vmatprep.subr.mxu0 %v1354
        %3716 = vmatpush1.msra.mxu0 %v1353
        %3717 = vmatprep.subr.mxu0 %v1356
        %3718 = vmatpush1.msra.mxu0 %v1355
        %3719 = vmatprep.subr.mxu0 %v1358
        %3720 = vmatpush1.msra.mxu0 %v1357
        %3721 = vmatprep.subr.mxu0 %v1360
        %3722 = vmatpush1.msra.mxu0 %v1359
        %3723 = vmatprep.subr.mxu0 %v1362
        %3724 = vmatpush1.msra.mxu0 %v1361
        %3725 = vmatprep.subr.mxu0 %v1364
        %3726 = vmatpush1.msra.mxu0 %v1363
        %3727 = vmatprep.subr.mxu0 %v1366
        %3728 = vmatpush1.msra.mxu0 %v1365
        %3729 = vmatprep.subr.mxu0 %v1368
        %3730 = vmatpush1.msra.mxu0 %v1367
        %3731 = vmatprep.subr.mxu0 %v1370
        %3732 = vmatpush1.msra.mxu0 %v1369
        %3733 = vmatprep.subr.mxu0 %v1372
        %3734 = vmatpush1.msra.mxu0 %v1371
        %3735 = vmatprep.subr.mxu0 %v1374
        %3736 = vmatpush1.msra.mxu0 %v1373
        %3737 = vmatprep.subr.mxu0 %v1376
        %3738 = vmatpush1.msra.mxu0 %v1375
        %3739 = vmatprep.subr.mxu0 %v1378
        %3740 = vmatpush1.msra.mxu0 %v1377
        %3741 = vmatprep.subr.mxu0 %v1380
        %3742 = vmatpush1.msra.mxu0 %v1379
        %3743 = vmatprep.subr.mxu0 %v1382
        %3744 = vmatpush1.msra.mxu0 %v1381
        %3745 = vmatprep.subr.mxu0 %v1384
        %3746 = vmatpush1.msra.mxu0 %v1383
        %3747 = vmatprep.subr.mxu0 %v1386
        %3748 = vmatpush1.msra.mxu0 %v1385
        %3749 = vmatprep.subr.mxu0 %v1388
        %3750 = vmatpush1.msra.mxu0 %v1387
        %3751 = vmatprep.subr.mxu0 %v1390
        %3752 = vmatpush1.msra.mxu0 %v1389
        %3753 = vmatprep.subr.mxu0 %v1392
        %3754 = vmatpush1.msra.mxu0 %v1391
        %3755 = vmatprep.mubr.f32.mxu0 %v2391
        %3756 = vmatmul.mubr.f32.gmra.mrb[0].mxu0 %v2383
        %v3757 = vpop.f32.mrb[0].mxu0
        %v3758 = vadd.f32 %v3687, %v3757
        %v3759 = vpop.f32.mrb[0].mxu0
        %v3760 = vadd.f32 %v3689, %v3759
        %3761 = vdwg.mxu0
        %3762 = vmatprep.subr.mxu0 %v1394
        %3763 = vmatpush1.msra.mxu0 %v1393
        %3764 = vmatprep.subr.mxu0 %v1396
        %3765 = vmatpush1.msra.mxu0 %v1395
        %3766 = vmatprep.subr.mxu0 %v1398
        %3767 = vmatpush1.msra.mxu0 %v1397
        %3768 = vmatprep.subr.mxu0 %v1400
        %3769 = vmatpush1.msra.mxu0 %v1399
        %3770 = vmatprep.subr.mxu0 %v1402
        %3771 = vmatpush1.msra.mxu0 %v1401
        %3772 = vmatprep.subr.mxu0 %v1404
        %3773 = vmatpush1.msra.mxu0 %v1403
        %3774 = vmatprep.subr.mxu0 %v1406
        %3775 = vmatpush1.msra.mxu0 %v1405
        %3776 = vmatprep.subr.mxu0 %v1408
        %3777 = vmatpush1.msra.mxu0 %v1407
        %3778 = vmatprep.subr.mxu0 %v1410
        %3779 = vmatpush1.msra.mxu0 %v1409
        %3780 = vmatprep.subr.mxu0 %v1412
        %3781 = vmatpush1.msra.mxu0 %v1411
        %3782 = vmatprep.subr.mxu0 %v1414
        %3783 = vmatpush1.msra.mxu0 %v1413
        %3784 = vmatprep.subr.mxu0 %v1416
        %3785 = vmatpush1.msra.mxu0 %v1415
        %3786 = vmatprep.subr.mxu0 %v1418
        %3787 = vmatpush1.msra.mxu0 %v1417
        %3788 = vmatprep.subr.mxu0 %v1420
        %3789 = vmatpush1.msra.mxu0 %v1419
        %3790 = vmatprep.subr.mxu0 %v1422
        %3791 = vmatpush1.msra.mxu0 %v1421
        %3792 = vmatprep.subr.mxu0 %v1424
        %3793 = vmatpush1.msra.mxu0 %v1423
        %3794 = vmatprep.subr.mxu0 %v1426
        %3795 = vmatpush1.msra.mxu0 %v1425
        %3796 = vmatprep.subr.mxu0 %v1428
        %3797 = vmatpush1.msra.mxu0 %v1427
        %3798 = vmatprep.subr.mxu0 %v1430
        %3799 = vmatpush1.msra.mxu0 %v1429
        %3800 = vmatprep.subr.mxu0 %v1432
        %3801 = vmatpush1.msra.mxu0 %v1431
        %3802 = vmatprep.subr.mxu0 %v1434
        %3803 = vmatpush1.msra.mxu0 %v1433
        %3804 = vmatprep.subr.mxu0 %v1436
        %3805 = vmatpush1.msra.mxu0 %v1435
        %3806 = vmatprep.subr.mxu0 %v1438
        %3807 = vmatpush1.msra.mxu0 %v1437
        %3808 = vmatprep.subr.mxu0 %v1440
        %3809 = vmatpush1.msra.mxu0 %v1439
        %3810 = vmatprep.subr.mxu0 %v1442
        %3811 = vmatpush1.msra.mxu0 %v1441
        %3812 = vmatprep.subr.mxu0 %v1444
        %3813 = vmatpush1.msra.mxu0 %v1443
        %3814 = vmatprep.subr.mxu0 %v1446
        %3815 = vmatpush1.msra.mxu0 %v1445
        %3816 = vmatprep.subr.mxu0 %v1448
        %3817 = vmatpush1.msra.mxu0 %v1447
        %3818 = vmatprep.subr.mxu0 %v1450
        %3819 = vmatpush1.msra.mxu0 %v1449
        %3820 = vmatprep.subr.mxu0 %v1452
        %3821 = vmatpush1.msra.mxu0 %v1451
        %3822 = vmatprep.subr.mxu0 %v1454
        %3823 = vmatpush1.msra.mxu0 %v1453
        %3824 = vmatprep.subr.mxu0 %v1456
        %3825 = vmatpush1.msra.mxu0 %v1455
        %3826 = vmatprep.mubr.f32.mxu0 %v2392
        %3827 = vmatmul.mubr.f32.gmra.mrb[0].mxu0 %v2390
        %v3828 = vpop.f32.mrb[0].mxu0
        %v3829 = vadd.f32 %v3758, %v3828
        %v3830 = vpop.f32.mrb[0].mxu0
        %v3831 = vadd.f32 %v3760, %v3830
        %3832 = vdwg.mxu0
        %3833 = vmatprep.subr.mxu0 %v1458
        %3834 = vmatpush1.msra.mxu0 %v1457
        %3835 = vmatprep.subr.mxu0 %v1460
        %3836 = vmatpush1.msra.mxu0 %v1459
        %3837 = vmatprep.subr.mxu0 %v1462
        %3838 = vmatpush1.msra.mxu0 %v1461
        %3839 = vmatprep.subr.mxu0 %v1464
        %3840 = vmatpush1.msra.mxu0 %v1463
        %3841 = vmatprep.subr.mxu0 %v1466
        %3842 = vmatpush1.msra.mxu0 %v1465
        %3843 = vmatprep.subr.mxu0 %v1468
        %3844 = vmatpush1.msra.mxu0 %v1467
        %3845 = vmatprep.subr.mxu0 %v1470
        %3846 = vmatpush1.msra.mxu0 %v1469
        %3847 = vmatprep.subr.mxu0 %v1472
        %3848 = vmatpush1.msra.mxu0 %v1471
        %3849 = vmatprep.subr.mxu0 %v1474
        %3850 = vmatpush1.msra.mxu0 %v1473
        %3851 = vmatprep.subr.mxu0 %v1476
        %3852 = vmatpush1.msra.mxu0 %v1475
        %3853 = vmatprep.subr.mxu0 %v1478
        %3854 = vmatpush1.msra.mxu0 %v1477
        %3855 = vmatprep.subr.mxu0 %v1480
        %3856 = vmatpush1.msra.mxu0 %v1479
        %3857 = vmatprep.subr.mxu0 %v1482
        %3858 = vmatpush1.msra.mxu0 %v1481
        %3859 = vmatprep.subr.mxu0 %v1484
        %3860 = vmatpush1.msra.mxu0 %v1483
        %3861 = vmatprep.subr.mxu0 %v1486
        %3862 = vmatpush1.msra.mxu0 %v1485
        %3863 = vmatprep.subr.mxu0 %v1488
        %3864 = vmatpush1.msra.mxu0 %v1487
        %3865 = vmatprep.subr.mxu0 %v1490
        %3866 = vmatpush1.msra.mxu0 %v1489
        %3867 = vmatprep.subr.mxu0 %v1492
        %3868 = vmatpush1.msra.mxu0 %v1491
        %3869 = vmatprep.subr.mxu0 %v1494
        %3870 = vmatpush1.msra.mxu0 %v1493
        %3871 = vmatprep.subr.mxu0 %v1496
        %3872 = vmatpush1.msra.mxu0 %v1495
        %3873 = vmatprep.subr.mxu0 %v1498
        %3874 = vmatpush1.msra.mxu0 %v1497
        %3875 = vmatprep.subr.mxu0 %v1500
        %3876 = vmatpush1.msra.mxu0 %v1499
        %3877 = vmatprep.subr.mxu0 %v1502
        %3878 = vmatpush1.msra.mxu0 %v1501
        %3879 = vmatprep.subr.mxu0 %v1504
        %3880 = vmatpush1.msra.mxu0 %v1503
        %3881 = vmatprep.subr.mxu0 %v1506
        %3882 = vmatpush1.msra.mxu0 %v1505
        %3883 = vmatprep.subr.mxu0 %v1508
        %3884 = vmatpush1.msra.mxu0 %v1507
        %3885 = vmatprep.subr.mxu0 %v1510
        %3886 = vmatpush1.msra.mxu0 %v1509
        %3887 = vmatprep.subr.mxu0 %v1512
        %3888 = vmatpush1.msra.mxu0 %v1511
        %3889 = vmatprep.subr.mxu0 %v1514
        %3890 = vmatpush1.msra.mxu0 %v1513
        %3891 = vmatprep.subr.mxu0 %v1516
        %3892 = vmatpush1.msra.mxu0 %v1515
        %3893 = vmatprep.subr.mxu0 %v1518
        %3894 = vmatpush1.msra.mxu0 %v1517
        %3895 = vmatprep.subr.mxu0 %v1520
        %3896 = vmatpush1.msra.mxu0 %v1519
        %3897 = vmatprep.mubr.f32.mxu0 %v2408
        %3898 = vmatmul.mubr.f32.gmra.mrb[0].mxu0 %v2400
        %v3899 = vpop.f32.mrb[0].mxu0
        %v3900 = vadd.f32 %v3829, %v3899
        %v3901 = vpop.f32.mrb[0].mxu0
        %v3902 = vadd.f32 %v3831, %v3901
        %3903 = vdwg.mxu0
        %3904 = vmatprep.subr.mxu0 %v1522
        %3905 = vmatpush1.msra.mxu0 %v1521
        %3906 = vmatprep.subr.mxu0 %v1524
        %3907 = vmatpush1.msra.mxu0 %v1523
        %3908 = vmatprep.subr.mxu0 %v1526
        %3909 = vmatpush1.msra.mxu0 %v1525
        %3910 = vmatprep.subr.mxu0 %v1528
        %3911 = vmatpush1.msra.mxu0 %v1527
        %3912 = vmatprep.subr.mxu0 %v1530
        %3913 = vmatpush1.msra.mxu0 %v1529
        %3914 = vmatprep.subr.mxu0 %v1532
        %3915 = vmatpush1.msra.mxu0 %v1531
        %3916 = vmatprep.subr.mxu0 %v1534
        %3917 = vmatpush1.msra.mxu0 %v1533
        %3918 = vmatprep.subr.mxu0 %v1536
        %3919 = vmatpush1.msra.mxu0 %v1535
        %3920 = vmatprep.subr.mxu0 %v1538
        %3921 = vmatpush1.msra.mxu0 %v1537
        %3922 = vmatprep.subr.mxu0 %v1540
        %3923 = vmatpush1.msra.mxu0 %v1539
        %3924 = vmatprep.subr.mxu0 %v1542
        %3925 = vmatpush1.msra.mxu0 %v1541
        %3926 = vmatprep.subr.mxu0 %v1544
        %3927 = vmatpush1.msra.mxu0 %v1543
        %3928 = vmatprep.subr.mxu0 %v1546
        %3929 = vmatpush1.msra.mxu0 %v1545
        %3930 = vmatprep.subr.mxu0 %v1548
        %3931 = vmatpush1.msra.mxu0 %v1547
        %3932 = vmatprep.subr.mxu0 %v1550
        %3933 = vmatpush1.msra.mxu0 %v1549
        %3934 = vmatprep.subr.mxu0 %v1552
        %3935 = vmatpush1.msra.mxu0 %v1551
        %3936 = vmatprep.subr.mxu0 %v1554
        %3937 = vmatpush1.msra.mxu0 %v1553
        %3938 = vmatprep.subr.mxu0 %v1556
        %3939 = vmatpush1.msra.mxu0 %v1555
        %3940 = vmatprep.subr.mxu0 %v1558
        %3941 = vmatpush1.msra.mxu0 %v1557
        %3942 = vmatprep.subr.mxu0 %v1560
        %3943 = vmatpush1.msra.mxu0 %v1559
        %3944 = vmatprep.subr.mxu0 %v1562
        %3945 = vmatpush1.msra.mxu0 %v1561
        %3946 = vmatprep.subr.mxu0 %v1564
        %3947 = vmatpush1.msra.mxu0 %v1563
        %3948 = vmatprep.subr.mxu0 %v1566
        %3949 = vmatpush1.msra.mxu0 %v1565
        %3950 = vmatprep.subr.mxu0 %v1568
        %3951 = vmatpush1.msra.mxu0 %v1567
        %3952 = vmatprep.subr.mxu0 %v1570
        %3953 = vmatpush1.msra.mxu0 %v1569
        %3954 = vmatprep.subr.mxu0 %v1572
        %3955 = vmatpush1.msra.mxu0 %v1571
        %3956 = vmatprep.subr.mxu0 %v1574
        %3957 = vmatpush1.msra.mxu0 %v1573
        %3958 = vmatprep.subr.mxu0 %v1576
        %3959 = vmatpush1.msra.mxu0 %v1575
        %3960 = vmatprep.subr.mxu0 %v1578
        %3961 = vmatpush1.msra.mxu0 %v1577
        %3962 = vmatprep.subr.mxu0 %v1580
        %3963 = vmatpush1.msra.mxu0 %v1579
        %3964 = vmatprep.subr.mxu0 %v1582
        %3965 = vmatpush1.msra.mxu0 %v1581
        %3966 = vmatprep.subr.mxu0 %v1584
        %3967 = vmatpush1.msra.mxu0 %v1583
        %3968 = vmatprep.mubr.f32.mxu0 %v2409
        %3969 = vmatmul.mubr.f32.gmra.mrb[0].mxu0 %v2407
        %v3970 = vpop.f32.mrb[0].mxu0
        %v3971 = vadd.f32 %v3900, %v3970
        %v3972 = vpop.f32.mrb[0].mxu0
        %v3973 = vadd.f32 %v3902, %v3972
        %3974 = vdwg.mxu0
        %3975 = vmatprep.subr.mxu0 %v1586
        %3976 = vmatpush1.msra.mxu0 %v1585
        %3977 = vmatprep.subr.mxu0 %v1588
        %3978 = vmatpush1.msra.mxu0 %v1587
        %3979 = vmatprep.subr.mxu0 %v1590
        %3980 = vmatpush1.msra.mxu0 %v1589
        %3981 = vmatprep.subr.mxu0 %v1592
        %3982 = vmatpush1.msra.mxu0 %v1591
        %3983 = vmatprep.subr.mxu0 %v1594
        %3984 = vmatpush1.msra.mxu0 %v1593
        %3985 = vmatprep.subr.mxu0 %v1596
        %3986 = vmatpush1.msra.mxu0 %v1595
        %3987 = vmatprep.subr.mxu0 %v1598
        %3988 = vmatpush1.msra.mxu0 %v1597
        %3989 = vmatprep.subr.mxu0 %v1600
        %3990 = vmatpush1.msra.mxu0 %v1599
        %3991 = vmatprep.subr.mxu0 %v1602
        %3992 = vmatpush1.msra.mxu0 %v1601
        %3993 = vmatprep.subr.mxu0 %v1604
        %3994 = vmatpush1.msra.mxu0 %v1603
        %3995 = vmatprep.subr.mxu0 %v1606
        %3996 = vmatpush1.msra.mxu0 %v1605
        %3997 = vmatprep.subr.mxu0 %v1608
        %3998 = vmatpush1.msra.mxu0 %v1607
        %3999 = vmatprep.subr.mxu0 %v1610
        %4000 = vmatpush1.msra.mxu0 %v1609
        %4001 = vmatprep.subr.mxu0 %v1612
        %4002 = vmatpush1.msra.mxu0 %v1611
        %4003 = vmatprep.subr.mxu0 %v1614
        %4004 = vmatpush1.msra.mxu0 %v1613
        %4005 = vmatprep.subr.mxu0 %v1616
        %4006 = vmatpush1.msra.mxu0 %v1615
        %4007 = vmatprep.subr.mxu0 %v1618
        %4008 = vmatpush1.msra.mxu0 %v1617
        %4009 = vmatprep.subr.mxu0 %v1620
        %4010 = vmatpush1.msra.mxu0 %v1619
        %4011 = vmatprep.subr.mxu0 %v1622
        %4012 = vmatpush1.msra.mxu0 %v1621
        %4013 = vmatprep.subr.mxu0 %v1624
        %4014 = vmatpush1.msra.mxu0 %v1623
        %4015 = vmatprep.subr.mxu0 %v1626
        %4016 = vmatpush1.msra.mxu0 %v1625
        %4017 = vmatprep.subr.mxu0 %v1628
        %4018 = vmatpush1.msra.mxu0 %v1627
        %4019 = vmatprep.subr.mxu0 %v1630
        %4020 = vmatpush1.msra.mxu0 %v1629
        %4021 = vmatprep.subr.mxu0 %v1632
        %4022 = vmatpush1.msra.mxu0 %v1631
        %4023 = vmatprep.subr.mxu0 %v1634
        %4024 = vmatpush1.msra.mxu0 %v1633
        %4025 = vmatprep.subr.mxu0 %v1636
        %4026 = vmatpush1.msra.mxu0 %v1635
        %4027 = vmatprep.subr.mxu0 %v1638
        %4028 = vmatpush1.msra.mxu0 %v1637
        %4029 = vmatprep.subr.mxu0 %v1640
        %4030 = vmatpush1.msra.mxu0 %v1639
        %4031 = vmatprep.subr.mxu0 %v1642
        %4032 = vmatpush1.msra.mxu0 %v1641
        %4033 = vmatprep.subr.mxu0 %v1644
        %4034 = vmatpush1.msra.mxu0 %v1643
        %4035 = vmatprep.subr.mxu0 %v1646
        %4036 = vmatpush1.msra.mxu0 %v1645
        %4037 = vmatprep.subr.mxu0 %v1648
        %4038 = vmatpush1.msra.mxu0 %v1647
        %4039 = vmatprep.mubr.f32.mxu0 %v2425
        %4040 = vmatmul.mubr.f32.gmra.mrb[0].mxu0 %v2417
        %v4041 = vpop.f32.mrb[0].mxu0
        %v4042 = vadd.f32 %v3971, %v4041
        %v4043 = vpop.f32.mrb[0].mxu0
        %v4044 = vadd.f32 %v3973, %v4043
        %4045 = vdwg.mxu0
        %4046 = vmatprep.subr.mxu0 %v1650
        %4047 = vmatpush1.msra.mxu0 %v1649
        %4048 = vmatprep.subr.mxu0 %v1652
        %4049 = vmatpush1.msra.mxu0 %v1651
        %4050 = vmatprep.subr.mxu0 %v1654
        %4051 = vmatpush1.msra.mxu0 %v1653
        %4052 = vmatprep.subr.mxu0 %v1656
        %4053 = vmatpush1.msra.mxu0 %v1655
        %4054 = vmatprep.subr.mxu0 %v1658
        %4055 = vmatpush1.msra.mxu0 %v1657
        %4056 = vmatprep.subr.mxu0 %v1660
        %4057 = vmatpush1.msra.mxu0 %v1659
        %4058 = vmatprep.subr.mxu0 %v1662
        %4059 = vmatpush1.msra.mxu0 %v1661
        %4060 = vmatprep.subr.mxu0 %v1664
        %4061 = vmatpush1.msra.mxu0 %v1663
        %4062 = vmatprep.subr.mxu0 %v1666
        %4063 = vmatpush1.msra.mxu0 %v1665
        %4064 = vmatprep.subr.mxu0 %v1668
        %4065 = vmatpush1.msra.mxu0 %v1667
        %4066 = vmatprep.subr.mxu0 %v1670
        %4067 = vmatpush1.msra.mxu0 %v1669
        %4068 = vmatprep.subr.mxu0 %v1672
        %4069 = vmatpush1.msra.mxu0 %v1671
        %4070 = vmatprep.subr.mxu0 %v1674
        %4071 = vmatpush1.msra.mxu0 %v1673
        %4072 = vmatprep.subr.mxu0 %v1676
        %4073 = vmatpush1.msra.mxu0 %v1675
        %4074 = vmatprep.subr.mxu0 %v1678
        %4075 = vmatpush1.msra.mxu0 %v1677
        %4076 = vmatprep.subr.mxu0 %v1680
        %4077 = vmatpush1.msra.mxu0 %v1679
        %4078 = vmatprep.subr.mxu0 %v1682
        %4079 = vmatpush1.msra.mxu0 %v1681
        %4080 = vmatprep.subr.mxu0 %v1684
        %4081 = vmatpush1.msra.mxu0 %v1683
        %4082 = vmatprep.subr.mxu0 %v1686
        %4083 = vmatpush1.msra.mxu0 %v1685
        %4084 = vmatprep.subr.mxu0 %v1688
        %4085 = vmatpush1.msra.mxu0 %v1687
        %4086 = vmatprep.subr.mxu0 %v1690
        %4087 = vmatpush1.msra.mxu0 %v1689
        %4088 = vmatprep.subr.mxu0 %v1692
        %4089 = vmatpush1.msra.mxu0 %v1691
        %4090 = vmatprep.subr.mxu0 %v1694
        %4091 = vmatpush1.msra.mxu0 %v1693
        %4092 = vmatprep.subr.mxu0 %v1696
        %4093 = vmatpush1.msra.mxu0 %v1695
        %4094 = vmatprep.subr.mxu0 %v1698
        %4095 = vmatpush1.msra.mxu0 %v1697
        %4096 = vmatprep.subr.mxu0 %v1700
        %4097 = vmatpush1.msra.mxu0 %v1699
        %4098 = vmatprep.subr.mxu0 %v1702
        %4099 = vmatpush1.msra.mxu0 %v1701
        %4100 = vmatprep.subr.mxu0 %v1704
        %4101 = vmatpush1.msra.mxu0 %v1703
        %4102 = vmatprep.subr.mxu0 %v1706
        %4103 = vmatpush1.msra.mxu0 %v1705
        %4104 = vmatprep.subr.mxu0 %v1708
        %4105 = vmatpush1.msra.mxu0 %v1707
        %4106 = vmatprep.subr.mxu0 %v1710
        %4107 = vmatpush1.msra.mxu0 %v1709
        %4108 = vmatprep.subr.mxu0 %v1712
        %4109 = vmatpush1.msra.mxu0 %v1711
        %4110 = vmatprep.mubr.f32.mxu0 %v2426
        %4111 = vmatmul.mubr.f32.gmra.mrb[0].mxu0 %v2424
        %v4112 = vpop.f32.mrb[0].mxu0
        %v4113 = vadd.f32 %v4042, %v4112
        %v4114 = vpop.f32.mrb[0].mxu0
        %v4115 = vadd.f32 %v4044, %v4114
        %4116 = vdwg.mxu0
        %4117 = vmatprep.subr.mxu0 %v1714
        %4118 = vmatpush1.msra.mxu0 %v1713
        %4119 = vmatprep.subr.mxu0 %v1716
        %4120 = vmatpush1.msra.mxu0 %v1715
        %4121 = vmatprep.subr.mxu0 %v1718
        %4122 = vmatpush1.msra.mxu0 %v1717
        %4123 = vmatprep.subr.mxu0 %v1720
        %4124 = vmatpush1.msra.mxu0 %v1719
        %4125 = vmatprep.subr.mxu0 %v1722
        %4126 = vmatpush1.msra.mxu0 %v1721
        %4127 = vmatprep.subr.mxu0 %v1724
        %4128 = vmatpush1.msra.mxu0 %v1723
        %4129 = vmatprep.subr.mxu0 %v1726
        %4130 = vmatpush1.msra.mxu0 %v1725
        %4131 = vmatprep.subr.mxu0 %v1728
        %4132 = vmatpush1.msra.mxu0 %v1727
        %4133 = vmatprep.subr.mxu0 %v1730
        %4134 = vmatpush1.msra.mxu0 %v1729
        %4135 = vmatprep.subr.mxu0 %v1732
        %4136 = vmatpush1.msra.mxu0 %v1731
        %4137 = vmatprep.subr.mxu0 %v1734
        %4138 = vmatpush1.msra.mxu0 %v1733
        %4139 = vmatprep.subr.mxu0 %v1736
        %4140 = vmatpush1.msra.mxu0 %v1735
        %4141 = vmatprep.subr.mxu0 %v1738
        %4142 = vmatpush1.msra.mxu0 %v1737
        %4143 = vmatprep.subr.mxu0 %v1740
        %4144 = vmatpush1.msra.mxu0 %v1739
        %4145 = vmatprep.subr.mxu0 %v1742
        %4146 = vmatpush1.msra.mxu0 %v1741
        %4147 = vmatprep.subr.mxu0 %v1744
        %4148 = vmatpush1.msra.mxu0 %v1743
        %4149 = vmatprep.subr.mxu0 %v1746
        %4150 = vmatpush1.msra.mxu0 %v1745
        %4151 = vmatprep.subr.mxu0 %v1748
        %4152 = vmatpush1.msra.mxu0 %v1747
        %4153 = vmatprep.subr.mxu0 %v1750
        %4154 = vmatpush1.msra.mxu0 %v1749
        %4155 = vmatprep.subr.mxu0 %v1752
        %4156 = vmatpush1.msra.mxu0 %v1751
        %4157 = vmatprep.subr.mxu0 %v1754
        %4158 = vmatpush1.msra.mxu0 %v1753
        %4159 = vmatprep.subr.mxu0 %v1756
        %4160 = vmatpush1.msra.mxu0 %v1755
        %4161 = vmatprep.subr.mxu0 %v1758
        %4162 = vmatpush1.msra.mxu0 %v1757
        %4163 = vmatprep.subr.mxu0 %v1760
        %4164 = vmatpush1.msra.mxu0 %v1759
        %4165 = vmatprep.subr.mxu0 %v1762
        %4166 = vmatpush1.msra.mxu0 %v1761
        %4167 = vmatprep.subr.mxu0 %v1764
        %4168 = vmatpush1.msra.mxu0 %v1763
        %4169 = vmatprep.subr.mxu0 %v1766
        %4170 = vmatpush1.msra.mxu0 %v1765
        %4171 = vmatprep.subr.mxu0 %v1768
        %4172 = vmatpush1.msra.mxu0 %v1767
        %4173 = vmatprep.subr.mxu0 %v1770
        %4174 = vmatpush1.msra.mxu0 %v1769
        %4175 = vmatprep.subr.mxu0 %v1772
        %4176 = vmatpush1.msra.mxu0 %v1771
        %4177 = vmatprep.subr.mxu0 %v1774
        %4178 = vmatpush1.msra.mxu0 %v1773
        %4179 = vmatprep.subr.mxu0 %v1776
        %4180 = vmatpush1.msra.mxu0 %v1775
        %4181 = vmatprep.mubr.f32.mxu0 %v2442
        %4182 = vmatmul.mubr.f32.gmra.mrb[0].mxu0 %v2434
        %v4183 = vpop.f32.mrb[0].mxu0
        %v4184 = vadd.f32 %v4113, %v4183
        %v4185 = vpop.f32.mrb[0].mxu0
        %v4186 = vadd.f32 %v4115, %v4185
        %4187 = vdwg.mxu0
        %4188 = vmatprep.subr.mxu0 %v1778
        %4189 = vmatpush1.msra.mxu0 %v1777
        %4190 = vmatprep.subr.mxu0 %v1780
        %4191 = vmatpush1.msra.mxu0 %v1779
        %4192 = vmatprep.subr.mxu0 %v1782
        %4193 = vmatpush1.msra.mxu0 %v1781
        %4194 = vmatprep.subr.mxu0 %v1784
        %4195 = vmatpush1.msra.mxu0 %v1783
        %4196 = vmatprep.subr.mxu0 %v1786
        %4197 = vmatpush1.msra.mxu0 %v1785
        %4198 = vmatprep.subr.mxu0 %v1788
        %4199 = vmatpush1.msra.mxu0 %v1787
        %4200 = vmatprep.subr.mxu0 %v1790
        %4201 = vmatpush1.msra.mxu0 %v1789
        %4202 = vmatprep.subr.mxu0 %v1792
        %4203 = vmatpush1.msra.mxu0 %v1791
        %4204 = vmatprep.subr.mxu0 %v1794
        %4205 = vmatpush1.msra.mxu0 %v1793
        %4206 = vmatprep.subr.mxu0 %v1796
        %4207 = vmatpush1.msra.mxu0 %v1795
        %4208 = vmatprep.subr.mxu0 %v1798
        %4209 = vmatpush1.msra.mxu0 %v1797
        %4210 = vmatprep.subr.mxu0 %v1800
        %4211 = vmatpush1.msra.mxu0 %v1799
        %4212 = vmatprep.subr.mxu0 %v1802
        %4213 = vmatpush1.msra.mxu0 %v1801
        %4214 = vmatprep.subr.mxu0 %v1804
        %4215 = vmatpush1.msra.mxu0 %v1803
        %4216 = vmatprep.subr.mxu0 %v1806
        %4217 = vmatpush1.msra.mxu0 %v1805
        %4218 = vmatprep.subr.mxu0 %v1808
        %4219 = vmatpush1.msra.mxu0 %v1807
        %4220 = vmatprep.subr.mxu0 %v1810
        %4221 = vmatpush1.msra.mxu0 %v1809
        %4222 = vmatprep.subr.mxu0 %v1812
        %4223 = vmatpush1.msra.mxu0 %v1811
        %4224 = vmatprep.subr.mxu0 %v1814
        %4225 = vmatpush1.msra.mxu0 %v1813
        %4226 = vmatprep.subr.mxu0 %v1816
        %4227 = vmatpush1.msra.mxu0 %v1815
        %4228 = vmatprep.subr.mxu0 %v1818
        %4229 = vmatpush1.msra.mxu0 %v1817
        %4230 = vmatprep.subr.mxu0 %v1820
        %4231 = vmatpush1.msra.mxu0 %v1819
        %4232 = vmatprep.subr.mxu0 %v1822
        %4233 = vmatpush1.msra.mxu0 %v1821
        %4234 = vmatprep.subr.mxu0 %v1824
        %4235 = vmatpush1.msra.mxu0 %v1823
        %4236 = vmatprep.subr.mxu0 %v1826
        %4237 = vmatpush1.msra.mxu0 %v1825
        %4238 = vmatprep.subr.mxu0 %v1828
        %4239 = vmatpush1.msra.mxu0 %v1827
        %4240 = vmatprep.subr.mxu0 %v1830
        %4241 = vmatpush1.msra.mxu0 %v1829
        %4242 = vmatprep.subr.mxu0 %v1832
        %4243 = vmatpush1.msra.mxu0 %v1831
        %4244 = vmatprep.subr.mxu0 %v1834
        %4245 = vmatpush1.msra.mxu0 %v1833
        %4246 = vmatprep.subr.mxu0 %v1836
        %4247 = vmatpush1.msra.mxu0 %v1835
        %4248 = vmatprep.subr.mxu0 %v1838
        %4249 = vmatpush1.msra.mxu0 %v1837
        %4250 = vmatprep.subr.mxu0 %v1840
        %4251 = vmatpush1.msra.mxu0 %v1839
        %4252 = vmatprep.mubr.f32.mxu0 %v2443
        %4253 = vmatmul.mubr.f32.gmra.mrb[0].mxu0 %v2441
        %v4254 = vpop.f32.mrb[0].mxu0
        %v4255 = vadd.f32 %v4184, %v4254
        %v4256 = vpop.f32.mrb[0].mxu0
        %v4257 = vadd.f32 %v4186, %v4256
        %4258 = vdwg.mxu0
        %4259 = vmatprep.subr.mxu0 %v1842
        %4260 = vmatpush1.msra.mxu0 %v1841
        %4261 = vmatprep.subr.mxu0 %v1844
        %4262 = vmatpush1.msra.mxu0 %v1843
        %4263 = vmatprep.subr.mxu0 %v1846
        %4264 = vmatpush1.msra.mxu0 %v1845
        %4265 = vmatprep.subr.mxu0 %v1848
        %4266 = vmatpush1.msra.mxu0 %v1847
        %4267 = vmatprep.subr.mxu0 %v1850
        %4268 = vmatpush1.msra.mxu0 %v1849
        %4269 = vmatprep.subr.mxu0 %v1852
        %4270 = vmatpush1.msra.mxu0 %v1851
        %4271 = vmatprep.subr.mxu0 %v1854
        %4272 = vmatpush1.msra.mxu0 %v1853
        %4273 = vmatprep.subr.mxu0 %v1856
        %4274 = vmatpush1.msra.mxu0 %v1855
        %4275 = vmatprep.subr.mxu0 %v1858
        %4276 = vmatpush1.msra.mxu0 %v1857
        %4277 = vmatprep.subr.mxu0 %v1860
        %4278 = vmatpush1.msra.mxu0 %v1859
        %4279 = vmatprep.subr.mxu0 %v1862
        %4280 = vmatpush1.msra.mxu0 %v1861
        %4281 = vmatprep.subr.mxu0 %v1864
        %4282 = vmatpush1.msra.mxu0 %v1863
        %4283 = vmatprep.subr.mxu0 %v1866
        %4284 = vmatpush1.msra.mxu0 %v1865
        %4285 = vmatprep.subr.mxu0 %v1868
        %4286 = vmatpush1.msra.mxu0 %v1867
        %4287 = vmatprep.subr.mxu0 %v1870
        %4288 = vmatpush1.msra.mxu0 %v1869
        %4289 = vmatprep.subr.mxu0 %v1872
        %4290 = vmatpush1.msra.mxu0 %v1871
        %4291 = vmatprep.subr.mxu0 %v1874
        %4292 = vmatpush1.msra.mxu0 %v1873
        %4293 = vmatprep.subr.mxu0 %v1876
        %4294 = vmatpush1.msra.mxu0 %v1875
        %4295 = vmatprep.subr.mxu0 %v1878
        %4296 = vmatpush1.msra.mxu0 %v1877
        %4297 = vmatprep.subr.mxu0 %v1880
        %4298 = vmatpush1.msra.mxu0 %v1879
        %4299 = vmatprep.subr.mxu0 %v1882
        %4300 = vmatpush1.msra.mxu0 %v1881
        %4301 = vmatprep.subr.mxu0 %v1884
        %4302 = vmatpush1.msra.mxu0 %v1883
        %4303 = vmatprep.subr.mxu0 %v1886
        %4304 = vmatpush1.msra.mxu0 %v1885
        %4305 = vmatprep.subr.mxu0 %v1888
        %4306 = vmatpush1.msra.mxu0 %v1887
        %4307 = vmatprep.subr.mxu0 %v1890
        %4308 = vmatpush1.msra.mxu0 %v1889
        %4309 = vmatprep.subr.mxu0 %v1892
        %4310 = vmatpush1.msra.mxu0 %v1891
        %4311 = vmatprep.subr.mxu0 %v1894
        %4312 = vmatpush1.msra.mxu0 %v1893
        %4313 = vmatprep.subr.mxu0 %v1896
        %4314 = vmatpush1.msra.mxu0 %v1895
        %4315 = vmatprep.subr.mxu0 %v1898
        %4316 = vmatpush1.msra.mxu0 %v1897
        %4317 = vmatprep.subr.mxu0 %v1900
        %4318 = vmatpush1.msra.mxu0 %v1899
        %4319 = vmatprep.subr.mxu0 %v1902
        %4320 = vmatpush1.msra.mxu0 %v1901
        %4321 = vmatprep.subr.mxu0 %v1904
        %4322 = vmatpush1.msra.mxu0 %v1903
        %4323 = vmatprep.mubr.f32.mxu0 %v2459
        %4324 = vmatmul.mubr.f32.gmra.mrb[0].mxu0 %v2451
        %v4325 = vpop.f32.mrb[0].mxu0
        %v4326 = vadd.f32 %v4255, %v4325
        %v4327 = vpop.f32.mrb[0].mxu0
        %v4328 = vadd.f32 %v4257, %v4327
        %4329 = vdwg.mxu0
        %4330 = vmatprep.subr.mxu0 %v1906
        %4331 = vmatpush1.msra.mxu0 %v1905
        %4332 = vmatprep.subr.mxu0 %v1908
        %4333 = vmatpush1.msra.mxu0 %v1907
        %4334 = vmatprep.subr.mxu0 %v1910
        %4335 = vmatpush1.msra.mxu0 %v1909
        %4336 = vmatprep.subr.mxu0 %v1912
        %4337 = vmatpush1.msra.mxu0 %v1911
        %4338 = vmatprep.subr.mxu0 %v1914
        %4339 = vmatpush1.msra.mxu0 %v1913
        %4340 = vmatprep.subr.mxu0 %v1916
        %4341 = vmatpush1.msra.mxu0 %v1915
        %4342 = vmatprep.subr.mxu0 %v1918
        %4343 = vmatpush1.msra.mxu0 %v1917
        %4344 = vmatprep.subr.mxu0 %v1920
        %4345 = vmatpush1.msra.mxu0 %v1919
        %4346 = vmatprep.subr.mxu0 %v1922
        %4347 = vmatpush1.msra.mxu0 %v1921
        %4348 = vmatprep.subr.mxu0 %v1924
        %4349 = vmatpush1.msra.mxu0 %v1923
        %4350 = vmatprep.subr.mxu0 %v1926
        %4351 = vmatpush1.msra.mxu0 %v1925
        %4352 = vmatprep.subr.mxu0 %v1928
        %4353 = vmatpush1.msra.mxu0 %v1927
        %4354 = vmatprep.subr.mxu0 %v1930
        %4355 = vmatpush1.msra.mxu0 %v1929
        %4356 = vmatprep.subr.mxu0 %v1932
        %4357 = vmatpush1.msra.mxu0 %v1931
        %4358 = vmatprep.subr.mxu0 %v1934
        %4359 = vmatpush1.msra.mxu0 %v1933
        %4360 = vmatprep.subr.mxu0 %v1936
        %4361 = vmatpush1.msra.mxu0 %v1935
        %4362 = vmatprep.subr.mxu0 %v1938
        %4363 = vmatpush1.msra.mxu0 %v1937
        %4364 = vmatprep.subr.mxu0 %v1940
        %4365 = vmatpush1.msra.mxu0 %v1939
        %4366 = vmatprep.subr.mxu0 %v1942
        %4367 = vmatpush1.msra.mxu0 %v1941
        %4368 = vmatprep.subr.mxu0 %v1944
        %4369 = vmatpush1.msra.mxu0 %v1943
        %4370 = vmatprep.subr.mxu0 %v1946
        %4371 = vmatpush1.msra.mxu0 %v1945
        %4372 = vmatprep.subr.mxu0 %v1948
        %4373 = vmatpush1.msra.mxu0 %v1947
        %4374 = vmatprep.subr.mxu0 %v1950
        %4375 = vmatpush1.msra.mxu0 %v1949
        %4376 = vmatprep.subr.mxu0 %v1952
        %4377 = vmatpush1.msra.mxu0 %v1951
        %4378 = vmatprep.subr.mxu0 %v1954
        %4379 = vmatpush1.msra.mxu0 %v1953
        %4380 = vmatprep.subr.mxu0 %v1956
        %4381 = vmatpush1.msra.mxu0 %v1955
        %4382 = vmatprep.subr.mxu0 %v1958
        %4383 = vmatpush1.msra.mxu0 %v1957
        %4384 = vmatprep.subr.mxu0 %v1960
        %4385 = vmatpush1.msra.mxu0 %v1959
        %4386 = vmatprep.subr.mxu0 %v1962
        %4387 = vmatpush1.msra.mxu0 %v1961
        %4388 = vmatprep.subr.mxu0 %v1964
        %4389 = vmatpush1.msra.mxu0 %v1963
        %4390 = vmatprep.subr.mxu0 %v1966
        %4391 = vmatpush1.msra.mxu0 %v1965
        %4392 = vmatprep.subr.mxu0 %v1968
        %4393 = vmatpush1.msra.mxu0 %v1967
        %4394 = vmatprep.mubr.f32.mxu0 %v2460
        %4395 = vmatmul.mubr.f32.gmra.mrb[0].mxu0 %v2458
        %v4396 = vpop.f32.mrb[0].mxu0
        %v4397 = vadd.f32 %v4326, %v4396
        %v4398 = vpop.f32.mrb[0].mxu0
        %v4399 = vadd.f32 %v4328, %v4398
        %4400 = vdwg.mxu0
        %4401 = vmatprep.subr.mxu0 %v1970
        %4402 = vmatpush1.msra.mxu0 %v1969
        %4403 = vmatprep.subr.mxu0 %v1972
        %4404 = vmatpush1.msra.mxu0 %v1971
        %4405 = vmatprep.subr.mxu0 %v1974
        %4406 = vmatpush1.msra.mxu0 %v1973
        %4407 = vmatprep.subr.mxu0 %v1976
        %4408 = vmatpush1.msra.mxu0 %v1975
        %4409 = vmatprep.subr.mxu0 %v1978
        %4410 = vmatpush1.msra.mxu0 %v1977
        %4411 = vmatprep.subr.mxu0 %v1980
        %4412 = vmatpush1.msra.mxu0 %v1979
        %4413 = vmatprep.subr.mxu0 %v1982
        %4414 = vmatpush1.msra.mxu0 %v1981
        %4415 = vmatprep.subr.mxu0 %v1984
        %4416 = vmatpush1.msra.mxu0 %v1983
        %4417 = vmatprep.subr.mxu0 %v1986
        %4418 = vmatpush1.msra.mxu0 %v1985
        %4419 = vmatprep.subr.mxu0 %v1988
        %4420 = vmatpush1.msra.mxu0 %v1987
        %4421 = vmatprep.subr.mxu0 %v1990
        %4422 = vmatpush1.msra.mxu0 %v1989
        %4423 = vmatprep.subr.mxu0 %v1992
        %4424 = vmatpush1.msra.mxu0 %v1991
        %4425 = vmatprep.subr.mxu0 %v1994
        %4426 = vmatpush1.msra.mxu0 %v1993
        %4427 = vmatprep.subr.mxu0 %v1996
        %4428 = vmatpush1.msra.mxu0 %v1995
        %4429 = vmatprep.subr.mxu0 %v1998
        %4430 = vmatpush1.msra.mxu0 %v1997
        %4431 = vmatprep.subr.mxu0 %v2000
        %4432 = vmatpush1.msra.mxu0 %v1999
        %4433 = vmatprep.subr.mxu0 %v2002
        %4434 = vmatpush1.msra.mxu0 %v2001
        %4435 = vmatprep.subr.mxu0 %v2004
        %4436 = vmatpush1.msra.mxu0 %v2003
        %4437 = vmatprep.subr.mxu0 %v2006
        %4438 = vmatpush1.msra.mxu0 %v2005
        %4439 = vmatprep.subr.mxu0 %v2008
        %4440 = vmatpush1.msra.mxu0 %v2007
        %4441 = vmatprep.subr.mxu0 %v2010
        %4442 = vmatpush1.msra.mxu0 %v2009
        %4443 = vmatprep.subr.mxu0 %v2012
        %4444 = vmatpush1.msra.mxu0 %v2011
        %4445 = vmatprep.subr.mxu0 %v2014
        %4446 = vmatpush1.msra.mxu0 %v2013
        %4447 = vmatprep.subr.mxu0 %v2016
        %4448 = vmatpush1.msra.mxu0 %v2015
        %4449 = vmatprep.subr.mxu0 %v2018
        %4450 = vmatpush1.msra.mxu0 %v2017
        %4451 = vmatprep.subr.mxu0 %v2020
        %4452 = vmatpush1.msra.mxu0 %v2019
        %4453 = vmatprep.subr.mxu0 %v2022
        %4454 = vmatpush1.msra.mxu0 %v2021
        %4455 = vmatprep.subr.mxu0 %v2024
        %4456 = vmatpush1.msra.mxu0 %v2023
        %4457 = vmatprep.subr.mxu0 %v2026
        %4458 = vmatpush1.msra.mxu0 %v2025
        %4459 = vmatprep.subr.mxu0 %v2028
        %4460 = vmatpush1.msra.mxu0 %v2027
        %4461 = vmatprep.subr.mxu0 %v2030
        %4462 = vmatpush1.msra.mxu0 %v2029
        %4463 = vmatprep.subr.mxu0 %v2032
        %4464 = vmatpush1.msra.mxu0 %v2031
        %4465 = vmatprep.mubr.f32.mxu0 %v2476
        %4466 = vmatmul.mubr.f32.gmra.mrb[0].mxu0 %v2468
        %v4467 = vpop.f32.mrb[0].mxu0
        %v4468 = vadd.f32 %v4397, %v4467
        %v4469 = vpop.f32.mrb[0].mxu0
        %v4470 = vadd.f32 %v4399, %v4469
        %4471 = vdwg.mxu0
        %4472 = vmatprep.subr.mxu0 %v2034
        %4473 = vmatpush1.msra.mxu0 %v2033
        %4474 = vmatprep.subr.mxu0 %v2036
        %4475 = vmatpush1.msra.mxu0 %v2035
        %4476 = vmatprep.subr.mxu0 %v2038
        %4477 = vmatpush1.msra.mxu0 %v2037
        %4478 = vmatprep.subr.mxu0 %v2040
        %4479 = vmatpush1.msra.mxu0 %v2039
        %4480 = vmatprep.subr.mxu0 %v2042
        %4481 = vmatpush1.msra.mxu0 %v2041
        %4482 = vmatprep.subr.mxu0 %v2044
        %4483 = vmatpush1.msra.mxu0 %v2043
        %4484 = vmatprep.subr.mxu0 %v2046
        %4485 = vmatpush1.msra.mxu0 %v2045
        %4486 = vmatprep.subr.mxu0 %v2048
        %4487 = vmatpush1.msra.mxu0 %v2047
        %4488 = vmatprep.subr.mxu0 %v2050
        %4489 = vmatpush1.msra.mxu0 %v2049
        %4490 = vmatprep.subr.mxu0 %v2052
        %4491 = vmatpush1.msra.mxu0 %v2051
        %4492 = vmatprep.subr.mxu0 %v2054
        %4493 = vmatpush1.msra.mxu0 %v2053
        %4494 = vmatprep.subr.mxu0 %v2056
        %4495 = vmatpush1.msra.mxu0 %v2055
        %4496 = vmatprep.subr.mxu0 %v2058
        %4497 = vmatpush1.msra.mxu0 %v2057
        %4498 = vmatprep.subr.mxu0 %v2060
        %4499 = vmatpush1.msra.mxu0 %v2059
        %4500 = vmatprep.subr.mxu0 %v2062
        %4501 = vmatpush1.msra.mxu0 %v2061
        %4502 = vmatprep.subr.mxu0 %v2064
        %4503 = vmatpush1.msra.mxu0 %v2063
        %4504 = vmatprep.subr.mxu0 %v2066
        %4505 = vmatpush1.msra.mxu0 %v2065
        %4506 = vmatprep.subr.mxu0 %v2068
        %4507 = vmatpush1.msra.mxu0 %v2067
        %4508 = vmatprep.subr.mxu0 %v2070
        %4509 = vmatpush1.msra.mxu0 %v2069
        %4510 = vmatprep.subr.mxu0 %v2072
        %4511 = vmatpush1.msra.mxu0 %v2071
        %4512 = vmatprep.subr.mxu0 %v2074
        %4513 = vmatpush1.msra.mxu0 %v2073
        %4514 = vmatprep.subr.mxu0 %v2076
        %4515 = vmatpush1.msra.mxu0 %v2075
        %4516 = vmatprep.subr.mxu0 %v2078
        %4517 = vmatpush1.msra.mxu0 %v2077
        %4518 = vmatprep.subr.mxu0 %v2080
        %4519 = vmatpush1.msra.mxu0 %v2079
        %4520 = vmatprep.subr.mxu0 %v2082
        %4521 = vmatpush1.msra.mxu0 %v2081
        %4522 = vmatprep.subr.mxu0 %v2084
        %4523 = vmatpush1.msra.mxu0 %v2083
        %4524 = vmatprep.subr.mxu0 %v2086
        %4525 = vmatpush1.msra.mxu0 %v2085
        %4526 = vmatprep.subr.mxu0 %v2088
        %4527 = vmatpush1.msra.mxu0 %v2087
        %4528 = vmatprep.subr.mxu0 %v2090
        %4529 = vmatpush1.msra.mxu0 %v2089
        %4530 = vmatprep.subr.mxu0 %v2092
        %4531 = vmatpush1.msra.mxu0 %v2091
        %4532 = vmatprep.subr.mxu0 %v2094
        %4533 = vmatpush1.msra.mxu0 %v2093
        %4534 = vmatprep.subr.mxu0 %v2096
        %4535 = vmatpush1.msra.mxu0 %v2095
        %4536 = vmatprep.mubr.f32.mxu0 %v2477
        %4537 = vmatmul.mubr.f32.gmra.mrb[0].mxu0 %v2475
        %v4538 = vpop.f32.mrb[0].mxu0
        %v4539 = vadd.f32 %v4468, %v4538
        %v4540 = vpop.f32.mrb[0].mxu0
        %v4541 = vadd.f32 %v4470, %v4540
        %4542 = vdwg.mxu0
        %4543 = vmatprep.subr.mxu0 %v2098
        %4544 = vmatpush1.msra.mxu0 %v2097
        %4545 = vmatprep.subr.mxu0 %v2100
        %4546 = vmatpush1.msra.mxu0 %v2099
        %4547 = vmatprep.subr.mxu0 %v2102
        %4548 = vmatpush1.msra.mxu0 %v2101
        %4549 = vmatprep.subr.mxu0 %v2104
        %4550 = vmatpush1.msra.mxu0 %v2103
        %4551 = vmatprep.subr.mxu0 %v2106
        %4552 = vmatpush1.msra.mxu0 %v2105
        %4553 = vmatprep.subr.mxu0 %v2108
        %4554 = vmatpush1.msra.mxu0 %v2107
        %4555 = vmatprep.subr.mxu0 %v2110
        %4556 = vmatpush1.msra.mxu0 %v2109
        %4557 = vmatprep.subr.mxu0 %v2112
        %4558 = vmatpush1.msra.mxu0 %v2111
        %4559 = vmatprep.subr.mxu0 %v2114
        %4560 = vmatpush1.msra.mxu0 %v2113
        %4561 = vmatprep.subr.mxu0 %v2116
        %4562 = vmatpush1.msra.mxu0 %v2115
        %4563 = vmatprep.subr.mxu0 %v2118
        %4564 = vmatpush1.msra.mxu0 %v2117
        %4565 = vmatprep.subr.mxu0 %v2120
        %4566 = vmatpush1.msra.mxu0 %v2119
        %4567 = vmatprep.subr.mxu0 %v2122
        %4568 = vmatpush1.msra.mxu0 %v2121
        %4569 = vmatprep.subr.mxu0 %v2124
        %4570 = vmatpush1.msra.mxu0 %v2123
        %4571 = vmatprep.subr.mxu0 %v2126
        %4572 = vmatpush1.msra.mxu0 %v2125
        %4573 = vmatprep.subr.mxu0 %v2128
        %4574 = vmatpush1.msra.mxu0 %v2127
        %4575 = vmatprep.subr.mxu0 %v2130
        %4576 = vmatpush1.msra.mxu0 %v2129
        %4577 = vmatprep.subr.mxu0 %v2132
        %4578 = vmatpush1.msra.mxu0 %v2131
        %4579 = vmatprep.subr.mxu0 %v2134
        %4580 = vmatpush1.msra.mxu0 %v2133
        %4581 = vmatprep.subr.mxu0 %v2136
        %4582 = vmatpush1.msra.mxu0 %v2135
        %4583 = vmatprep.subr.mxu0 %v2138
        %4584 = vmatpush1.msra.mxu0 %v2137
        %4585 = vmatprep.subr.mxu0 %v2140
        %4586 = vmatpush1.msra.mxu0 %v2139
        %4587 = vmatprep.subr.mxu0 %v2142
        %4588 = vmatpush1.msra.mxu0 %v2141
        %4589 = vmatprep.subr.mxu0 %v2144
        %4590 = vmatpush1.msra.mxu0 %v2143
        %4591 = vmatprep.subr.mxu0 %v2146
        %4592 = vmatpush1.msra.mxu0 %v2145
        %4593 = vmatprep.subr.mxu0 %v2148
        %4594 = vmatpush1.msra.mxu0 %v2147
        %4595 = vmatprep.subr.mxu0 %v2150
        %4596 = vmatpush1.msra.mxu0 %v2149
        %4597 = vmatprep.subr.mxu0 %v2152
        %4598 = vmatpush1.msra.mxu0 %v2151
        %4599 = vmatprep.subr.mxu0 %v2154
        %4600 = vmatpush1.msra.mxu0 %v2153
        %4601 = vmatprep.subr.mxu0 %v2156
        %4602 = vmatpush1.msra.mxu0 %v2155
        %4603 = vmatprep.subr.mxu0 %v2158
        %4604 = vmatpush1.msra.mxu0 %v2157
        %4605 = vmatprep.subr.mxu0 %v2160
        %4606 = vmatpush1.msra.mxu0 %v2159
        %4607 = vmatprep.mubr.f32.mxu0 %v2493
        %4608 = vmatmul.mubr.f32.gmra.mrb[0].mxu0 %v2485
        %v4609 = vpop.f32.mrb[0].mxu0
        %v4610 = vadd.f32 %v4539, %v4609
        %v4611 = vpop.f32.mrb[0].mxu0
        %v4612 = vadd.f32 %v4541, %v4611
        %4613 = vdwg.mxu0
        %4614 = vmatprep.subr.mxu0 %v2162
        %4615 = vmatpush1.msra.mxu0 %v2161
        %4616 = vmatprep.subr.mxu0 %v2164
        %4617 = vmatpush1.msra.mxu0 %v2163
        %4618 = vmatprep.subr.mxu0 %v2166
        %4619 = vmatpush1.msra.mxu0 %v2165
        %4620 = vmatprep.subr.mxu0 %v2168
        %4621 = vmatpush1.msra.mxu0 %v2167
        %4622 = vmatprep.subr.mxu0 %v2170
        %4623 = vmatpush1.msra.mxu0 %v2169
        %4624 = vmatprep.subr.mxu0 %v2172
        %4625 = vmatpush1.msra.mxu0 %v2171
        %4626 = vmatprep.subr.mxu0 %v2174
        %4627 = vmatpush1.msra.mxu0 %v2173
        %4628 = vmatprep.subr.mxu0 %v2176
        %4629 = vmatpush1.msra.mxu0 %v2175
        %4630 = vmatprep.subr.mxu0 %v2178
        %4631 = vmatpush1.msra.mxu0 %v2177
        %4632 = vmatprep.subr.mxu0 %v2180
        %4633 = vmatpush1.msra.mxu0 %v2179
        %4634 = vmatprep.subr.mxu0 %v2182
        %4635 = vmatpush1.msra.mxu0 %v2181
        %4636 = vmatprep.subr.mxu0 %v2184
        %4637 = vmatpush1.msra.mxu0 %v2183
        %4638 = vmatprep.subr.mxu0 %v2186
        %4639 = vmatpush1.msra.mxu0 %v2185
        %4640 = vmatprep.subr.mxu0 %v2188
        %4641 = vmatpush1.msra.mxu0 %v2187
        %4642 = vmatprep.subr.mxu0 %v2190
        %4643 = vmatpush1.msra.mxu0 %v2189
        %4644 = vmatprep.subr.mxu0 %v2192
        %4645 = vmatpush1.msra.mxu0 %v2191
        %4646 = vmatprep.subr.mxu0 %v2194
        %4647 = vmatpush1.msra.mxu0 %v2193
        %4648 = vmatprep.subr.mxu0 %v2196
        %4649 = vmatpush1.msra.mxu0 %v2195
        %4650 = vmatprep.subr.mxu0 %v2198
        %4651 = vmatpush1.msra.mxu0 %v2197
        %4652 = vmatprep.subr.mxu0 %v2200
        %4653 = vmatpush1.msra.mxu0 %v2199
        %4654 = vmatprep.subr.mxu0 %v2202
        %4655 = vmatpush1.msra.mxu0 %v2201
        %4656 = vmatprep.subr.mxu0 %v2204
        %4657 = vmatpush1.msra.mxu0 %v2203
        %4658 = vmatprep.subr.mxu0 %v2206
        %4659 = vmatpush1.msra.mxu0 %v2205
        %4660 = vmatprep.subr.mxu0 %v2208
        %4661 = vmatpush1.msra.mxu0 %v2207
        %4662 = vmatprep.subr.mxu0 %v2210
        %4663 = vmatpush1.msra.mxu0 %v2209
        %4664 = vmatprep.subr.mxu0 %v2212
        %4665 = vmatpush1.msra.mxu0 %v2211
        %4666 = vmatprep.subr.mxu0 %v2214
        %4667 = vmatpush1.msra.mxu0 %v2213
        %4668 = vmatprep.subr.mxu0 %v2216
        %4669 = vmatpush1.msra.mxu0 %v2215
        %4670 = vmatprep.subr.mxu0 %v2218
        %4671 = vmatpush1.msra.mxu0 %v2217
        %4672 = vmatprep.subr.mxu0 %v2220
        %4673 = vmatpush1.msra.mxu0 %v2219
        %4674 = vmatprep.subr.mxu0 %v2222
        %4675 = vmatpush1.msra.mxu0 %v2221
        %4676 = vmatprep.subr.mxu0 %v2224
        %4677 = vmatpush1.msra.mxu0 %v2223
        %4678 = vmatprep.mubr.f32.mxu0 %v2494
        %4679 = vmatmul.mubr.f32.gmra.mrb[0].mxu0 %v2492
        %v4680 = vpop.f32.mrb[0].mxu0
        %v4681 = vadd.f32 %v4610, %v4680
        %v4682 = vpop.f32.mrb[0].mxu0
        %v4683 = vadd.f32 %v4612, %v4682
        %4684 = vdwg.mxu0
        %v4687 = vcombine.low %v4681, %v4683
        %v4689 = vunpack.c.l.s4 1983009808
        %v4690 = vunpack.c.0.s8 %v4689
        %v4691 = vlaneseq
        %v4692 = vshrl.u32 %v4691, 7
        %v4693 = vsub.s32 %v4690, %v4692
        %v4694 = vrot.slane %v4687, %v4693
        %v4696 = vadd.f32 %v289, %v4694
        %4697 = vst [vmem:[#allocation2] sm:$0xf] %v4696
        %p4698 = scmp.eq.s32.totalorder %s28, 3
        // Predicated region
        $region49: #{tpu_custom_call.1} parent=31 // pred_check
          %p4699 = pneg %p4698
        $region50: #{tpu_custom_call.1} parent=31 // pred_check_branch
          %4701 = sbr.rel (%p4699) target = $region52
        $region51: #{tpu_custom_call.1} parent=31 // pred_region
          %v4702 = vld [vmem:[#allocation2] sm:$0xf]
          %v4703 = vld [vmem:[%s246] sm:$0x3]
          %v4705 = vlaneseq
          %v4706 = vshrl.u32 %v4705, 7
          %v4707 = vsub.s32 0, %v4706
          %v4708 = vrot.slane %v4703, %v4707
          %v4709 = vlaneseq
          %v4710 = vshrl.u32 %v4709, 7
          %v4711 = vsub.s32 1, %v4710
          %v4712 = vrot.slane %v4703, %v4711
          %v4713 = vcombine.low %v4708, %v4712
          %v4715 = vunpack.c.l.s4 1983009808
          %v4716 = vunpack.c.0.s8 %v4715
          %v4717 = vlaneseq
          %v4718 = vshrl.u32 %v4717, 7
          %v4719 = vsub.s32 %v4716, %v4718
          %v4720 = vrot.slane %v4713, %v4719
          %v4722 = vadd.f32 %v4702, %v4720
          %v4723 = vmax.f32 %v4722, 0.0
          %4724 = vst [vmem:[%s278] sm:$0xf] %v4723
        $region52: #{tpu_custom_call.1} parent=31 // pred_fallthru
          _
        %s4725 = sand.u32 %s123, 1
        %s4726 = scalar_lea.sflag [#allocation5], %s4725
        %s4727 = sand.u32 %s123, 1
        %s4728 = smul.addr %s4727, 4
        %s4729 = scalar_lea.vmem [#allocation9], %s4728
        // Predicated region
        $region53: #{tpu_custom_call.1} parent=31 // pred_check
          %p4730 = pneg %p133
        $region54: #{tpu_custom_call.1} parent=31 // pred_check_branch
          %4732 = sbr.rel (%p4730) target = $region56
        $region55: #{tpu_custom_call.1} parent=31 // pred_region
          %s4733 = smul.u32 2, %s27
          %s4735 = ssub.s32 64, 64
          %4736 = vsyncadd %s4726, %s4735
          %s4737 = smul.addr %s4733, 32
          %s4738 = scalar_lea.hbm %s3, %s4737
          %s4740 = sshll.u32 %s4729, 4
          %s4741 = int_to_ptr.vmem [resolvable:$true] %s4740
          %4743 = dma.vmem_to_hbm [thread:$0]  %s4741, 64, %s4738, %s4726
        $region56: #{tpu_custom_call.1} parent=31 // pred_fallthru
          _
      $region32: #{tpu_custom_call.1} parent=5 // pred_fallthru
        _
      %p4744 = scmp.le.s32.totalorder 2, %s18
      // Predicated region
      $region57: #{tpu_custom_call.1} parent=5 // pred_check
        %p4745 = pneg %p4744
      $region58: #{tpu_custom_call.1} parent=5 // pred_check_branch
        %4747 = sbr.rel (%p4745) target = $region60
      $region59: #{tpu_custom_call.1} parent=5 // pred_region
        %s4748 = ssub.s32 %s18, 2
        // Predicated region
        $region61: #{tpu_custom_call.1} parent=59 // pred_check
          %p4749 = pneg %p139
        $region62: #{tpu_custom_call.1} parent=59 // pred_check_branch
          %4751 = sbr.rel (%p4749) target = $region64
        $region63: #{tpu_custom_call.1} parent=59 // pred_region
          %s4752 = sand.u32 %s124, 1
          %s4753 = scalar_lea.sflag [#allocation5], %s4752
          %s4754 = sand.u32 %s124, 1
          %s4755 = smul.addr %s4754, 4
          %s4756 = scalar_lea.vmem [#allocation9], %s4755
          %4757 = dma.done %s4753, 64
        $region64: #{tpu_custom_call.1} parent=59 // pred_fallthru
          _
      $region60: #{tpu_custom_call.1} parent=5 // pred_fallthru
        _
    $region6: #{tpu_custom_call.1} parent=1 // loop_footer
      %s22 = sadd.s32 1, %s18
    $region7: #{tpu_custom_call.1} parent=1 // loop_footer_branch
      %17 = sbr.rel target = $region3
    $region8: #{tpu_custom_call.1} parent=1 // loop_exit
      _
    %4758 = vsyncpa [#allocation4], 1
    %s4759 = scalar_lea.sflag [#allocation4], 1
    %4760 = vsyncpa %s4759, 1
    %4761 = vsyncpa [#allocation7], 1
    %s4762 = scalar_lea.sflag [#allocation7], 1
    %4763 = vsyncpa %s4762, 1
    %4764 = vsyncpa [#allocation5], 1
    %s4765 = scalar_lea.sflag [#allocation5], 1
    %4766 = vsyncpa %s4765, 1

</llo_original>
